<compile_context>
chip_gen: v7x
topology: tpu7x:2x2x1
jax: 0.10.0
libtpu: 0.0.40
codegen_flags: <defaults>
</compile_context>

<pallas_src>
import functools

import jax
import jax.numpy as jnp
from jax.experimental import pallas as pl
from jax.experimental.pallas import tpu as pltpu

# ----------------------------- static sizes -------------------------------- #
IMG = 32                  # input spatial size (implied by the 16*5*5 flatten)
LANES = 128               # output-channel / feature lane padding
ROWS_IMG = 784            # conv1 output positions per image (28*28)
QUARTER = 196             # one (dy, dx) quarter of the conv1 output = pooled positions
N_C2 = 136                # conv2 rows computed per image on the 14-wide grid (10*14 - 4)
K_CONV1 = 75              # conv1 contraction: 5*5*3 taps folded into K
K_CONV2 = 40              # conv2 contraction per kh: 5 kw-groups of 8 lanes (6 real ch)
K_FC1 = 512               # fc1 contraction (400 real features, zero padded)


def _images_per_step(batch):
    """Largest G<=8 dividing batch that still leaves >=2 grid steps (v7x: 2 TCs)."""
    divs = [g for g in range(1, min(batch, 8) + 1) if batch % g == 0]
    two_step = [g for g in divs if batch // g >= 2]
    return max(two_step) if two_step else max(divs)


# ------------------------------ fused kernel ------------------------------- #
def _convnet_kernel(x_ref, w1_ref, b1_ref, w2_ref, b2_ref,
                    wf1_ref, bf1_ref, wf2_ref, bf2_ref, wf3_ref, bf3_ref,
                    out_ref,
                    c1_ref, p1_ref, p1kw_ref, c2_ref, fcin_ref,
                    *, images):
    f32 = jnp.float32
    bf16 = jnp.bfloat16

    # ---- conv1 for ALL images in this step: a single (G*784, 75) @ (75, 128) MXU dot.
    # Tap accumulation lives entirely inside the MXU (host-side im2col folded K=75).
    c1_ref[...] = jnp.dot(x_ref[...], w1_ref[...], preferred_element_type=f32)

    # fc input: zero once per step (2 vregs) so the zero-padded lanes 400..511 and the
    # unused sublane rows are real zeros (no stale-VMEM NaN/Inf through the fc1 dot).
    fcin_ref[...] = jnp.zeros_like(fcin_ref)

    for g in range(images):
        base = ROWS_IMG * g

        # ---- pool1 + bias + ReLU: host row order (dy, dx, ph, pw) makes every 2x2
        # window a max over 4 CONTIGUOUS 196-row quarters (no strided reads, no dead rows).
        q0 = c1_ref[pl.ds(base, QUARTER), :]
        q1 = c1_ref[pl.ds(base + QUARTER, QUARTER), :]
        q2 = c1_ref[pl.ds(base + 2 * QUARTER, QUARTER), :]
        q3 = c1_ref[pl.ds(base + 3 * QUARTER, QUARTER), :]
        p1 = jnp.maximum(jnp.maximum(q0, q1), jnp.maximum(q2, q3))
        p1 = jnp.maximum(p1 + b1_ref[...], 0.0)          # fused bias + ReLU (monotone)
        p1_ref[...] = p1.astype(bf16)                     # 14x14 pooled map, raster rows

        # ---- kw-fold pool1 into 8-lane aligned groups: p1kw[r, 8*kw + c] = p1[r+kw, c].
        # (lanes 6,7 of p1 are exact zeros, matching the zero-padded conv2 weight rows)
        for kw in range(5):
            p1kw_ref[pl.ds(0, 192), pl.ds(8 * kw, 8)] = p1_ref[pl.ds(kw, 192), pl.ds(0, 8)]

        # ---- conv2: 5 value-accumulated dots (one per kh), K=40 each; accumulation stays
        # in registers / MXU result path, no VMEM read-modify-write.
        c2 = jnp.dot(p1kw_ref[pl.ds(0, N_C2), :], w2_ref[0],
                     preferred_element_type=f32)
        for kh in range(1, 5):
            c2 = c2 + jnp.dot(p1kw_ref[pl.ds(14 * kh, N_C2), :], w2_ref[kh],
                              preferred_element_type=f32)
        c2_ref[...] = c2                                  # rows j = oh*14 + ow (10x10 valid)

        # ---- pool2 + bias + ReLU + flatten: only the 25 consumed positions, written
        # straight into this image's fc-input row in (h, w, c) feature order.
        for ph in range(5):
            for pw in range(5):
                r0 = 28 * ph + 2 * pw
                m = jnp.maximum(
                    jnp.maximum(c2_ref[pl.ds(r0, 1), :], c2_ref[pl.ds(r0 + 1, 1), :]),
                    jnp.maximum(c2_ref[pl.ds(r0 + 14, 1), :], c2_ref[pl.ds(r0 + 15, 1), :]))
                m = jnp.maximum(m + b2_ref[...], 0.0)
                pos = ph * 5 + pw
                fcin_ref[pl.ds(g, 1), pl.ds(16 * pos, 16)] = m[:, 0:16].astype(bf16)

    # ---- fused FC stack (bf16 operands, f32 accumulation, 128-lane dense).
    h = jnp.dot(fcin_ref[...], wf1_ref[...], preferred_element_type=f32) + bf1_ref[...]
    h = jnp.maximum(h, 0.0).astype(bf16)
    h = jnp.dot(h, wf2_ref[...], preferred_element_type=f32) + bf2_ref[...]
    h = jnp.maximum(h, 0.0).astype(bf16)
    out_ref[...] = jnp.dot(h, wf3_ref[...], preferred_element_type=f32) + bf3_ref[...]


# ------------------------------ host wrappers ------------------------------ #
def _prep_x(x_nchw):
    """Host-side im2col for conv1.

    Rows (per image) ordered (dy, dx, ph, pw) with conv-output position
    (y, x) = (2*ph+dy, 2*pw+dx)  ->  each 2x2 max-pool window is one row of each of the
    four contiguous 196-row quarters.  Features ordered (kh, kw, c), K = 75.
    """
    b = x_nchw.shape[0]
    xh = jnp.transpose(x_nchw, (0, 2, 3, 1))                          # (B, 32, 32, 3)
    taps = [xh[:, kh:kh + 28, kw:kw + 28, :]
            for kh in range(5) for kw in range(5)]                    # 25 x (B,28,28,3)
    pat = jnp.stack(taps, axis=3)                                     # (B,28,28,25,3)
    pat = pat.reshape(b, 14, 2, 14, 2, 25, 3)                         # (B,ph,dy,pw,dx,t,c)
    pat = jnp.transpose(pat, (0, 2, 4, 1, 3, 5, 6))                   # (B,dy,dx,ph,pw,t,c)
    return pat.reshape(b * ROWS_IMG, K_CONV1).astype(jnp.bfloat16)


def convnet_forward(x_nchw, kp):
    b = x_nchw.shape[0]
    g = _images_per_step(b)
    steps = b // g
    x_rows = _prep_x(x_nchw)
    kernel = functools.partial(_convnet_kernel, images=g)

    out = pl.pallas_call(
        kernel,
        out_shape=jax.ShapeDtypeStruct((steps * 8, LANES), jnp.float32),
        grid_spec=pltpu.PrefetchScalarGridSpec(
            num_scalar_prefetch=0,
            grid=(steps,),
            in_specs=[
                pl.BlockSpec((g * ROWS_IMG, K_CONV1), lambda i: (i, 0)),  # im2col rows
                pl.BlockSpec((K_CONV1, LANES), lambda i: (0, 0)),         # conv1 weight
                pl.BlockSpec((1, LANES), lambda i: (0, 0)),               # conv1 bias
                pl.BlockSpec((5, K_CONV2, LANES), lambda i: (0, 0, 0)),   # conv2 weight
                pl.BlockSpec((1, LANES), lambda i: (0, 0)),               # conv2 bias
                pl.BlockSpec((K_FC1, LANES), lambda i: (0, 0)),           # fc1 weight
                pl.BlockSpec((1, LANES), lambda i: (0, 0)),               # fc1 bias
                pl.BlockSpec((LANES, LANES), lambda i: (0, 0)),           # fc2 weight
                pl.BlockSpec((1, LANES), lambda i: (0, 0)),               # fc2 bias
                pl.BlockSpec((LANES, LANES), lambda i: (0, 0)),           # fc3 weight
                pl.BlockSpec((1, LANES), lambda i: (0, 0)),               # fc3 bias
            ],
            out_specs=pl.BlockSpec((8, LANES), lambda i: (i, 0)),
            scratch_shapes=[
                pltpu.VMEM((g * ROWS_IMG, LANES), jnp.float32),  # conv1 raw (all images)
                pltpu.VMEM((QUARTER, LANES), jnp.bfloat16),      # pool1 (one image)
                pltpu.VMEM((192, K_CONV2), jnp.bfloat16),        # kw-folded pool1
                pltpu.VMEM((N_C2, LANES), jnp.float32),          # conv2 raw (one image)
                pltpu.VMEM((8, K_FC1), jnp.bfloat16),            # flattened fc input
            ],
        ),
        compiler_params=pltpu.CompilerParams(dimension_semantics=("parallel",)),
    )(x_rows, kp["w1"], kp["b1"], kp["w2"], kp["b2"],
      kp["wf1"], kp["bf1"], kp["wf2"], kp["bf2"], kp["wf3"], kp["bf3"])
    return out.reshape(steps, 8, LANES)[:, :g, :10].reshape(b, 10)


def prepare_params(p):
    """One-time packing of PyTorch-layout params into kernel layout (outside jit)."""
    bf16 = jnp.bfloat16

    def padmat(a, r, c, dt):
        return jnp.pad(a, ((0, r - a.shape[0]), (0, c - a.shape[1]))).astype(dt)

    # conv1: all 25 taps folded into K=75, rows (kh, kw, c), 128 zero-padded out lanes.
    w1 = jnp.transpose(p["conv1_w"], (2, 3, 1, 0)).reshape(K_CONV1, 6)
    # conv2: per-kh slabs, rows 8*kw + c (c padded 6->8 to match the 8-lane kw-fold).
    w2 = jnp.transpose(p["conv2_w"], (2, 3, 1, 0))              # (5,5,6,16) [kh,kw,c,oc]
    w2 = jnp.pad(w2, ((0, 0), (0, 0), (0, 2), (0, 0)))          # (5,5,8,16)
    w2 = w2.reshape(5, K_CONV2, 16)
    w2 = jnp.pad(w2, ((0, 0), (0, 0), (0, LANES - 16))).astype(bf16)
    # fc1: permute input features from PyTorch's (c, h, w) flatten order to (h, w, c).
    wf1 = jnp.transpose(p["fc1_w"].reshape(120, 16, 5, 5), (2, 3, 1, 0)).reshape(400, 120)
    return {
        "w1": padmat(w1, K_CONV1, LANES, bf16),
        "b1": padmat(p["conv1_b"].reshape(1, 6), 1, LANES, jnp.float32),
        "w2": w2,
        "b2": padmat(p["conv2_b"].reshape(1, 16), 1, LANES, jnp.float32),
        "wf1": padmat(wf1, K_FC1, LANES, bf16),
        "bf1": padmat(p["fc1_b"].reshape(1, 120), 1, LANES, jnp.float32),
        "wf2": padmat(p["fc2_w"].T, LANES, LANES, bf16),
        "bf2": padmat(p["fc2_b"].reshape(1, 84), 1, LANES, jnp.float32),
        "wf3": padmat(p["fc3_w"].T, LANES, LANES, bf16),
        "bf3": padmat(p["fc3_b"].reshape(1, 10), 1, LANES, jnp.float32),
    }


# --------------------------------- params ----------------------------------- #
def init_params(key):
    def dense_init(k, shape, fan_in):
        return (jax.random.normal(k, shape, jnp.float32) / jnp.sqrt(fan_in)).astype(jnp.float32)

    ks = jax.random.split(key, 10)
    return {
        # PyTorch parameter shapes: Conv2d weight (OC, IC, KH, KW), Linear weight (out, in)
        "conv1_w": dense_init(ks[0], (6, 3, 5, 5), 3 * 5 * 5),
        "conv1_b": dense_init(ks[1], (6,), 3 * 5 * 5),
        "conv2_w": dense_init(ks[2], (16, 6, 5, 5), 6 * 5 * 5),
        "conv2_b": dense_init(ks[3], (16,), 6 * 5 * 5),
        "fc1_w":   dense_init(ks[4], (120, 400), 400),
        "fc1_b":   dense_init(ks[5], (120,), 400),
        "fc2_w":   dense_init(ks[6], (84, 120), 120),
        "fc2_b":   dense_init(ks[7], (84,), 120),
        "fc3_w":   dense_init(ks[8], (10, 84), 84),
        "fc3_b":   dense_init(ks[9], (10,), 84),
    }


# ---------------------- pure-JAX reference (for checking) ------------------- #
def convnet_reference(x, p):
    hi = jax.lax.Precision.HIGHEST

    def conv(z, w, b):
        y = jax.lax.conv_general_dilated(
            z, w, window_strides=(1, 1), padding="VALID",
            dimension_numbers=("NCHW", "OIHW", "NCHW"), precision=hi)
        return y + b[None, :, None, None]

    def pool(z):
        bb, cc, hh, ww = z.shape
        return z.reshape(bb, cc, hh // 2, 2, ww // 2, 2).max(axis=(3, 5))

    y = pool(jnp.maximum(conv(x, p["conv1_w"], p["conv1_b"]), 0.0))
    y = pool(jnp.maximum(conv(y, p["conv2_w"], p["conv2_b"]), 0.0))
    y = y.reshape(y.shape[0], 16 * 5 * 5)
    y = jnp.maximum(jnp.dot(y, p["fc1_w"].T, precision=hi) + p["fc1_b"], 0.0)
    y = jnp.maximum(jnp.dot(y, p["fc2_w"].T, precision=hi) + p["fc2_b"], 0.0)
    return jnp.dot(y, p["fc3_w"].T, precision=hi) + p["fc3_b"]


if __name__ == "__main__":
    root = jax.random.PRNGKey(0)
    pkey, xkey = jax.random.split(root)
    params = init_params(pkey)
    kparams = prepare_params(params)            # one-time weight packing, outside jit
    x = jax.random.normal(xkey, (2, 3, 32, 32), jnp.float32)

    fwd = jax.jit(convnet_forward)
    out = fwd(x, kparams)
    jax.block_until_ready(out)

    assert out.shape == (2, 10), out.shape
    assert out.dtype == jnp.float32
    assert bool(jnp.all(jnp.isfinite(out)))
    ref = convnet_reference(x, params)
    assert bool(jnp.allclose(out, ref, atol=5e-2, rtol=5e-2)), \
        float(jnp.max(jnp.abs(out - ref)))
    print("KERNEL_OK")
</pallas_src>

<mosaic_0001>
module attributes {stable_mosaic.version = 11 : i64} {
  func.func @_convnet_kernel(%arg0: i32, %arg1: memref<784x75xbf16, #tpu.memory_space<vmem>>, %arg2: memref<75x128xbf16, #tpu.memory_space<vmem>>, %arg3: memref<1x128xf32, #tpu.memory_space<vmem>>, %arg4: memref<5x40x128xbf16, #tpu.memory_space<vmem>>, %arg5: memref<1x128xf32, #tpu.memory_space<vmem>>, %arg6: memref<512x128xbf16, #tpu.memory_space<vmem>>, %arg7: memref<1x128xf32, #tpu.memory_space<vmem>>, %arg8: memref<128x128xbf16, #tpu.memory_space<vmem>>, %arg9: memref<1x128xf32, #tpu.memory_space<vmem>>, %arg10: memref<128x128xbf16, #tpu.memory_space<vmem>>, %arg11: memref<1x128xf32, #tpu.memory_space<vmem>>, %arg12: memref<8x128xf32, #tpu.memory_space<vmem>>, %arg13: memref<784x128xf32, #tpu.memory_space<vmem>>, %arg14: memref<196x128xbf16, #tpu.memory_space<vmem>>, %arg15: memref<192x40xbf16, #tpu.memory_space<vmem>>, %arg16: memref<136x128xf32, #tpu.memory_space<vmem>>, %arg17: memref<8x512xbf16, #tpu.memory_space<vmem>>) attributes {dimension_semantics = [#tpu.dimension_semantics<parallel>], iteration_bounds = array<i64: 2>, scalar_prefetch = 0 : i64, scratch_operands = 5 : i64, tpu.core_type = #tpu.core_type<tc>, window_params = [{transform_indices = @transform_0, window_bounds = array<i64: 784, 75>}, {pipeline_mode = #tpu.pipeline_mode<synchronous>, transform_indices = @transform_1, window_bounds = array<i64: 75, 128>}, {pipeline_mode = #tpu.pipeline_mode<synchronous>, transform_indices = @transform_2, window_bounds = array<i64: 1, 128>}, {pipeline_mode = #tpu.pipeline_mode<synchronous>, transform_indices = @transform_3, window_bounds = array<i64: 5, 40, 128>}, {pipeline_mode = #tpu.pipeline_mode<synchronous>, transform_indices = @transform_4, window_bounds = array<i64: 1, 128>}, {pipeline_mode = #tpu.pipeline_mode<synchronous>, transform_indices = @transform_5, window_bounds = array<i64: 512, 128>}, {pipeline_mode = #tpu.pipeline_mode<synchronous>, transform_indices = @transform_6, window_bounds = array<i64: 1, 128>}, {pipeline_mode = #tpu.pipeline_mode<synchronous>, transform_indices = @transform_7, window_bounds = array<i64: 128, 128>}, {pipeline_mode = #tpu.pipeline_mode<synchronous>, transform_indices = @transform_8, window_bounds = array<i64: 1, 128>}, {pipeline_mode = #tpu.pipeline_mode<synchronous>, transform_indices = @transform_9, window_bounds = array<i64: 128, 128>}, {pipeline_mode = #tpu.pipeline_mode<synchronous>, transform_indices = @transform_10, window_bounds = array<i64: 1, 128>}, {transform_indices = @transform_11, window_bounds = array<i64: 8, 128>}]} {
    %c0 = arith.constant 0 : index
    %c0_0 = arith.constant 0 : index
    %0 = vector.load %arg1[%c0, %c0_0] : memref<784x75xbf16, #tpu.memory_space<vmem>>, vector<784x75xbf16>
    %c0_1 = arith.constant 0 : index
    %c0_2 = arith.constant 0 : index
    %1 = vector.load %arg2[%c0_1, %c0_2] : memref<75x128xbf16, #tpu.memory_space<vmem>>, vector<75x128xbf16>
    %cst = arith.constant dense<0.000000e+00> : vector<784x128xf32>
    %2 = tpu.matmul %0, %1, %cst {dimension_numbers = #tpu.dot_dimension_numbers<[1], [0], [0], [1], [0, 0, 1, 1], [], []>} : vector<784x75xbf16>, vector<75x128xbf16>, vector<784x128xf32> -> vector<784x128xf32>
    %c0_3 = arith.constant 0 : index
    %c0_4 = arith.constant 0 : index
    %3 = vector.load %arg13[%c0_3, %c0_4] : memref<784x128xf32, #tpu.memory_space<vmem>>, vector<784x128xf32>
    tpu.vector_store %arg13[%c0_3, %c0_4], %2 {strides = array<i32>} : memref<784x128xf32, #tpu.memory_space<vmem>>, vector<784x128xf32>,
    %cst_5 = arith.constant 0.000000e+00 : bf16
    %4 = vector.broadcast %cst_5 : bf16 to vector<8x512xbf16>
    %c0_6 = arith.constant 0 : index
    %c0_7 = arith.constant 0 : index
    %5 = vector.load %arg17[%c0_6, %c0_7] : memref<8x512xbf16, #tpu.memory_space<vmem>>, vector<8x512xbf16>
    tpu.vector_store %arg17[%c0_6, %c0_7], %4 {strides = array<i32>} : memref<8x512xbf16, #tpu.memory_space<vmem>>, vector<8x512xbf16>,
    %c0_8 = arith.constant 0 : index
    %c0_9 = arith.constant 0 : index
    %6 = vector.load %arg13[%c0_8, %c0_9] : memref<784x128xf32, #tpu.memory_space<vmem>>, vector<196x128xf32>
    %c196 = arith.constant 196 : index
    %c0_10 = arith.constant 0 : index
    %7 = vector.load %arg13[%c196, %c0_10] : memref<784x128xf32, #tpu.memory_space<vmem>>, vector<196x128xf32>
    %c392 = arith.constant 392 : index
    %c0_11 = arith.constant 0 : index
    %8 = vector.load %arg13[%c392, %c0_11] : memref<784x128xf32, #tpu.memory_space<vmem>>, vector<196x128xf32>
    %c588 = arith.constant 588 : index
    %c0_12 = arith.constant 0 : index
    %9 = vector.load %arg13[%c588, %c0_12] : memref<784x128xf32, #tpu.memory_space<vmem>>, vector<196x128xf32>
    %10 = arith.maximumf %6, %7 : vector<196x128xf32>
    %11 = arith.maximumf %8, %9 : vector<196x128xf32>
    %12 = arith.maximumf %10, %11 : vector<196x128xf32>
    %c0_13 = arith.constant 0 : index
    %c0_14 = arith.constant 0 : index
    %13 = vector.load %arg3[%c0_13, %c0_14] : memref<1x128xf32, #tpu.memory_space<vmem>>, vector<1x128xf32>
    %14 = vector.broadcast %13 : vector<1x128xf32> to vector<196x128xf32>
    %15 = arith.addf %12, %14 : vector<196x128xf32>
    %cst_15 = arith.constant 0.000000e+00 : f32
    %16 = vector.broadcast %cst_15 : f32 to vector<196x128xf32>
    %17 = arith.maximumf %15, %16 : vector<196x128xf32>
    %18 = arith.truncf %17 : vector<196x128xf32> to vector<196x128xbf16>
    %c0_16 = arith.constant 0 : index
    %c0_17 = arith.constant 0 : index
    %19 = vector.load %arg14[%c0_16, %c0_17] : memref<196x128xbf16, #tpu.memory_space<vmem>>, vector<196x128xbf16>
    tpu.vector_store %arg14[%c0_16, %c0_17], %18 {strides = array<i32>} : memref<196x128xbf16, #tpu.memory_space<vmem>>, vector<196x128xbf16>,
    %c0_18 = arith.constant 0 : index
    %c0_19 = arith.constant 0 : index
    %20 = vector.load %arg14[%c0_18, %c0_19] : memref<196x128xbf16, #tpu.memory_space<vmem>>, vector<192x8xbf16>
    %c0_20 = arith.constant 0 : index
    %c0_21 = arith.constant 0 : index
    %21 = vector.load %arg15[%c0_20, %c0_21] : memref<192x40xbf16, #tpu.memory_space<vmem>>, vector<192x8xbf16>
    tpu.vector_store %arg15[%c0_20, %c0_21], %20 {strides = array<i32>} : memref<192x40xbf16, #tpu.memory_space<vmem>>, vector<192x8xbf16>,
    %c1 = arith.constant 1 : index
    %c0_22 = arith.constant 0 : index
    %22 = vector.load %arg14[%c1, %c0_22] : memref<196x128xbf16, #tpu.memory_space<vmem>>, vector<192x8xbf16>
    %c0_23 = arith.constant 0 : index
    %c8 = arith.constant 8 : index
    %23 = vector.load %arg15[%c0_23, %c8] : memref<192x40xbf16, #tpu.memory_space<vmem>>, vector<192x8xbf16>
    tpu.vector_store %arg15[%c0_23, %c8], %22 {strides = array<i32>} : memref<192x40xbf16, #tpu.memory_space<vmem>>, vector<192x8xbf16>,
    %c2 = arith.constant 2 : index
    %c0_24 = arith.constant 0 : index
    %24 = vector.load %arg14[%c2, %c0_24] : memref<196x128xbf16, #tpu.memory_space<vmem>>, vector<192x8xbf16>
    %c0_25 = arith.constant 0 : index
    %c16 = arith.constant 16 : index
    %25 = vector.load %arg15[%c0_25, %c16] : memref<192x40xbf16, #tpu.memory_space<vmem>>, vector<192x8xbf16>
    tpu.vector_store %arg15[%c0_25, %c16], %24 {strides = array<i32>} : memref<192x40xbf16, #tpu.memory_space<vmem>>, vector<192x8xbf16>,
    %c3 = arith.constant 3 : index
    %c0_26 = arith.constant 0 : index
    %26 = vector.load %arg14[%c3, %c0_26] : memref<196x128xbf16, #tpu.memory_space<vmem>>, vector<192x8xbf16>
    %c0_27 = arith.constant 0 : index
    %c24 = arith.constant 24 : index
    %27 = vector.load %arg15[%c0_27, %c24] : memref<192x40xbf16, #tpu.memory_space<vmem>>, vector<192x8xbf16>
    tpu.vector_store %arg15[%c0_27, %c24], %26 {strides = array<i32>} : memref<192x40xbf16, #tpu.memory_space<vmem>>, vector<192x8xbf16>,
    %c4 = arith.constant 4 : index
    %c0_28 = arith.constant 0 : index
    %28 = vector.load %arg14[%c4, %c0_28] : memref<196x128xbf16, #tpu.memory_space<vmem>>, vector<192x8xbf16>
    %c0_29 = arith.constant 0 : index
    %c32 = arith.constant 32 : index
    %29 = vector.load %arg15[%c0_29, %c32] : memref<192x40xbf16, #tpu.memory_space<vmem>>, vector<192x8xbf16>
    tpu.vector_store %arg15[%c0_29, %c32], %28 {strides = array<i32>} : memref<192x40xbf16, #tpu.memory_space<vmem>>, vector<192x8xbf16>,
    %c0_30 = arith.constant 0 : index
    %c0_31 = arith.constant 0 : index
    %30 = vector.load %arg15[%c0_30, %c0_31] : memref<192x40xbf16, #tpu.memory_space<vmem>>, vector<136x40xbf16>
    %c0_32 = arith.constant 0 : index
    %c0_33 = arith.constant 0 : index
    %c0_34 = arith.constant 0 : index
    %31 = vector.load %arg4[%c0_32, %c0_33, %c0_34] : memref<5x40x128xbf16, #tpu.memory_space<vmem>>, vector<1x40x128xbf16>
    %32 = vector.shape_cast %31 : vector<1x40x128xbf16> to vector<40x128xbf16>
    %cst_35 = arith.constant dense<0.000000e+00> : vector<136x128xf32>
    %33 = tpu.matmul %30, %32, %cst_35 {dimension_numbers = #tpu.dot_dimension_numbers<[1], [0], [0], [1], [0, 0, 1, 1], [], []>} : vector<136x40xbf16>, vector<40x128xbf16>, vector<136x128xf32> -> vector<136x128xf32>
    %c14 = arith.constant 14 : index
    %c0_36 = arith.constant 0 : index
    %34 = vector.load %arg15[%c14, %c0_36] : memref<192x40xbf16, #tpu.memory_space<vmem>>, vector<136x40xbf16>
    %c1_37 = arith.constant 1 : index
    %c0_38 = arith.constant 0 : index
    %c0_39 = arith.constant 0 : index
    %35 = vector.load %arg4[%c1_37, %c0_38, %c0_39] : memref<5x40x128xbf16, #tpu.memory_space<vmem>>, vector<1x40x128xbf16>
    %36 = vector.shape_cast %35 : vector<1x40x128xbf16> to vector<40x128xbf16>
    %cst_40 = arith.constant dense<0.000000e+00> : vector<136x128xf32>
    %37 = tpu.matmul %34, %36, %cst_40 {dimension_numbers = #tpu.dot_dimension_numbers<[1], [0], [0], [1], [0, 0, 1, 1], [], []>} : vector<136x40xbf16>, vector<40x128xbf16>, vector<136x128xf32> -> vector<136x128xf32>
    %38 = arith.addf %33, %37 : vector<136x128xf32>
    %c28 = arith.constant 28 : index
    %c0_41 = arith.constant 0 : index
    %39 = vector.load %arg15[%c28, %c0_41] : memref<192x40xbf16, #tpu.memory_space<vmem>>, vector<136x40xbf16>
    %c2_42 = arith.constant 2 : index
    %c0_43 = arith.constant 0 : index
    %c0_44 = arith.constant 0 : index
    %40 = vector.load %arg4[%c2_42, %c0_43, %c0_44] : memref<5x40x128xbf16, #tpu.memory_space<vmem>>, vector<1x40x128xbf16>
    %41 = vector.shape_cast %40 : vector<1x40x128xbf16> to vector<40x128xbf16>
    %cst_45 = arith.constant dense<0.000000e+00> : vector<136x128xf32>
    %42 = tpu.matmul %39, %41, %cst_45 {dimension_numbers = #tpu.dot_dimension_numbers<[1], [0], [0], [1], [0, 0, 1, 1], [], []>} : vector<136x40xbf16>, vector<40x128xbf16>, vector<136x128xf32> -> vector<136x128xf32>
    %43 = arith.addf %38, %42 : vector<136x128xf32>
    %c42 = arith.constant 42 : index
    %c0_46 = arith.constant 0 : index
    %44 = vector.load %arg15[%c42, %c0_46] : memref<192x40xbf16, #tpu.memory_space<vmem>>, vector<136x40xbf16>
    %c3_47 = arith.constant 3 : index
    %c0_48 = arith.constant 0 : index
    %c0_49 = arith.constant 0 : index
    %45 = vector.load %arg4[%c3_47, %c0_48, %c0_49] : memref<5x40x128xbf16, #tpu.memory_space<vmem>>, vector<1x40x128xbf16>
    %46 = vector.shape_cast %45 : vector<1x40x128xbf16> to vector<40x128xbf16>
    %cst_50 = arith.constant dense<0.000000e+00> : vector<136x128xf32>
    %47 = tpu.matmul %44, %46, %cst_50 {dimension_numbers = #tpu.dot_dimension_numbers<[1], [0], [0], [1], [0, 0, 1, 1], [], []>} : vector<136x40xbf16>, vector<40x128xbf16>, vector<136x128xf32> -> vector<136x128xf32>
    %48 = arith.addf %43, %47 : vector<136x128xf32>
    %c56 = arith.constant 56 : index
    %c0_51 = arith.constant 0 : index
    %49 = vector.load %arg15[%c56, %c0_51] : memref<192x40xbf16, #tpu.memory_space<vmem>>, vector<136x40xbf16>
    %c4_52 = arith.constant 4 : index
    %c0_53 = arith.constant 0 : index
    %c0_54 = arith.constant 0 : index
    %50 = vector.load %arg4[%c4_52, %c0_53, %c0_54] : memref<5x40x128xbf16, #tpu.memory_space<vmem>>, vector<1x40x128xbf16>
    %51 = vector.shape_cast %50 : vector<1x40x128xbf16> to vector<40x128xbf16>
    %cst_55 = arith.constant dense<0.000000e+00> : vector<136x128xf32>
    %52 = tpu.matmul %49, %51, %cst_55 {dimension_numbers = #tpu.dot_dimension_numbers<[1], [0], [0], [1], [0, 0, 1, 1], [], []>} : vector<136x40xbf16>, vector<40x128xbf16>, vector<136x128xf32> -> vector<136x128xf32>
    %53 = arith.addf %48, %52 : vector<136x128xf32>
    %c0_56 = arith.constant 0 : index
    %c0_57 = arith.constant 0 : index
    %54 = vector.load %arg16[%c0_56, %c0_57] : memref<136x128xf32, #tpu.memory_space<vmem>>, vector<136x128xf32>
    tpu.vector_store %arg16[%c0_56, %c0_57], %53 {strides = array<i32>} : memref<136x128xf32, #tpu.memory_space<vmem>>, vector<136x128xf32>,
    %c0_58 = arith.constant 0 : index
    %c0_59 = arith.constant 0 : index
    %55 = vector.load %arg16[%c0_58, %c0_59] : memref<136x128xf32, #tpu.memory_space<vmem>>, vector<1x128xf32>
    %c1_60 = arith.constant 1 : index
    %c0_61 = arith.constant 0 : index
    %56 = vector.load %arg16[%c1_60, %c0_61] : memref<136x128xf32, #tpu.memory_space<vmem>>, vector<1x128xf32>
    %57 = arith.maximumf %55, %56 : vector<1x128xf32>
    %c14_62 = arith.constant 14 : index
    %c0_63 = arith.constant 0 : index
    %58 = vector.load %arg16[%c14_62, %c0_63] : memref<136x128xf32, #tpu.memory_space<vmem>>, vector<1x128xf32>
    %c15 = arith.constant 15 : index
    %c0_64 = arith.constant 0 : index
    %59 = vector.load %arg16[%c15, %c0_64] : memref<136x128xf32, #tpu.memory_space<vmem>>, vector<1x128xf32>
    %60 = arith.maximumf %58, %59 : vector<1x128xf32>
    %61 = arith.maximumf %57, %60 : vector<1x128xf32>
    %c0_65 = arith.constant 0 : index
    %c0_66 = arith.constant 0 : index
    %62 = vector.load %arg5[%c0_65, %c0_66] : memref<1x128xf32, #tpu.memory_space<vmem>>, vector<1x128xf32>
    %63 = arith.addf %61, %62 : vector<1x128xf32>
    %cst_67 = arith.constant 0.000000e+00 : f32
    %64 = vector.broadcast %cst_67 : f32 to vector<1x128xf32>
    %65 = arith.maximumf %63, %64 : vector<1x128xf32>
    %66 = vector.extract_strided_slice %65 {offsets = [0, 0], sizes = [1, 16], strides = [1, 1]} : vector<1x128xf32> to vector<1x16xf32>
    %67 = arith.truncf %66 : vector<1x16xf32> to vector<1x16xbf16>
    %c0_68 = arith.constant 0 : index
    %c0_69 = arith.constant 0 : index
    %68 = vector.load %arg17[%c0_68, %c0_69] : memref<8x512xbf16, #tpu.memory_space<vmem>>, vector<1x16xbf16>
    tpu.vector_store %arg17[%c0_68, %c0_69], %67 {strides = array<i32>} : memref<8x512xbf16, #tpu.memory_space<vmem>>, vector<1x16xbf16>,
    %c2_70 = arith.constant 2 : index
    %c0_71 = arith.constant 0 : index
    %69 = vector.load %arg16[%c2_70, %c0_71] : memref<136x128xf32, #tpu.memory_space<vmem>>, vector<1x128xf32>
    %c3_72 = arith.constant 3 : index
    %c0_73 = arith.constant 0 : index
    %70 = vector.load %arg16[%c3_72, %c0_73] : memref<136x128xf32, #tpu.memory_space<vmem>>, vector<1x128xf32>
    %71 = arith.maximumf %69, %70 : vector<1x128xf32>
    %c16_74 = arith.constant 16 : index
    %c0_75 = arith.constant 0 : index
    %72 = vector.load %arg16[%c16_74, %c0_75] : memref<136x128xf32, #tpu.memory_space<vmem>>, vector<1x128xf32>
    %c17 = arith.constant 17 : index
    %c0_76 = arith.constant 0 : index
    %73 = vector.load %arg16[%c17, %c0_76] : memref<136x128xf32, #tpu.memory_space<vmem>>, vector<1x128xf32>
    %74 = arith.maximumf %72, %73 : vector<1x128xf32>
    %75 = arith.maximumf %71, %74 : vector<1x128xf32>
    %c0_77 = arith.constant 0 : index
    %c0_78 = arith.constant 0 : index
    %76 = vector.load %arg5[%c0_77, %c0_78] : memref<1x128xf32, #tpu.memory_space<vmem>>, vector<1x128xf32>
    %77 = arith.addf %75, %76 : vector<1x128xf32>
    %cst_79 = arith.constant 0.000000e+00 : f32
    %78 = vector.broadcast %cst_79 : f32 to vector<1x128xf32>
    %79 = arith.maximumf %77, %78 : vector<1x128xf32>
    %80 = vector.extract_strided_slice %79 {offsets = [0, 0], sizes = [1, 16], strides = [1, 1]} : vector<1x128xf32> to vector<1x16xf32>
    %81 = arith.truncf %80 : vector<1x16xf32> to vector<1x16xbf16>
    %c0_80 = arith.constant 0 : index
    %c16_81 = arith.constant 16 : index
    %82 = vector.load %arg17[%c0_80, %c16_81] : memref<8x512xbf16, #tpu.memory_space<vmem>>, vector<1x16xbf16>
    tpu.vector_store %arg17[%c0_80, %c16_81], %81 {strides = array<i32>} : memref<8x512xbf16, #tpu.memory_space<vmem>>, vector<1x16xbf16>,
    %c4_82 = arith.constant 4 : index
    %c0_83 = arith.constant 0 : index
    %83 = vector.load %arg16[%c4_82, %c0_83] : memref<136x128xf32, #tpu.memory_space<vmem>>, vector<1x128xf32>
    %c5 = arith.constant 5 : index
    %c0_84 = arith.constant 0 : index
    %84 = vector.load %arg16[%c5, %c0_84] : memref<136x128xf32, #tpu.memory_space<vmem>>, vector<1x128xf32>
    %85 = arith.maximumf %83, %84 : vector<1x128xf32>
    %c18 = arith.constant 18 : index
    %c0_85 = arith.constant 0 : index
    %86 = vector.load %arg16[%c18, %c0_85] : memref<136x128xf32, #tpu.memory_space<vmem>>, vector<1x128xf32>
    %c19 = arith.constant 19 : index
    %c0_86 = arith.constant 0 : index
    %87 = vector.load %arg16[%c19, %c0_86] : memref<136x128xf32, #tpu.memory_space<vmem>>, vector<1x128xf32>
    %88 = arith.maximumf %86, %87 : vector<1x128xf32>
    %89 = arith.maximumf %85, %88 : vector<1x128xf32>
    %c0_87 = arith.constant 0 : index
    %c0_88 = arith.constant 0 : index
    %90 = vector.load %arg5[%c0_87, %c0_88] : memref<1x128xf32, #tpu.memory_space<vmem>>, vector<1x128xf32>
    %91 = arith.addf %89, %90 : vector<1x128xf32>
    %cst_89 = arith.constant 0.000000e+00 : f32
    %92 = vector.broadcast %cst_89 : f32 to vector<1x128xf32>
    %93 = arith.maximumf %91, %92 : vector<1x128xf32>
    %94 = vector.extract_strided_slice %93 {offsets = [0, 0], sizes = [1, 16], strides = [1, 1]} : vector<1x128xf32> to vector<1x16xf32>
    %95 = arith.truncf %94 : vector<1x16xf32> to vector<1x16xbf16>
    %c0_90 = arith.constant 0 : index
    %c32_91 = arith.constant 32 : index
    %96 = vector.load %arg17[%c0_90, %c32_91] : memref<8x512xbf16, #tpu.memory_space<vmem>>, vector<1x16xbf16>
    tpu.vector_store %arg17[%c0_90, %c32_91], %95 {strides = array<i32>} : memref<8x512xbf16, #tpu.memory_space<vmem>>, vector<1x16xbf16>,
    %c6 = arith.constant 6 : index
    %c0_92 = arith.constant 0 : index
    %97 = vector.load %arg16[%c6, %c0_92] : memref<136x128xf32, #tpu.memory_space<vmem>>, vector<1x128xf32>
    %c7 = arith.constant 7 : index
    %c0_93 = arith.constant 0 : index
    %98 = vector.load %arg16[%c7, %c0_93] : memref<136x128xf32, #tpu.memory_space<vmem>>, vector<1x128xf32>
    %99 = arith.maximumf %97, %98 : vector<1x128xf32>
    %c20 = arith.constant 20 : index
    %c0_94 = arith.constant 0 : index
    %100 = vector.load %arg16[%c20, %c0_94] : memref<136x128xf32, #tpu.memory_space<vmem>>, vector<1x128xf32>
    %c21 = arith.constant 21 : index
    %c0_95 = arith.constant 0 : index
    %101 = vector.load %arg16[%c21, %c0_95] : memref<136x128xf32, #tpu.memory_space<vmem>>, vector<1x128xf32>
    %102 = arith.maximumf %100, %101 : vector<1x128xf32>
    %103 = arith.maximumf %99, %102 : vector<1x128xf32>
    %c0_96 = arith.constant 0 : index
    %c0_97 = arith.constant 0 : index
    %104 = vector.load %arg5[%c0_96, %c0_97] : memref<1x128xf32, #tpu.memory_space<vmem>>, vector<1x128xf32>
    %105 = arith.addf %103, %104 : vector<1x128xf32>
    %cst_98 = arith.constant 0.000000e+00 : f32
    %106 = vector.broadcast %cst_98 : f32 to vector<1x128xf32>
    %107 = arith.maximumf %105, %106 : vector<1x128xf32>
    %108 = vector.extract_strided_slice %107 {offsets = [0, 0], sizes = [1, 16], strides = [1, 1]} : vector<1x128xf32> to vector<1x16xf32>
    %109 = arith.truncf %108 : vector<1x16xf32> to vector<1x16xbf16>
    %c0_99 = arith.constant 0 : index
    %c48 = arith.constant 48 : index
    %110 = vector.load %arg17[%c0_99, %c48] : memref<8x512xbf16, #tpu.memory_space<vmem>>, vector<1x16xbf16>
    tpu.vector_store %arg17[%c0_99, %c48], %109 {strides = array<i32>} : memref<8x512xbf16, #tpu.memory_space<vmem>>, vector<1x16xbf16>,
    %c8_100 = arith.constant 8 : index
    %c0_101 = arith.constant 0 : index
    %111 = vector.load %arg16[%c8_100, %c0_101] : memref<136x128xf32, #tpu.memory_space<vmem>>, vector<1x128xf32>
    %c9 = arith.constant 9 : index
    %c0_102 = arith.constant 0 : index
    %112 = vector.load %arg16[%c9, %c0_102] : memref<136x128xf32, #tpu.memory_space<vmem>>, vector<1x128xf32>
    %113 = arith.maximumf %111, %112 : vector<1x128xf32>
    %c22 = arith.constant 22 : index
    %c0_103 = arith.constant 0 : index
    %114 = vector.load %arg16[%c22, %c0_103] : memref<136x128xf32, #tpu.memory_space<vmem>>, vector<1x128xf32>
    %c23 = arith.constant 23 : index
    %c0_104 = arith.constant 0 : index
    %115 = vector.load %arg16[%c23, %c0_104] : memref<136x128xf32, #tpu.memory_space<vmem>>, vector<1x128xf32>
    %116 = arith.maximumf %114, %115 : vector<1x128xf32>
    %117 = arith.maximumf %113, %116 : vector<1x128xf32>
    %c0_105 = arith.constant 0 : index
    %c0_106 = arith.constant 0 : index
    %118 = vector.load %arg5[%c0_105, %c0_106] : memref<1x128xf32, #tpu.memory_space<vmem>>, vector<1x128xf32>
    %119 = arith.addf %117, %118 : vector<1x128xf32>
    %cst_107 = arith.constant 0.000000e+00 : f32
    %120 = vector.broadcast %cst_107 : f32 to vector<1x128xf32>
    %121 = arith.maximumf %119, %120 : vector<1x128xf32>
    %122 = vector.extract_strided_slice %121 {offsets = [0, 0], sizes = [1, 16], strides = [1, 1]} : vector<1x128xf32> to vector<1x16xf32>
    %123 = arith.truncf %122 : vector<1x16xf32> to vector<1x16xbf16>
    %c0_108 = arith.constant 0 : index
    %c64 = arith.constant 64 : index
    %124 = vector.load %arg17[%c0_108, %c64] : memref<8x512xbf16, #tpu.memory_space<vmem>>, vector<1x16xbf16>
    tpu.vector_store %arg17[%c0_108, %c64], %123 {strides = array<i32>} : memref<8x512xbf16, #tpu.memory_space<vmem>>, vector<1x16xbf16>,
    %c28_109 = arith.constant 28 : index
    %c0_110 = arith.constant 0 : index
    %125 = vector.load %arg16[%c28_109, %c0_110] : memref<136x128xf32, #tpu.memory_space<vmem>>, vector<1x128xf32>
    %c29 = arith.constant 29 : index
    %c0_111 = arith.constant 0 : index
    %126 = vector.load %arg16[%c29, %c0_111] : memref<136x128xf32, #tpu.memory_space<vmem>>, vector<1x128xf32>
    %127 = arith.maximumf %125, %126 : vector<1x128xf32>
    %c42_112 = arith.constant 42 : index
    %c0_113 = arith.constant 0 : index
    %128 = vector.load %arg16[%c42_112, %c0_113] : memref<136x128xf32, #tpu.memory_space<vmem>>, vector<1x128xf32>
    %c43 = arith.constant 43 : index
    %c0_114 = arith.constant 0 : index
    %129 = vector.load %arg16[%c43, %c0_114] : memref<136x128xf32, #tpu.memory_space<vmem>>, vector<1x128xf32>
    %130 = arith.maximumf %128, %129 : vector<1x128xf32>
    %131 = arith.maximumf %127, %130 : vector<1x128xf32>
    %c0_115 = arith.constant 0 : index
    %c0_116 = arith.constant 0 : index
    %132 = vector.load %arg5[%c0_115, %c0_116] : memref<1x128xf32, #tpu.memory_space<vmem>>, vector<1x128xf32>
    %133 = arith.addf %131, %132 : vector<1x128xf32>
    %cst_117 = arith.constant 0.000000e+00 : f32
    %134 = vector.broadcast %cst_117 : f32 to vector<1x128xf32>
    %135 = arith.maximumf %133, %134 : vector<1x128xf32>
    %136 = vector.extract_strided_slice %135 {offsets = [0, 0], sizes = [1, 16], strides = [1, 1]} : vector<1x128xf32> to vector<1x16xf32>
    %137 = arith.truncf %136 : vector<1x16xf32> to vector<1x16xbf16>
    %c0_118 = arith.constant 0 : index
    %c80 = arith.constant 80 : index
    %138 = vector.load %arg17[%c0_118, %c80] : memref<8x512xbf16, #tpu.memory_space<vmem>>, vector<1x16xbf16>
    tpu.vector_store %arg17[%c0_118, %c80], %137 {strides = array<i32>} : memref<8x512xbf16, #tpu.memory_space<vmem>>, vector<1x16xbf16>,
    %c30 = arith.constant 30 : index
    %c0_119 = arith.constant 0 : index
    %139 = vector.load %arg16[%c30, %c0_119] : memref<136x128xf32, #tpu.memory_space<vmem>>, vector<1x128xf32>
    %c31 = arith.constant 31 : index
    %c0_120 = arith.constant 0 : index
    %140 = vector.load %arg16[%c31, %c0_120] : memref<136x128xf32, #tpu.memory_space<vmem>>, vector<1x128xf32>
    %141 = arith.maximumf %139, %140 : vector<1x128xf32>
    %c44 = arith.constant 44 : index
    %c0_121 = arith.constant 0 : index
    %142 = vector.load %arg16[%c44, %c0_121] : memref<136x128xf32, #tpu.memory_space<vmem>>, vector<1x128xf32>
    %c45 = arith.constant 45 : index
    %c0_122 = arith.constant 0 : index
    %143 = vector.load %arg16[%c45, %c0_122] : memref<136x128xf32, #tpu.memory_space<vmem>>, vector<1x128xf32>
    %144 = arith.maximumf %142, %143 : vector<1x128xf32>
    %145 = arith.maximumf %141, %144 : vector<1x128xf32>
    %c0_123 = arith.constant 0 : index
    %c0_124 = arith.constant 0 : index
    %146 = vector.load %arg5[%c0_123, %c0_124] : memref<1x128xf32, #tpu.memory_space<vmem>>, vector<1x128xf32>
    %147 = arith.addf %145, %146 : vector<1x128xf32>
    %cst_125 = arith.constant 0.000000e+00 : f32
    %148 = vector.broadcast %cst_125 : f32 to vector<1x128xf32>
    %149 = arith.maximumf %147, %148 : vector<1x128xf32>
    %150 = vector.extract_strided_slice %149 {offsets = [0, 0], sizes = [1, 16], strides = [1, 1]} : vector<1x128xf32> to vector<1x16xf32>
    %151 = arith.truncf %150 : vector<1x16xf32> to vector<1x16xbf16>
    %c0_126 = arith.constant 0 : index
    %c96 = arith.constant 96 : index
    %152 = vector.load %arg17[%c0_126, %c96] : memref<8x512xbf16, #tpu.memory_space<vmem>>, vector<1x16xbf16>
    tpu.vector_store %arg17[%c0_126, %c96], %151 {strides = array<i32>} : memref<8x512xbf16, #tpu.memory_space<vmem>>, vector<1x16xbf16>,
    %c32_127 = arith.constant 32 : index
    %c0_128 = arith.constant 0 : index
    %153 = vector.load %arg16[%c32_127, %c0_128] : memref<136x128xf32, #tpu.memory_space<vmem>>, vector<1x128xf32>
    %c33 = arith.constant 33 : index
    %c0_129 = arith.constant 0 : index
    %154 = vector.load %arg16[%c33, %c0_129] : memref<136x128xf32, #tpu.memory_space<vmem>>, vector<1x128xf32>
    %155 = arith.maximumf %153, %154 : vector<1x128xf32>
    %c46 = arith.constant 46 : index
    %c0_130 = arith.constant 0 : index
    %156 = vector.load %arg16[%c46, %c0_130] : memref<136x128xf32, #tpu.memory_space<vmem>>, vector<1x128xf32>
    %c47 = arith.constant 47 : index
    %c0_131 = arith.constant 0 : index
    %157 = vector.load %arg16[%c47, %c0_131] : memref<136x128xf32, #tpu.memory_space<vmem>>, vector<1x128xf32>
    %158 = arith.maximumf %156, %157 : vector<1x128xf32>
    %159 = arith.maximumf %155, %158 : vector<1x128xf32>
    %c0_132 = arith.constant 0 : index
    %c0_133 = arith.constant 0 : index
    %160 = vector.load %arg5[%c0_132, %c0_133] : memref<1x128xf32, #tpu.memory_space<vmem>>, vector<1x128xf32>
    %161 = arith.addf %159, %160 : vector<1x128xf32>
    %cst_134 = arith.constant 0.000000e+00 : f32
    %162 = vector.broadcast %cst_134 : f32 to vector<1x128xf32>
    %163 = arith.maximumf %161, %162 : vector<1x128xf32>
    %164 = vector.extract_strided_slice %163 {offsets = [0, 0], sizes = [1, 16], strides = [1, 1]} : vector<1x128xf32> to vector<1x16xf32>
    %165 = arith.truncf %164 : vector<1x16xf32> to vector<1x16xbf16>
    %c0_135 = arith.constant 0 : index
    %c112 = arith.constant 112 : index
    %166 = vector.load %arg17[%c0_135, %c112] : memref<8x512xbf16, #tpu.memory_space<vmem>>, vector<1x16xbf16>
    tpu.vector_store %arg17[%c0_135, %c112], %165 {strides = array<i32>} : memref<8x512xbf16, #tpu.memory_space<vmem>>, vector<1x16xbf16>,
    %c34 = arith.constant 34 : index
    %c0_136 = arith.constant 0 : index
    %167 = vector.load %arg16[%c34, %c0_136] : memref<136x128xf32, #tpu.memory_space<vmem>>, vector<1x128xf32>
    %c35 = arith.constant 35 : index
    %c0_137 = arith.constant 0 : index
    %168 = vector.load %arg16[%c35, %c0_137] : memref<136x128xf32, #tpu.memory_space<vmem>>, vector<1x128xf32>
    %169 = arith.maximumf %167, %168 : vector<1x128xf32>
    %c48_138 = arith.constant 48 : index
    %c0_139 = arith.constant 0 : index
    %170 = vector.load %arg16[%c48_138, %c0_139] : memref<136x128xf32, #tpu.memory_space<vmem>>, vector<1x128xf32>
    %c49 = arith.constant 49 : index
    %c0_140 = arith.constant 0 : index
    %171 = vector.load %arg16[%c49, %c0_140] : memref<136x128xf32, #tpu.memory_space<vmem>>, vector<1x128xf32>
    %172 = arith.maximumf %170, %171 : vector<1x128xf32>
    %173 = arith.maximumf %169, %172 : vector<1x128xf32>
    %c0_141 = arith.constant 0 : index
    %c0_142 = arith.constant 0 : index
    %174 = vector.load %arg5[%c0_141, %c0_142] : memref<1x128xf32, #tpu.memory_space<vmem>>, vector<1x128xf32>
    %175 = arith.addf %173, %174 : vector<1x128xf32>
    %cst_143 = arith.constant 0.000000e+00 : f32
    %176 = vector.broadcast %cst_143 : f32 to vector<1x128xf32>
    %177 = arith.maximumf %175, %176 : vector<1x128xf32>
    %178 = vector.extract_strided_slice %177 {offsets = [0, 0], sizes = [1, 16], strides = [1, 1]} : vector<1x128xf32> to vector<1x16xf32>
    %179 = arith.truncf %178 : vector<1x16xf32> to vector<1x16xbf16>
    %c0_144 = arith.constant 0 : index
    %c128 = arith.constant 128 : index
    %180 = vector.load %arg17[%c0_144, %c128] : memref<8x512xbf16, #tpu.memory_space<vmem>>, vector<1x16xbf16>
    tpu.vector_store %arg17[%c0_144, %c128], %179 {strides = array<i32>} : memref<8x512xbf16, #tpu.memory_space<vmem>>, vector<1x16xbf16>,
    %c36 = arith.constant 36 : index
    %c0_145 = arith.constant 0 : index
    %181 = vector.load %arg16[%c36, %c0_145] : memref<136x128xf32, #tpu.memory_space<vmem>>, vector<1x128xf32>
    %c37 = arith.constant 37 : index
    %c0_146 = arith.constant 0 : index
    %182 = vector.load %arg16[%c37, %c0_146] : memref<136x128xf32, #tpu.memory_space<vmem>>, vector<1x128xf32>
    %183 = arith.maximumf %181, %182 : vector<1x128xf32>
    %c50 = arith.constant 50 : index
    %c0_147 = arith.constant 0 : index
    %184 = vector.load %arg16[%c50, %c0_147] : memref<136x128xf32, #tpu.memory_space<vmem>>, vector<1x128xf32>
    %c51 = arith.constant 51 : index
    %c0_148 = arith.constant 0 : index
    %185 = vector.load %arg16[%c51, %c0_148] : memref<136x128xf32, #tpu.memory_space<vmem>>, vector<1x128xf32>
    %186 = arith.maximumf %184, %185 : vector<1x128xf32>
    %187 = arith.maximumf %183, %186 : vector<1x128xf32>
    %c0_149 = arith.constant 0 : index
    %c0_150 = arith.constant 0 : index
    %188 = vector.load %arg5[%c0_149, %c0_150] : memref<1x128xf32, #tpu.memory_space<vmem>>, vector<1x128xf32>
    %189 = arith.addf %187, %188 : vector<1x128xf32>
    %cst_151 = arith.constant 0.000000e+00 : f32
    %190 = vector.broadcast %cst_151 : f32 to vector<1x128xf32>
    %191 = arith.maximumf %189, %190 : vector<1x128xf32>
    %192 = vector.extract_strided_slice %191 {offsets = [0, 0], sizes = [1, 16], strides = [1, 1]} : vector<1x128xf32> to vector<1x16xf32>
    %193 = arith.truncf %192 : vector<1x16xf32> to vector<1x16xbf16>
    %c0_152 = arith.constant 0 : index
    %c144 = arith.constant 144 : index
    %194 = vector.load %arg17[%c0_152, %c144] : memref<8x512xbf16, #tpu.memory_space<vmem>>, vector<1x16xbf16>
    tpu.vector_store %arg17[%c0_152, %c144], %193 {strides = array<i32>} : memref<8x512xbf16, #tpu.memory_space<vmem>>, vector<1x16xbf16>,
    %c56_153 = arith.constant 56 : index
    %c0_154 = arith.constant 0 : index
    %195 = vector.load %arg16[%c56_153, %c0_154] : memref<136x128xf32, #tpu.memory_space<vmem>>, vector<1x128xf32>
    %c57 = arith.constant 57 : index
    %c0_155 = arith.constant 0 : index
    %196 = vector.load %arg16[%c57, %c0_155] : memref<136x128xf32, #tpu.memory_space<vmem>>, vector<1x128xf32>
    %197 = arith.maximumf %195, %196 : vector<1x128xf32>
    %c70 = arith.constant 70 : index
    %c0_156 = arith.constant 0 : index
    %198 = vector.load %arg16[%c70, %c0_156] : memref<136x128xf32, #tpu.memory_space<vmem>>, vector<1x128xf32>
    %c71 = arith.constant 71 : index
    %c0_157 = arith.constant 0 : index
    %199 = vector.load %arg16[%c71, %c0_157] : memref<136x128xf32, #tpu.memory_space<vmem>>, vector<1x128xf32>
    %200 = arith.maximumf %198, %199 : vector<1x128xf32>
    %201 = arith.maximumf %197, %200 : vector<1x128xf32>
    %c0_158 = arith.constant 0 : index
    %c0_159 = arith.constant 0 : index
    %202 = vector.load %arg5[%c0_158, %c0_159] : memref<1x128xf32, #tpu.memory_space<vmem>>, vector<1x128xf32>
    %203 = arith.addf %201, %202 : vector<1x128xf32>
    %cst_160 = arith.constant 0.000000e+00 : f32
    %204 = vector.broadcast %cst_160 : f32 to vector<1x128xf32>
    %205 = arith.maximumf %203, %204 : vector<1x128xf32>
    %206 = vector.extract_strided_slice %205 {offsets = [0, 0], sizes = [1, 16], strides = [1, 1]} : vector<1x128xf32> to vector<1x16xf32>
    %207 = arith.truncf %206 : vector<1x16xf32> to vector<1x16xbf16>
    %c0_161 = arith.constant 0 : index
    %c160 = arith.constant 160 : index
    %208 = vector.load %arg17[%c0_161, %c160] : memref<8x512xbf16, #tpu.memory_space<vmem>>, vector<1x16xbf16>
    tpu.vector_store %arg17[%c0_161, %c160], %207 {strides = array<i32>} : memref<8x512xbf16, #tpu.memory_space<vmem>>, vector<1x16xbf16>,
    %c58 = arith.constant 58 : index
    %c0_162 = arith.constant 0 : index
    %209 = vector.load %arg16[%c58, %c0_162] : memref<136x128xf32, #tpu.memory_space<vmem>>, vector<1x128xf32>
    %c59 = arith.constant 59 : index
    %c0_163 = arith.constant 0 : index
    %210 = vector.load %arg16[%c59, %c0_163] : memref<136x128xf32, #tpu.memory_space<vmem>>, vector<1x128xf32>
    %211 = arith.maximumf %209, %210 : vector<1x128xf32>
    %c72 = arith.constant 72 : index
    %c0_164 = arith.constant 0 : index
    %212 = vector.load %arg16[%c72, %c0_164] : memref<136x128xf32, #tpu.memory_space<vmem>>, vector<1x128xf32>
    %c73 = arith.constant 73 : index
    %c0_165 = arith.constant 0 : index
    %213 = vector.load %arg16[%c73, %c0_165] : memref<136x128xf32, #tpu.memory_space<vmem>>, vector<1x128xf32>
    %214 = arith.maximumf %212, %213 : vector<1x128xf32>
    %215 = arith.maximumf %211, %214 : vector<1x128xf32>
    %c0_166 = arith.constant 0 : index
    %c0_167 = arith.constant 0 : index
    %216 = vector.load %arg5[%c0_166, %c0_167] : memref<1x128xf32, #tpu.memory_space<vmem>>, vector<1x128xf32>
    %217 = arith.addf %215, %216 : vector<1x128xf32>
    %cst_168 = arith.constant 0.000000e+00 : f32
    %218 = vector.broadcast %cst_168 : f32 to vector<1x128xf32>
    %219 = arith.maximumf %217, %218 : vector<1x128xf32>
    %220 = vector.extract_strided_slice %219 {offsets = [0, 0], sizes = [1, 16], strides = [1, 1]} : vector<1x128xf32> to vector<1x16xf32>
    %221 = arith.truncf %220 : vector<1x16xf32> to vector<1x16xbf16>
    %c0_169 = arith.constant 0 : index
    %c176 = arith.constant 176 : index
    %222 = vector.load %arg17[%c0_169, %c176] : memref<8x512xbf16, #tpu.memory_space<vmem>>, vector<1x16xbf16>
    tpu.vector_store %arg17[%c0_169, %c176], %221 {strides = array<i32>} : memref<8x512xbf16, #tpu.memory_space<vmem>>, vector<1x16xbf16>,
    %c60 = arith.constant 60 : index
    %c0_170 = arith.constant 0 : index
    %223 = vector.load %arg16[%c60, %c0_170] : memref<136x128xf32, #tpu.memory_space<vmem>>, vector<1x128xf32>
    %c61 = arith.constant 61 : index
    %c0_171 = arith.constant 0 : index
    %224 = vector.load %arg16[%c61, %c0_171] : memref<136x128xf32, #tpu.memory_space<vmem>>, vector<1x128xf32>
    %225 = arith.maximumf %223, %224 : vector<1x128xf32>
    %c74 = arith.constant 74 : index
    %c0_172 = arith.constant 0 : index
    %226 = vector.load %arg16[%c74, %c0_172] : memref<136x128xf32, #tpu.memory_space<vmem>>, vector<1x128xf32>
    %c75 = arith.constant 75 : index
    %c0_173 = arith.constant 0 : index
    %227 = vector.load %arg16[%c75, %c0_173] : memref<136x128xf32, #tpu.memory_space<vmem>>, vector<1x128xf32>
    %228 = arith.maximumf %226, %227 : vector<1x128xf32>
    %229 = arith.maximumf %225, %228 : vector<1x128xf32>
    %c0_174 = arith.constant 0 : index
    %c0_175 = arith.constant 0 : index
    %230 = vector.load %arg5[%c0_174, %c0_175] : memref<1x128xf32, #tpu.memory_space<vmem>>, vector<1x128xf32>
    %231 = arith.addf %229, %230 : vector<1x128xf32>
    %cst_176 = arith.constant 0.000000e+00 : f32
    %232 = vector.broadcast %cst_176 : f32 to vector<1x128xf32>
    %233 = arith.maximumf %231, %232 : vector<1x128xf32>
    %234 = vector.extract_strided_slice %233 {offsets = [0, 0], sizes = [1, 16], strides = [1, 1]} : vector<1x128xf32> to vector<1x16xf32>
    %235 = arith.truncf %234 : vector<1x16xf32> to vector<1x16xbf16>
    %c0_177 = arith.constant 0 : index
    %c192 = arith.constant 192 : index
    %236 = vector.load %arg17[%c0_177, %c192] : memref<8x512xbf16, #tpu.memory_space<vmem>>, vector<1x16xbf16>
    tpu.vector_store %arg17[%c0_177, %c192], %235 {strides = array<i32>} : memref<8x512xbf16, #tpu.memory_space<vmem>>, vector<1x16xbf16>,
    %c62 = arith.constant 62 : index
    %c0_178 = arith.constant 0 : index
    %237 = vector.load %arg16[%c62, %c0_178] : memref<136x128xf32, #tpu.memory_space<vmem>>, vector<1x128xf32>
    %c63 = arith.constant 63 : index
    %c0_179 = arith.constant 0 : index
    %238 = vector.load %arg16[%c63, %c0_179] : memref<136x128xf32, #tpu.memory_space<vmem>>, vector<1x128xf32>
    %239 = arith.maximumf %237, %238 : vector<1x128xf32>
    %c76 = arith.constant 76 : index
    %c0_180 = arith.constant 0 : index
    %240 = vector.load %arg16[%c76, %c0_180] : memref<136x128xf32, #tpu.memory_space<vmem>>, vector<1x128xf32>
    %c77 = arith.constant 77 : index
    %c0_181 = arith.constant 0 : index
    %241 = vector.load %arg16[%c77, %c0_181] : memref<136x128xf32, #tpu.memory_space<vmem>>, vector<1x128xf32>
    %242 = arith.maximumf %240, %241 : vector<1x128xf32>
    %243 = arith.maximumf %239, %242 : vector<1x128xf32>
    %c0_182 = arith.constant 0 : index
    %c0_183 = arith.constant 0 : index
    %244 = vector.load %arg5[%c0_182, %c0_183] : memref<1x128xf32, #tpu.memory_space<vmem>>, vector<1x128xf32>
    %245 = arith.addf %243, %244 : vector<1x128xf32>
    %cst_184 = arith.constant 0.000000e+00 : f32
    %246 = vector.broadcast %cst_184 : f32 to vector<1x128xf32>
    %247 = arith.maximumf %245, %246 : vector<1x128xf32>
    %248 = vector.extract_strided_slice %247 {offsets = [0, 0], sizes = [1, 16], strides = [1, 1]} : vector<1x128xf32> to vector<1x16xf32>
    %249 = arith.truncf %248 : vector<1x16xf32> to vector<1x16xbf16>
    %c0_185 = arith.constant 0 : index
    %c208 = arith.constant 208 : index
    %250 = vector.load %arg17[%c0_185, %c208] : memref<8x512xbf16, #tpu.memory_space<vmem>>, vector<1x16xbf16>
    tpu.vector_store %arg17[%c0_185, %c208], %249 {strides = array<i32>} : memref<8x512xbf16, #tpu.memory_space<vmem>>, vector<1x16xbf16>,
    %c64_186 = arith.constant 64 : index
    %c0_187 = arith.constant 0 : index
    %251 = vector.load %arg16[%c64_186, %c0_187] : memref<136x128xf32, #tpu.memory_space<vmem>>, vector<1x128xf32>
    %c65 = arith.constant 65 : index
    %c0_188 = arith.constant 0 : index
    %252 = vector.load %arg16[%c65, %c0_188] : memref<136x128xf32, #tpu.memory_space<vmem>>, vector<1x128xf32>
    %253 = arith.maximumf %251, %252 : vector<1x128xf32>
    %c78 = arith.constant 78 : index
    %c0_189 = arith.constant 0 : index
    %254 = vector.load %arg16[%c78, %c0_189] : memref<136x128xf32, #tpu.memory_space<vmem>>, vector<1x128xf32>
    %c79 = arith.constant 79 : index
    %c0_190 = arith.constant 0 : index
    %255 = vector.load %arg16[%c79, %c0_190] : memref<136x128xf32, #tpu.memory_space<vmem>>, vector<1x128xf32>
    %256 = arith.maximumf %254, %255 : vector<1x128xf32>
    %257 = arith.maximumf %253, %256 : vector<1x128xf32>
    %c0_191 = arith.constant 0 : index
    %c0_192 = arith.constant 0 : index
    %258 = vector.load %arg5[%c0_191, %c0_192] : memref<1x128xf32, #tpu.memory_space<vmem>>, vector<1x128xf32>
    %259 = arith.addf %257, %258 : vector<1x128xf32>
    %cst_193 = arith.constant 0.000000e+00 : f32
    %260 = vector.broadcast %cst_193 : f32 to vector<1x128xf32>
    %261 = arith.maximumf %259, %260 : vector<1x128xf32>
    %262 = vector.extract_strided_slice %261 {offsets = [0, 0], sizes = [1, 16], strides = [1, 1]} : vector<1x128xf32> to vector<1x16xf32>
    %263 = arith.truncf %262 : vector<1x16xf32> to vector<1x16xbf16>
    %c0_194 = arith.constant 0 : index
    %c224 = arith.constant 224 : index
    %264 = vector.load %arg17[%c0_194, %c224] : memref<8x512xbf16, #tpu.memory_space<vmem>>, vector<1x16xbf16>
    tpu.vector_store %arg17[%c0_194, %c224], %263 {strides = array<i32>} : memref<8x512xbf16, #tpu.memory_space<vmem>>, vector<1x16xbf16>,
    %c84 = arith.constant 84 : index
    %c0_195 = arith.constant 0 : index
    %265 = vector.load %arg16[%c84, %c0_195] : memref<136x128xf32, #tpu.memory_space<vmem>>, vector<1x128xf32>
    %c85 = arith.constant 85 : index
    %c0_196 = arith.constant 0 : index
    %266 = vector.load %arg16[%c85, %c0_196] : memref<136x128xf32, #tpu.memory_space<vmem>>, vector<1x128xf32>
    %267 = arith.maximumf %265, %266 : vector<1x128xf32>
    %c98 = arith.constant 98 : index
    %c0_197 = arith.constant 0 : index
    %268 = vector.load %arg16[%c98, %c0_197] : memref<136x128xf32, #tpu.memory_space<vmem>>, vector<1x128xf32>
    %c99 = arith.constant 99 : index
    %c0_198 = arith.constant 0 : index
    %269 = vector.load %arg16[%c99, %c0_198] : memref<136x128xf32, #tpu.memory_space<vmem>>, vector<1x128xf32>
    %270 = arith.maximumf %268, %269 : vector<1x128xf32>
    %271 = arith.maximumf %267, %270 : vector<1x128xf32>
    %c0_199 = arith.constant 0 : index
    %c0_200 = arith.constant 0 : index
    %272 = vector.load %arg5[%c0_199, %c0_200] : memref<1x128xf32, #tpu.memory_space<vmem>>, vector<1x128xf32>
    %273 = arith.addf %271, %272 : vector<1x128xf32>
    %cst_201 = arith.constant 0.000000e+00 : f32
    %274 = vector.broadcast %cst_201 : f32 to vector<1x128xf32>
    %275 = arith.maximumf %273, %274 : vector<1x128xf32>
    %276 = vector.extract_strided_slice %275 {offsets = [0, 0], sizes = [1, 16], strides = [1, 1]} : vector<1x128xf32> to vector<1x16xf32>
    %277 = arith.truncf %276 : vector<1x16xf32> to vector<1x16xbf16>
    %c0_202 = arith.constant 0 : index
    %c240 = arith.constant 240 : index
    %278 = vector.load %arg17[%c0_202, %c240] : memref<8x512xbf16, #tpu.memory_space<vmem>>, vector<1x16xbf16>
    tpu.vector_store %arg17[%c0_202, %c240], %277 {strides = array<i32>} : memref<8x512xbf16, #tpu.memory_space<vmem>>, vector<1x16xbf16>,
    %c86 = arith.constant 86 : index
    %c0_203 = arith.constant 0 : index
    %279 = vector.load %arg16[%c86, %c0_203] : memref<136x128xf32, #tpu.memory_space<vmem>>, vector<1x128xf32>
    %c87 = arith.constant 87 : index
    %c0_204 = arith.constant 0 : index
    %280 = vector.load %arg16[%c87, %c0_204] : memref<136x128xf32, #tpu.memory_space<vmem>>, vector<1x128xf32>
    %281 = arith.maximumf %279, %280 : vector<1x128xf32>
    %c100 = arith.constant 100 : index
    %c0_205 = arith.constant 0 : index
    %282 = vector.load %arg16[%c100, %c0_205] : memref<136x128xf32, #tpu.memory_space<vmem>>, vector<1x128xf32>
    %c101 = arith.constant 101 : index
    %c0_206 = arith.constant 0 : index
    %283 = vector.load %arg16[%c101, %c0_206] : memref<136x128xf32, #tpu.memory_space<vmem>>, vector<1x128xf32>
    %284 = arith.maximumf %282, %283 : vector<1x128xf32>
    %285 = arith.maximumf %281, %284 : vector<1x128xf32>
    %c0_207 = arith.constant 0 : index
    %c0_208 = arith.constant 0 : index
    %286 = vector.load %arg5[%c0_207, %c0_208] : memref<1x128xf32, #tpu.memory_space<vmem>>, vector<1x128xf32>
    %287 = arith.addf %285, %286 : vector<1x128xf32>
    %cst_209 = arith.constant 0.000000e+00 : f32
    %288 = vector.broadcast %cst_209 : f32 to vector<1x128xf32>
    %289 = arith.maximumf %287, %288 : vector<1x128xf32>
    %290 = vector.extract_strided_slice %289 {offsets = [0, 0], sizes = [1, 16], strides = [1, 1]} : vector<1x128xf32> to vector<1x16xf32>
    %291 = arith.truncf %290 : vector<1x16xf32> to vector<1x16xbf16>
    %c0_210 = arith.constant 0 : index
    %c256 = arith.constant 256 : index
    %292 = vector.load %arg17[%c0_210, %c256] : memref<8x512xbf16, #tpu.memory_space<vmem>>, vector<1x16xbf16>
    tpu.vector_store %arg17[%c0_210, %c256], %291 {strides = array<i32>} : memref<8x512xbf16, #tpu.memory_space<vmem>>, vector<1x16xbf16>,
    %c88 = arith.constant 88 : index
    %c0_211 = arith.constant 0 : index
    %293 = vector.load %arg16[%c88, %c0_211] : memref<136x128xf32, #tpu.memory_space<vmem>>, vector<1x128xf32>
    %c89 = arith.constant 89 : index
    %c0_212 = arith.constant 0 : index
    %294 = vector.load %arg16[%c89, %c0_212] : memref<136x128xf32, #tpu.memory_space<vmem>>, vector<1x128xf32>
    %295 = arith.maximumf %293, %294 : vector<1x128xf32>
    %c102 = arith.constant 102 : index
    %c0_213 = arith.constant 0 : index
    %296 = vector.load %arg16[%c102, %c0_213] : memref<136x128xf32, #tpu.memory_space<vmem>>, vector<1x128xf32>
    %c103 = arith.constant 103 : index
    %c0_214 = arith.constant 0 : index
    %297 = vector.load %arg16[%c103, %c0_214] : memref<136x128xf32, #tpu.memory_space<vmem>>, vector<1x128xf32>
    %298 = arith.maximumf %296, %297 : vector<1x128xf32>
    %299 = arith.maximumf %295, %298 : vector<1x128xf32>
    %c0_215 = arith.constant 0 : index
    %c0_216 = arith.constant 0 : index
    %300 = vector.load %arg5[%c0_215, %c0_216] : memref<1x128xf32, #tpu.memory_space<vmem>>, vector<1x128xf32>
    %301 = arith.addf %299, %300 : vector<1x128xf32>
    %cst_217 = arith.constant 0.000000e+00 : f32
    %302 = vector.broadcast %cst_217 : f32 to vector<1x128xf32>
    %303 = arith.maximumf %301, %302 : vector<1x128xf32>
    %304 = vector.extract_strided_slice %303 {offsets = [0, 0], sizes = [1, 16], strides = [1, 1]} : vector<1x128xf32> to vector<1x16xf32>
    %305 = arith.truncf %304 : vector<1x16xf32> to vector<1x16xbf16>
    %c0_218 = arith.constant 0 : index
    %c272 = arith.constant 272 : index
    %306 = vector.load %arg17[%c0_218, %c272] : memref<8x512xbf16, #tpu.memory_space<vmem>>, vector<1x16xbf16>
    tpu.vector_store %arg17[%c0_218, %c272], %305 {strides = array<i32>} : memref<8x512xbf16, #tpu.memory_space<vmem>>, vector<1x16xbf16>,
    %c90 = arith.constant 90 : index
    %c0_219 = arith.constant 0 : index
    %307 = vector.load %arg16[%c90, %c0_219] : memref<136x128xf32, #tpu.memory_space<vmem>>, vector<1x128xf32>
    %c91 = arith.constant 91 : index
    %c0_220 = arith.constant 0 : index
    %308 = vector.load %arg16[%c91, %c0_220] : memref<136x128xf32, #tpu.memory_space<vmem>>, vector<1x128xf32>
    %309 = arith.maximumf %307, %308 : vector<1x128xf32>
    %c104 = arith.constant 104 : index
    %c0_221 = arith.constant 0 : index
    %310 = vector.load %arg16[%c104, %c0_221] : memref<136x128xf32, #tpu.memory_space<vmem>>, vector<1x128xf32>
    %c105 = arith.constant 105 : index
    %c0_222 = arith.constant 0 : index
    %311 = vector.load %arg16[%c105, %c0_222] : memref<136x128xf32, #tpu.memory_space<vmem>>, vector<1x128xf32>
    %312 = arith.maximumf %310, %311 : vector<1x128xf32>
    %313 = arith.maximumf %309, %312 : vector<1x128xf32>
    %c0_223 = arith.constant 0 : index
    %c0_224 = arith.constant 0 : index
    %314 = vector.load %arg5[%c0_223, %c0_224] : memref<1x128xf32, #tpu.memory_space<vmem>>, vector<1x128xf32>
    %315 = arith.addf %313, %314 : vector<1x128xf32>
    %cst_225 = arith.constant 0.000000e+00 : f32
    %316 = vector.broadcast %cst_225 : f32 to vector<1x128xf32>
    %317 = arith.maximumf %315, %316 : vector<1x128xf32>
    %318 = vector.extract_strided_slice %317 {offsets = [0, 0], sizes = [1, 16], strides = [1, 1]} : vector<1x128xf32> to vector<1x16xf32>
    %319 = arith.truncf %318 : vector<1x16xf32> to vector<1x16xbf16>
    %c0_226 = arith.constant 0 : index
    %c288 = arith.constant 288 : index
    %320 = vector.load %arg17[%c0_226, %c288] : memref<8x512xbf16, #tpu.memory_space<vmem>>, vector<1x16xbf16>
    tpu.vector_store %arg17[%c0_226, %c288], %319 {strides = array<i32>} : memref<8x512xbf16, #tpu.memory_space<vmem>>, vector<1x16xbf16>,
    %c92 = arith.constant 92 : index
    %c0_227 = arith.constant 0 : index
    %321 = vector.load %arg16[%c92, %c0_227] : memref<136x128xf32, #tpu.memory_space<vmem>>, vector<1x128xf32>
    %c93 = arith.constant 93 : index
    %c0_228 = arith.constant 0 : index
    %322 = vector.load %arg16[%c93, %c0_228] : memref<136x128xf32, #tpu.memory_space<vmem>>, vector<1x128xf32>
    %323 = arith.maximumf %321, %322 : vector<1x128xf32>
    %c106 = arith.constant 106 : index
    %c0_229 = arith.constant 0 : index
    %324 = vector.load %arg16[%c106, %c0_229] : memref<136x128xf32, #tpu.memory_space<vmem>>, vector<1x128xf32>
    %c107 = arith.constant 107 : index
    %c0_230 = arith.constant 0 : index
    %325 = vector.load %arg16[%c107, %c0_230] : memref<136x128xf32, #tpu.memory_space<vmem>>, vector<1x128xf32>
    %326 = arith.maximumf %324, %325 : vector<1x128xf32>
    %327 = arith.maximumf %323, %326 : vector<1x128xf32>
    %c0_231 = arith.constant 0 : index
    %c0_232 = arith.constant 0 : index
    %328 = vector.load %arg5[%c0_231, %c0_232] : memref<1x128xf32, #tpu.memory_space<vmem>>, vector<1x128xf32>
    %329 = arith.addf %327, %328 : vector<1x128xf32>
    %cst_233 = arith.constant 0.000000e+00 : f32
    %330 = vector.broadcast %cst_233 : f32 to vector<1x128xf32>
    %331 = arith.maximumf %329, %330 : vector<1x128xf32>
    %332 = vector.extract_strided_slice %331 {offsets = [0, 0], sizes = [1, 16], strides = [1, 1]} : vector<1x128xf32> to vector<1x16xf32>
    %333 = arith.truncf %332 : vector<1x16xf32> to vector<1x16xbf16>
    %c0_234 = arith.constant 0 : index
    %c304 = arith.constant 304 : index
    %334 = vector.load %arg17[%c0_234, %c304] : memref<8x512xbf16, #tpu.memory_space<vmem>>, vector<1x16xbf16>
    tpu.vector_store %arg17[%c0_234, %c304], %333 {strides = array<i32>} : memref<8x512xbf16, #tpu.memory_space<vmem>>, vector<1x16xbf16>,
    %c112_235 = arith.constant 112 : index
    %c0_236 = arith.constant 0 : index
    %335 = vector.load %arg16[%c112_235, %c0_236] : memref<136x128xf32, #tpu.memory_space<vmem>>, vector<1x128xf32>
    %c113 = arith.constant 113 : index
    %c0_237 = arith.constant 0 : index
    %336 = vector.load %arg16[%c113, %c0_237] : memref<136x128xf32, #tpu.memory_space<vmem>>, vector<1x128xf32>
    %337 = arith.maximumf %335, %336 : vector<1x128xf32>
    %c126 = arith.constant 126 : index
    %c0_238 = arith.constant 0 : index
    %338 = vector.load %arg16[%c126, %c0_238] : memref<136x128xf32, #tpu.memory_space<vmem>>, vector<1x128xf32>
    %c127 = arith.constant 127 : index
    %c0_239 = arith.constant 0 : index
    %339 = vector.load %arg16[%c127, %c0_239] : memref<136x128xf32, #tpu.memory_space<vmem>>, vector<1x128xf32>
    %340 = arith.maximumf %338, %339 : vector<1x128xf32>
    %341 = arith.maximumf %337, %340 : vector<1x128xf32>
    %c0_240 = arith.constant 0 : index
    %c0_241 = arith.constant 0 : index
    %342 = vector.load %arg5[%c0_240, %c0_241] : memref<1x128xf32, #tpu.memory_space<vmem>>, vector<1x128xf32>
    %343 = arith.addf %341, %342 : vector<1x128xf32>
    %cst_242 = arith.constant 0.000000e+00 : f32
    %344 = vector.broadcast %cst_242 : f32 to vector<1x128xf32>
    %345 = arith.maximumf %343, %344 : vector<1x128xf32>
    %346 = vector.extract_strided_slice %345 {offsets = [0, 0], sizes = [1, 16], strides = [1, 1]} : vector<1x128xf32> to vector<1x16xf32>
    %347 = arith.truncf %346 : vector<1x16xf32> to vector<1x16xbf16>
    %c0_243 = arith.constant 0 : index
    %c320 = arith.constant 320 : index
    %348 = vector.load %arg17[%c0_243, %c320] : memref<8x512xbf16, #tpu.memory_space<vmem>>, vector<1x16xbf16>
    tpu.vector_store %arg17[%c0_243, %c320], %347 {strides = array<i32>} : memref<8x512xbf16, #tpu.memory_space<vmem>>, vector<1x16xbf16>,
    %c114 = arith.constant 114 : index
    %c0_244 = arith.constant 0 : index
    %349 = vector.load %arg16[%c114, %c0_244] : memref<136x128xf32, #tpu.memory_space<vmem>>, vector<1x128xf32>
    %c115 = arith.constant 115 : index
    %c0_245 = arith.constant 0 : index
    %350 = vector.load %arg16[%c115, %c0_245] : memref<136x128xf32, #tpu.memory_space<vmem>>, vector<1x128xf32>
    %351 = arith.maximumf %349, %350 : vector<1x128xf32>
    %c128_246 = arith.constant 128 : index
    %c0_247 = arith.constant 0 : index
    %352 = vector.load %arg16[%c128_246, %c0_247] : memref<136x128xf32, #tpu.memory_space<vmem>>, vector<1x128xf32>
    %c129 = arith.constant 129 : index
    %c0_248 = arith.constant 0 : index
    %353 = vector.load %arg16[%c129, %c0_248] : memref<136x128xf32, #tpu.memory_space<vmem>>, vector<1x128xf32>
    %354 = arith.maximumf %352, %353 : vector<1x128xf32>
    %355 = arith.maximumf %351, %354 : vector<1x128xf32>
    %c0_249 = arith.constant 0 : index
    %c0_250 = arith.constant 0 : index
    %356 = vector.load %arg5[%c0_249, %c0_250] : memref<1x128xf32, #tpu.memory_space<vmem>>, vector<1x128xf32>
    %357 = arith.addf %355, %356 : vector<1x128xf32>
    %cst_251 = arith.constant 0.000000e+00 : f32
    %358 = vector.broadcast %cst_251 : f32 to vector<1x128xf32>
    %359 = arith.maximumf %357, %358 : vector<1x128xf32>
    %360 = vector.extract_strided_slice %359 {offsets = [0, 0], sizes = [1, 16], strides = [1, 1]} : vector<1x128xf32> to vector<1x16xf32>
    %361 = arith.truncf %360 : vector<1x16xf32> to vector<1x16xbf16>
    %c0_252 = arith.constant 0 : index
    %c336 = arith.constant 336 : index
    %362 = vector.load %arg17[%c0_252, %c336] : memref<8x512xbf16, #tpu.memory_space<vmem>>, vector<1x16xbf16>
    tpu.vector_store %arg17[%c0_252, %c336], %361 {strides = array<i32>} : memref<8x512xbf16, #tpu.memory_space<vmem>>, vector<1x16xbf16>,
    %c116 = arith.constant 116 : index
    %c0_253 = arith.constant 0 : index
    %363 = vector.load %arg16[%c116, %c0_253] : memref<136x128xf32, #tpu.memory_space<vmem>>, vector<1x128xf32>
    %c117 = arith.constant 117 : index
    %c0_254 = arith.constant 0 : index
    %364 = vector.load %arg16[%c117, %c0_254] : memref<136x128xf32, #tpu.memory_space<vmem>>, vector<1x128xf32>
    %365 = arith.maximumf %363, %364 : vector<1x128xf32>
    %c130 = arith.constant 130 : index
    %c0_255 = arith.constant 0 : index
    %366 = vector.load %arg16[%c130, %c0_255] : memref<136x128xf32, #tpu.memory_space<vmem>>, vector<1x128xf32>
    %c131 = arith.constant 131 : index
    %c0_256 = arith.constant 0 : index
    %367 = vector.load %arg16[%c131, %c0_256] : memref<136x128xf32, #tpu.memory_space<vmem>>, vector<1x128xf32>
    %368 = arith.maximumf %366, %367 : vector<1x128xf32>
    %369 = arith.maximumf %365, %368 : vector<1x128xf32>
    %c0_257 = arith.constant 0 : index
    %c0_258 = arith.constant 0 : index
    %370 = vector.load %arg5[%c0_257, %c0_258] : memref<1x128xf32, #tpu.memory_space<vmem>>, vector<1x128xf32>
    %371 = arith.addf %369, %370 : vector<1x128xf32>
    %cst_259 = arith.constant 0.000000e+00 : f32
    %372 = vector.broadcast %cst_259 : f32 to vector<1x128xf32>
    %373 = arith.maximumf %371, %372 : vector<1x128xf32>
    %374 = vector.extract_strided_slice %373 {offsets = [0, 0], sizes = [1, 16], strides = [1, 1]} : vector<1x128xf32> to vector<1x16xf32>
    %375 = arith.truncf %374 : vector<1x16xf32> to vector<1x16xbf16>
    %c0_260 = arith.constant 0 : index
    %c352 = arith.constant 352 : index
    %376 = vector.load %arg17[%c0_260, %c352] : memref<8x512xbf16, #tpu.memory_space<vmem>>, vector<1x16xbf16>
    tpu.vector_store %arg17[%c0_260, %c352], %375 {strides = array<i32>} : memref<8x512xbf16, #tpu.memory_space<vmem>>, vector<1x16xbf16>,
    %c118 = arith.constant 118 : index
    %c0_261 = arith.constant 0 : index
    %377 = vector.load %arg16[%c118, %c0_261] : memref<136x128xf32, #tpu.memory_space<vmem>>, vector<1x128xf32>
    %c119 = arith.constant 119 : index
    %c0_262 = arith.constant 0 : index
    %378 = vector.load %arg16[%c119, %c0_262] : memref<136x128xf32, #tpu.memory_space<vmem>>, vector<1x128xf32>
    %379 = arith.maximumf %377, %378 : vector<1x128xf32>
    %c132 = arith.constant 132 : index
    %c0_263 = arith.constant 0 : index
    %380 = vector.load %arg16[%c132, %c0_263] : memref<136x128xf32, #tpu.memory_space<vmem>>, vector<1x128xf32>
    %c133 = arith.constant 133 : index
    %c0_264 = arith.constant 0 : index
    %381 = vector.load %arg16[%c133, %c0_264] : memref<136x128xf32, #tpu.memory_space<vmem>>, vector<1x128xf32>
    %382 = arith.maximumf %380, %381 : vector<1x128xf32>
    %383 = arith.maximumf %379, %382 : vector<1x128xf32>
    %c0_265 = arith.constant 0 : index
    %c0_266 = arith.constant 0 : index
    %384 = vector.load %arg5[%c0_265, %c0_266] : memref<1x128xf32, #tpu.memory_space<vmem>>, vector<1x128xf32>
    %385 = arith.addf %383, %384 : vector<1x128xf32>
    %cst_267 = arith.constant 0.000000e+00 : f32
    %386 = vector.broadcast %cst_267 : f32 to vector<1x128xf32>
    %387 = arith.maximumf %385, %386 : vector<1x128xf32>
    %388 = vector.extract_strided_slice %387 {offsets = [0, 0], sizes = [1, 16], strides = [1, 1]} : vector<1x128xf32> to vector<1x16xf32>
    %389 = arith.truncf %388 : vector<1x16xf32> to vector<1x16xbf16>
    %c0_268 = arith.constant 0 : index
    %c368 = arith.constant 368 : index
    %390 = vector.load %arg17[%c0_268, %c368] : memref<8x512xbf16, #tpu.memory_space<vmem>>, vector<1x16xbf16>
    tpu.vector_store %arg17[%c0_268, %c368], %389 {strides = array<i32>} : memref<8x512xbf16, #tpu.memory_space<vmem>>, vector<1x16xbf16>,
    %c120 = arith.constant 120 : index
    %c0_269 = arith.constant 0 : index
    %391 = vector.load %arg16[%c120, %c0_269] : memref<136x128xf32, #tpu.memory_space<vmem>>, vector<1x128xf32>
    %c121 = arith.constant 121 : index
    %c0_270 = arith.constant 0 : index
    %392 = vector.load %arg16[%c121, %c0_270] : memref<136x128xf32, #tpu.memory_space<vmem>>, vector<1x128xf32>
    %393 = arith.maximumf %391, %392 : vector<1x128xf32>
    %c134 = arith.constant 134 : index
    %c0_271 = arith.constant 0 : index
    %394 = vector.load %arg16[%c134, %c0_271] : memref<136x128xf32, #tpu.memory_space<vmem>>, vector<1x128xf32>
    %c135 = arith.constant 135 : index
    %c0_272 = arith.constant 0 : index
    %395 = vector.load %arg16[%c135, %c0_272] : memref<136x128xf32, #tpu.memory_space<vmem>>, vector<1x128xf32>
    %396 = arith.maximumf %394, %395 : vector<1x128xf32>
    %397 = arith.maximumf %393, %396 : vector<1x128xf32>
    %c0_273 = arith.constant 0 : index
    %c0_274 = arith.constant 0 : index
    %398 = vector.load %arg5[%c0_273, %c0_274] : memref<1x128xf32, #tpu.memory_space<vmem>>, vector<1x128xf32>
    %399 = arith.addf %397, %398 : vector<1x128xf32>
    %cst_275 = arith.constant 0.000000e+00 : f32
    %400 = vector.broadcast %cst_275 : f32 to vector<1x128xf32>
    %401 = arith.maximumf %399, %400 : vector<1x128xf32>
    %402 = vector.extract_strided_slice %401 {offsets = [0, 0], sizes = [1, 16], strides = [1, 1]} : vector<1x128xf32> to vector<1x16xf32>
    %403 = arith.truncf %402 : vector<1x16xf32> to vector<1x16xbf16>
    %c0_276 = arith.constant 0 : index
    %c384 = arith.constant 384 : index
    %404 = vector.load %arg17[%c0_276, %c384] : memref<8x512xbf16, #tpu.memory_space<vmem>>, vector<1x16xbf16>
    tpu.vector_store %arg17[%c0_276, %c384], %403 {strides = array<i32>} : memref<8x512xbf16, #tpu.memory_space<vmem>>, vector<1x16xbf16>,
    %c0_277 = arith.constant 0 : index
    %c0_278 = arith.constant 0 : index
    %405 = vector.load %arg17[%c0_277, %c0_278] : memref<8x512xbf16, #tpu.memory_space<vmem>>, vector<8x512xbf16>
    %c0_279 = arith.constant 0 : index
    %c0_280 = arith.constant 0 : index
    %406 = vector.load %arg6[%c0_279, %c0_280] : memref<512x128xbf16, #tpu.memory_space<vmem>>, vector<512x128xbf16>
    %cst_281 = arith.constant dense<0.000000e+00> : vector<8x128xf32>
    %407 = tpu.matmul %405, %406, %cst_281 {dimension_numbers = #tpu.dot_dimension_numbers<[1], [0], [0], [1], [0, 0, 1, 1], [], []>} : vector<8x512xbf16>, vector<512x128xbf16>, vector<8x128xf32> -> vector<8x128xf32>
    %c0_282 = arith.constant 0 : index
    %c0_283 = arith.constant 0 : index
    %408 = vector.load %arg7[%c0_282, %c0_283] : memref<1x128xf32, #tpu.memory_space<vmem>>, vector<1x128xf32>
    %409 = vector.broadcast %408 : vector<1x128xf32> to vector<8x128xf32>
    %410 = arith.addf %407, %409 : vector<8x128xf32>
    %cst_284 = arith.constant 0.000000e+00 : f32
    %411 = vector.broadcast %cst_284 : f32 to vector<8x128xf32>
    %412 = arith.maximumf %410, %411 : vector<8x128xf32>
    %413 = arith.truncf %412 : vector<8x128xf32> to vector<8x128xbf16>
    %c0_285 = arith.constant 0 : index
    %c0_286 = arith.constant 0 : index
    %414 = vector.load %arg8[%c0_285, %c0_286] : memref<128x128xbf16, #tpu.memory_space<vmem>>, vector<128x128xbf16>
    %cst_287 = arith.constant dense<0.000000e+00> : vector<8x128xf32>
    %415 = tpu.matmul %413, %414, %cst_287 {dimension_numbers = #tpu.dot_dimension_numbers<[1], [0], [0], [1], [0, 0, 1, 1], [], []>} : vector<8x128xbf16>, vector<128x128xbf16>, vector<8x128xf32> -> vector<8x128xf32>
    %c0_288 = arith.constant 0 : index
    %c0_289 = arith.constant 0 : index
    %416 = vector.load %arg9[%c0_288, %c0_289] : memref<1x128xf32, #tpu.memory_space<vmem>>, vector<1x128xf32>
    %417 = vector.broadcast %416 : vector<1x128xf32> to vector<8x128xf32>
    %418 = arith.addf %415, %417 : vector<8x128xf32>
    %cst_290 = arith.constant 0.000000e+00 : f32
    %419 = vector.broadcast %cst_290 : f32 to vector<8x128xf32>
    %420 = arith.maximumf %418, %419 : vector<8x128xf32>
    %421 = arith.truncf %420 : vector<8x128xf32> to vector<8x128xbf16>
    %c0_291 = arith.constant 0 : index
    %c0_292 = arith.constant 0 : index
    %422 = vector.load %arg10[%c0_291, %c0_292] : memref<128x128xbf16, #tpu.memory_space<vmem>>, vector<128x128xbf16>
    %cst_293 = arith.constant dense<0.000000e+00> : vector<8x128xf32>
    %423 = tpu.matmul %421, %422, %cst_293 {dimension_numbers = #tpu.dot_dimension_numbers<[1], [0], [0], [1], [0, 0, 1, 1], [], []>} : vector<8x128xbf16>, vector<128x128xbf16>, vector<8x128xf32> -> vector<8x128xf32>
    %c0_294 = arith.constant 0 : index
    %c0_295 = arith.constant 0 : index
    %424 = vector.load %arg11[%c0_294, %c0_295] : memref<1x128xf32, #tpu.memory_space<vmem>>, vector<1x128xf32>
    %425 = vector.broadcast %424 : vector<1x128xf32> to vector<8x128xf32>
    %426 = arith.addf %423, %425 : vector<8x128xf32>
    %c0_296 = arith.constant 0 : index
    %c0_297 = arith.constant 0 : index
    %427 = vector.load %arg12[%c0_296, %c0_297] : memref<8x128xf32, #tpu.memory_space<vmem>>, vector<8x128xf32>
    tpu.vector_store %arg12[%c0_296, %c0_297], %426 {strides = array<i32>} : memref<8x128xf32, #tpu.memory_space<vmem>>, vector<8x128xf32>,
    return
  }
  func.func @transform_0(%arg0: i32) -> (i32, i32) {
    %c0_i32 = arith.constant 0 : i32
    %c0_i32_0 = arith.constant 0 : i32
    return %arg0, %c0_i32 : i32, i32
  }
  func.func @transform_1(%arg0: i32) -> (i32, i32) {
    %c0_i32 = arith.constant 0 : i32
    %c0_i32_0 = arith.constant 0 : i32
    %c0_i32_1 = arith.constant 0 : i32
    return %c0_i32, %c0_i32_0 : i32, i32
  }
  func.func @transform_2(%arg0: i32) -> (i32, i32) {
    %c0_i32 = arith.constant 0 : i32
    %c0_i32_0 = arith.constant 0 : i32
    %c0_i32_1 = arith.constant 0 : i32
    return %c0_i32, %c0_i32_0 : i32, i32
  }
  func.func @transform_3(%arg0: i32) -> (i32, i32, i32) {
    %c0_i32 = arith.constant 0 : i32
    %c0_i32_0 = arith.constant 0 : i32
    %c0_i32_1 = arith.constant 0 : i32
    %c0_i32_2 = arith.constant 0 : i32
    return %c0_i32, %c0_i32_0, %c0_i32_1 : i32, i32, i32
  }
  func.func @transform_4(%arg0: i32) -> (i32, i32) {
    %c0_i32 = arith.constant 0 : i32
    %c0_i32_0 = arith.constant 0 : i32
    %c0_i32_1 = arith.constant 0 : i32
    return %c0_i32, %c0_i32_0 : i32, i32
  }
  func.func @transform_5(%arg0: i32) -> (i32, i32) {
    %c0_i32 = arith.constant 0 : i32
    %c0_i32_0 = arith.constant 0 : i32
    %c0_i32_1 = arith.constant 0 : i32
    return %c0_i32, %c0_i32_0 : i32, i32
  }
  func.func @transform_6(%arg0: i32) -> (i32, i32) {
    %c0_i32 = arith.constant 0 : i32
    %c0_i32_0 = arith.constant 0 : i32
    %c0_i32_1 = arith.constant 0 : i32
    return %c0_i32, %c0_i32_0 : i32, i32
  }
  func.func @transform_7(%arg0: i32) -> (i32, i32) {
    %c0_i32 = arith.constant 0 : i32
    %c0_i32_0 = arith.constant 0 : i32
    %c0_i32_1 = arith.constant 0 : i32
    return %c0_i32, %c0_i32_0 : i32, i32
  }
  func.func @transform_8(%arg0: i32) -> (i32, i32) {
    %c0_i32 = arith.constant 0 : i32
    %c0_i32_0 = arith.constant 0 : i32
    %c0_i32_1 = arith.constant 0 : i32
    return %c0_i32, %c0_i32_0 : i32, i32
  }
  func.func @transform_9(%arg0: i32) -> (i32, i32) {
    %c0_i32 = arith.constant 0 : i32
    %c0_i32_0 = arith.constant 0 : i32
    %c0_i32_1 = arith.constant 0 : i32
    return %c0_i32, %c0_i32_0 : i32, i32
  }
  func.func @transform_10(%arg0: i32) -> (i32, i32) {
    %c0_i32 = arith.constant 0 : i32
    %c0_i32_0 = arith.constant 0 : i32
    %c0_i32_1 = arith.constant 0 : i32
    return %c0_i32, %c0_i32_0 : i32, i32
  }
  func.func @transform_11(%arg0: i32) -> (i32, i32) {
    %c0_i32 = arith.constant 0 : i32
    %c0_i32_0 = arith.constant 0 : i32
    return %arg0, %c0_i32 : i32, i32
  }
}

</mosaic_0001>

<llo_original>
// kernel: convnet_forward.1
$region0: #{convnet_forward.1}
  #allocation0 [shape = 'u32[]', space=smem, size = 0x4, offset = 0x4, fixed_abs, tag = 'smem constant byte address 0x4 - core index']
  #allocation1 [shape = 'u32[144,128]{1,0:T(1,128)}', space=vmem, size = 0x12000, scoped, tag = 'internal scratch']
  #allocation2 [shape = 'f32[784,128]{1,0:T(8,128)}', space=vmem, size = 0x62000, scoped, tag = 'scratch operand']
  #allocation3 [shape = 'bf16[196,128]{1,0:T(8,128)(2,1)}', space=vmem, size = 0xc800, scoped, tag = 'scratch operand']
  #allocation4 [shape = 'bf16[192,40]{1,0:T(16,128)(2,1)}', space=vmem, size = 0xc000, scoped, tag = 'scratch operand']
  #allocation5 [shape = 'f32[136,128]{1,0:T(8,128)}', space=vmem, size = 0x11000, scoped, tag = 'scratch operand']
  #allocation6 [shape = 'bf16[8,512]{1,0:T(8,128)(2,1)}', space=vmem, size = 0x2000, scoped, tag = 'scratch operand']
  %s0 = inlined_call_operand.vmem [shape: bf16[1568,75], index: 0, kind: input, shape index: {}]
  %s1 = inlined_call_operand.vmem [shape: bf16[75,128], index: 1, kind: input, shape index: {}]
  %s2 = inlined_call_operand.vmem [shape: f32[1,128], index: 2, kind: input, shape index: {}]
  %s3 = inlined_call_operand.vmem [shape: bf16[5,40,128], index: 3, kind: input, shape index: {}]
  %s4 = inlined_call_operand.vmem [shape: f32[1,128], index: 4, kind: input, shape index: {}]
  %s5 = inlined_call_operand.vmem [shape: bf16[512,128], index: 5, kind: input, shape index: {}]
  %s6 = inlined_call_operand.vmem [shape: f32[1,128], index: 6, kind: input, shape index: {}]
  %s7 = inlined_call_operand.vmem [shape: bf16[128,128], index: 7, kind: input, shape index: {}]
  %s8 = inlined_call_operand.vmem [shape: f32[1,128], index: 8, kind: input, shape index: {}]
  %s9 = inlined_call_operand.vmem [shape: bf16[128,128], index: 9, kind: input, shape index: {}]
  %s10 = inlined_call_operand.vmem [shape: f32[1,128], index: 10, kind: input, shape index: {}]
  %s11 = inlined_call_operand.vmem [shape: f32[16,128], index: 11, kind: output, shape index: {}]
  %s12 = sld [smem:[#allocation0]]
  $region77: #{convnet_forward.1} parent=0
    _
  %s14 = ssub.s32 1, %s12
  %s15 = scalar_select 0, %s14, %s12
  loop: start=0, step=1, limit=4
  $region2: #{convnet_forward.1} parent=0 // loop_pre_header
    _
  $region3: #{convnet_forward.1} parent=0 // loop_header
    %s17 = sphi 0, %s21
    %p18 = scmp.ge.s32.totalorder %s17, 4
    %s27 = sphi 0, %s29
    %s30 = sphi 0, %s27
    %s31 = sphi 0, %s30
    %s47 = sphi 0, %s31
    %s51 = sphi 0, %s51
    %s53 = sphi 0, %s51
    %s54 = sphi 0, %s53
    %s68 = sphi 0, %s54
    %s72 = sphi 0, %s72
    %s74 = sphi 0, %s72
    %s75 = sphi 0, %s74
    %s89 = sphi 0, %s75
    %s93 = sphi 0, %s93
    %s95 = sphi 0, %s93
    %s96 = sphi 0, %s95
    %s110 = sphi 0, %s96
    %s114 = sphi 0, %s114
    %s116 = sphi 0, %s114
    %s117 = sphi 0, %s116
    %s131 = sphi 0, %s117
    %s135 = sphi 0, %s135
    %s137 = sphi 0, %s135
    %s138 = sphi 0, %s137
    %s152 = sphi 0, %s138
    %s156 = sphi 0, %s156
    %s158 = sphi 0, %s156
    %s159 = sphi 0, %s158
    %s173 = sphi 0, %s159
    %s177 = sphi 0, %s177
    %s179 = sphi 0, %s177
    %s180 = sphi 0, %s179
    %s194 = sphi 0, %s180
    %s198 = sphi 0, %s198
    %s200 = sphi 0, %s198
    %s201 = sphi 0, %s200
    %s215 = sphi 0, %s201
    %s219 = sphi 0, %s219
    %s221 = sphi 0, %s219
    %s222 = sphi 0, %s221
    %s236 = sphi 0, %s222
    %s240 = sphi 0, %s240
    %s242 = sphi 0, %s240
    %s243 = sphi 0, %s242
    %s257 = sphi 0, %s243
    %s263 = sphi 0, %s265
    %s266 = sphi 0, %s263
    %s267 = sphi 0, %s266
    %s283 = sphi 0, %s267
  $region4: #{convnet_forward.1} parent=0 // loop_header_branch
    %20 = sbr.rel (%p18) target = $region8
  $region5: #{convnet_forward.1} parent=0 // loop_body
    %s22 = ssub.s32 %s17, 1
    %s23 = ssub.s32 %s17, 2
    %s24 = sadd.s32 %s17, 1
    %s25 = ssub.s32 %s17, %s24
    %p26 = scmp.eq.s32.totalorder %s25, 0
    %s28 = sadd.s32 %s27, 1
    %s29 = scalar_select %p26, %s27, %s28
    %p32 = pneg %p26
    %p33 = scmp.eq.s32.totalorder %s17, 1
    %p34 = por %p32, %p33
    %p35 = scmp.ne.s32.totalorder %s27, %s30
    %p36 = scmp.eq.s32.totalorder %s17, 0
    %p37 = por %p35, %p36
    %p38 = scmp.ne.s32.totalorder %s27, %s30
    %p39 = scmp.eq.s32.totalorder %s22, 1
    %p40 = por %p38, %p39
    %p41 = scmp.ne.s32.totalorder %s30, %s31
    %p42 = scmp.eq.s32.totalorder %s22, 0
    %p43 = por %p41, %p42
    %p44 = scmp.ne.s32.totalorder %s30, %s31
    %p45 = scmp.eq.s32.totalorder %s23, 1
    %p46 = por %p44, %p45
    %p48 = scmp.ne.s32.totalorder %s31, %s47
    %p49 = scmp.eq.s32.totalorder %s23, 0
    %p50 = por %p48, %p49
    %s52 = sadd.s32 %s51, 1
    %p55 = scmp.eq.s32.totalorder %s17, 1
    %p56 = scmp.ne.s32.totalorder %s51, %s53
    %p57 = scmp.eq.s32.totalorder %s17, 0
    %p58 = por %p56, %p57
    %p59 = scmp.ne.s32.totalorder %s51, %s53
    %p60 = scmp.eq.s32.totalorder %s22, 1
    %p61 = por %p59, %p60
    %p62 = scmp.ne.s32.totalorder %s53, %s54
    %p63 = scmp.eq.s32.totalorder %s22, 0
    %p64 = por %p62, %p63
    %p65 = scmp.ne.s32.totalorder %s53, %s54
    %p66 = scmp.eq.s32.totalorder %s23, 1
    %p67 = por %p65, %p66
    %p69 = scmp.ne.s32.totalorder %s54, %s68
    %p70 = scmp.eq.s32.totalorder %s23, 0
    %p71 = por %p69, %p70
    %s73 = sadd.s32 %s72, 1
    %p76 = scmp.eq.s32.totalorder %s17, 1
    %p77 = scmp.ne.s32.totalorder %s72, %s74
    %p78 = scmp.eq.s32.totalorder %s17, 0
    %p79 = por %p77, %p78
    %p80 = scmp.ne.s32.totalorder %s72, %s74
    %p81 = scmp.eq.s32.totalorder %s22, 1
    %p82 = por %p80, %p81
    %p83 = scmp.ne.s32.totalorder %s74, %s75
    %p84 = scmp.eq.s32.totalorder %s22, 0
    %p85 = por %p83, %p84
    %p86 = scmp.ne.s32.totalorder %s74, %s75
    %p87 = scmp.eq.s32.totalorder %s23, 1
    %p88 = por %p86, %p87
    %p90 = scmp.ne.s32.totalorder %s75, %s89
    %p91 = scmp.eq.s32.totalorder %s23, 0
    %p92 = por %p90, %p91
    %s94 = sadd.s32 %s93, 1
    %p97 = scmp.eq.s32.totalorder %s17, 1
    %p98 = scmp.ne.s32.totalorder %s93, %s95
    %p99 = scmp.eq.s32.totalorder %s17, 0
    %p100 = por %p98, %p99
    %p101 = scmp.ne.s32.totalorder %s93, %s95
    %p102 = scmp.eq.s32.totalorder %s22, 1
    %p103 = por %p101, %p102
    %p104 = scmp.ne.s32.totalorder %s95, %s96
    %p105 = scmp.eq.s32.totalorder %s22, 0
    %p106 = por %p104, %p105
    %p107 = scmp.ne.s32.totalorder %s95, %s96
    %p108 = scmp.eq.s32.totalorder %s23, 1
    %p109 = por %p107, %p108
    %p111 = scmp.ne.s32.totalorder %s96, %s110
    %p112 = scmp.eq.s32.totalorder %s23, 0
    %p113 = por %p111, %p112
    %s115 = sadd.s32 %s114, 1
    %p118 = scmp.eq.s32.totalorder %s17, 1
    %p119 = scmp.ne.s32.totalorder %s114, %s116
    %p120 = scmp.eq.s32.totalorder %s17, 0
    %p121 = por %p119, %p120
    %p122 = scmp.ne.s32.totalorder %s114, %s116
    %p123 = scmp.eq.s32.totalorder %s22, 1
    %p124 = por %p122, %p123
    %p125 = scmp.ne.s32.totalorder %s116, %s117
    %p126 = scmp.eq.s32.totalorder %s22, 0
    %p127 = por %p125, %p126
    %p128 = scmp.ne.s32.totalorder %s116, %s117
    %p129 = scmp.eq.s32.totalorder %s23, 1
    %p130 = por %p128, %p129
    %p132 = scmp.ne.s32.totalorder %s117, %s131
    %p133 = scmp.eq.s32.totalorder %s23, 0
    %p134 = por %p132, %p133
    %s136 = sadd.s32 %s135, 1
    %p139 = scmp.eq.s32.totalorder %s17, 1
    %p140 = scmp.ne.s32.totalorder %s135, %s137
    %p141 = scmp.eq.s32.totalorder %s17, 0
    %p142 = por %p140, %p141
    %p143 = scmp.ne.s32.totalorder %s135, %s137
    %p144 = scmp.eq.s32.totalorder %s22, 1
    %p145 = por %p143, %p144
    %p146 = scmp.ne.s32.totalorder %s137, %s138
    %p147 = scmp.eq.s32.totalorder %s22, 0
    %p148 = por %p146, %p147
    %p149 = scmp.ne.s32.totalorder %s137, %s138
    %p150 = scmp.eq.s32.totalorder %s23, 1
    %p151 = por %p149, %p150
    %p153 = scmp.ne.s32.totalorder %s138, %s152
    %p154 = scmp.eq.s32.totalorder %s23, 0
    %p155 = por %p153, %p154
    %s157 = sadd.s32 %s156, 1
    %p160 = scmp.eq.s32.totalorder %s17, 1
    %p161 = scmp.ne.s32.totalorder %s156, %s158
    %p162 = scmp.eq.s32.totalorder %s17, 0
    %p163 = por %p161, %p162
    %p164 = scmp.ne.s32.totalorder %s156, %s158
    %p165 = scmp.eq.s32.totalorder %s22, 1
    %p166 = por %p164, %p165
    %p167 = scmp.ne.s32.totalorder %s158, %s159
    %p168 = scmp.eq.s32.totalorder %s22, 0
    %p169 = por %p167, %p168
    %p170 = scmp.ne.s32.totalorder %s158, %s159
    %p171 = scmp.eq.s32.totalorder %s23, 1
    %p172 = por %p170, %p171
    %p174 = scmp.ne.s32.totalorder %s159, %s173
    %p175 = scmp.eq.s32.totalorder %s23, 0
    %p176 = por %p174, %p175
    %s178 = sadd.s32 %s177, 1
    %p181 = scmp.eq.s32.totalorder %s17, 1
    %p182 = scmp.ne.s32.totalorder %s177, %s179
    %p183 = scmp.eq.s32.totalorder %s17, 0
    %p184 = por %p182, %p183
    %p185 = scmp.ne.s32.totalorder %s177, %s179
    %p186 = scmp.eq.s32.totalorder %s22, 1
    %p187 = por %p185, %p186
    %p188 = scmp.ne.s32.totalorder %s179, %s180
    %p189 = scmp.eq.s32.totalorder %s22, 0
    %p190 = por %p188, %p189
    %p191 = scmp.ne.s32.totalorder %s179, %s180
    %p192 = scmp.eq.s32.totalorder %s23, 1
    %p193 = por %p191, %p192
    %p195 = scmp.ne.s32.totalorder %s180, %s194
    %p196 = scmp.eq.s32.totalorder %s23, 0
    %p197 = por %p195, %p196
    %s199 = sadd.s32 %s198, 1
    %p202 = scmp.eq.s32.totalorder %s17, 1
    %p203 = scmp.ne.s32.totalorder %s198, %s200
    %p204 = scmp.eq.s32.totalorder %s17, 0
    %p205 = por %p203, %p204
    %p206 = scmp.ne.s32.totalorder %s198, %s200
    %p207 = scmp.eq.s32.totalorder %s22, 1
    %p208 = por %p206, %p207
    %p209 = scmp.ne.s32.totalorder %s200, %s201
    %p210 = scmp.eq.s32.totalorder %s22, 0
    %p211 = por %p209, %p210
    %p212 = scmp.ne.s32.totalorder %s200, %s201
    %p213 = scmp.eq.s32.totalorder %s23, 1
    %p214 = por %p212, %p213
    %p216 = scmp.ne.s32.totalorder %s201, %s215
    %p217 = scmp.eq.s32.totalorder %s23, 0
    %p218 = por %p216, %p217
    %s220 = sadd.s32 %s219, 1
    %p223 = scmp.eq.s32.totalorder %s17, 1
    %p224 = scmp.ne.s32.totalorder %s219, %s221
    %p225 = scmp.eq.s32.totalorder %s17, 0
    %p226 = por %p224, %p225
    %p227 = scmp.ne.s32.totalorder %s219, %s221
    %p228 = scmp.eq.s32.totalorder %s22, 1
    %p229 = por %p227, %p228
    %p230 = scmp.ne.s32.totalorder %s221, %s222
    %p231 = scmp.eq.s32.totalorder %s22, 0
    %p232 = por %p230, %p231
    %p233 = scmp.ne.s32.totalorder %s221, %s222
    %p234 = scmp.eq.s32.totalorder %s23, 1
    %p235 = por %p233, %p234
    %p237 = scmp.ne.s32.totalorder %s222, %s236
    %p238 = scmp.eq.s32.totalorder %s23, 0
    %p239 = por %p237, %p238
    %s241 = sadd.s32 %s240, 1
    %p244 = scmp.eq.s32.totalorder %s17, 1
    %p245 = scmp.ne.s32.totalorder %s240, %s242
    %p246 = scmp.eq.s32.totalorder %s17, 0
    %p247 = por %p245, %p246
    %p248 = scmp.ne.s32.totalorder %s240, %s242
    %p249 = scmp.eq.s32.totalorder %s22, 1
    %p250 = por %p248, %p249
    %p251 = scmp.ne.s32.totalorder %s242, %s243
    %p252 = scmp.eq.s32.totalorder %s22, 0
    %p253 = por %p251, %p252
    %p254 = scmp.ne.s32.totalorder %s242, %s243
    %p255 = scmp.eq.s32.totalorder %s23, 1
    %p256 = por %p254, %p255
    %p258 = scmp.ne.s32.totalorder %s243, %s257
    %p259 = scmp.eq.s32.totalorder %s23, 0
    %p260 = por %p258, %p259
    %s261 = ssub.s32 %s17, %s24
    %p262 = scmp.eq.s32.totalorder %s261, 0
    %s264 = sadd.s32 %s263, 1
    %s265 = scalar_select %p262, %s263, %s264
    %p268 = pneg %p262
    %p269 = scmp.eq.s32.totalorder %s17, 1
    %p270 = por %p268, %p269
    %p271 = scmp.ne.s32.totalorder %s263, %s266
    %p272 = scmp.eq.s32.totalorder %s17, 0
    %p273 = por %p271, %p272
    %p274 = scmp.ne.s32.totalorder %s263, %s266
    %p275 = scmp.eq.s32.totalorder %s22, 1
    %p276 = por %p274, %p275
    %p277 = scmp.ne.s32.totalorder %s266, %s267
    %p278 = scmp.eq.s32.totalorder %s22, 0
    %p279 = por %p277, %p278
    %p280 = scmp.ne.s32.totalorder %s266, %s267
    %p281 = scmp.eq.s32.totalorder %s23, 1
    %p282 = por %p280, %p281
    %p284 = scmp.ne.s32.totalorder %s267, %s283
    %p285 = scmp.eq.s32.totalorder %s23, 0
    %p286 = por %p284, %p285
    %p287 = scmp.le.s32.totalorder 1, %s17
    %p288 = scmp.lt.s32.totalorder %s17, 3
    %p289 = pnand %p287, %p288
    %p290 = pneg %p289
    // Predicated region
    $region9: #{convnet_forward.1} parent=5 // pred_check
      _
    $region10: #{convnet_forward.1} parent=5 // pred_check_branch
      %292 = sbr.rel (%p289) target = $region12
    $region11: #{convnet_forward.1} parent=5 // pred_region
      %s293 = ssub.s32 %s17, 1
      // Predicated region
      $region13: #{convnet_forward.1} parent=11 // pred_check
        %p294 = pneg %p64
      $region14: #{convnet_forward.1} parent=11 // pred_check_branch
        %296 = sbr.rel (%p294) target = $region16
      $region15: #{convnet_forward.1} parent=11 // pred_region
        _
      $region16: #{convnet_forward.1} parent=11 // pred_fallthru
        _
      // Predicated region
      $region17: #{convnet_forward.1} parent=11 // pred_check
        %p297 = pneg %p85
      $region18: #{convnet_forward.1} parent=11 // pred_check_branch
        %299 = sbr.rel (%p297) target = $region20
      $region19: #{convnet_forward.1} parent=11 // pred_region
        _
      $region20: #{convnet_forward.1} parent=11 // pred_fallthru
        _
      // Predicated region
      $region21: #{convnet_forward.1} parent=11 // pred_check
        %p300 = pneg %p106
      $region22: #{convnet_forward.1} parent=11 // pred_check_branch
        %302 = sbr.rel (%p300) target = $region24
      $region23: #{convnet_forward.1} parent=11 // pred_region
        _
      $region24: #{convnet_forward.1} parent=11 // pred_fallthru
        _
      // Predicated region
      $region25: #{convnet_forward.1} parent=11 // pred_check
        %p303 = pneg %p127
      $region26: #{convnet_forward.1} parent=11 // pred_check_branch
        %305 = sbr.rel (%p303) target = $region28
      $region27: #{convnet_forward.1} parent=11 // pred_region
        _
      $region28: #{convnet_forward.1} parent=11 // pred_fallthru
        _
      // Predicated region
      $region29: #{convnet_forward.1} parent=11 // pred_check
        %p306 = pneg %p148
      $region30: #{convnet_forward.1} parent=11 // pred_check_branch
        %308 = sbr.rel (%p306) target = $region32
      $region31: #{convnet_forward.1} parent=11 // pred_region
        _
      $region32: #{convnet_forward.1} parent=11 // pred_fallthru
        _
      // Predicated region
      $region33: #{convnet_forward.1} parent=11 // pred_check
        %p309 = pneg %p169
      $region34: #{convnet_forward.1} parent=11 // pred_check_branch
        %311 = sbr.rel (%p309) target = $region36
      $region35: #{convnet_forward.1} parent=11 // pred_region
        _
      $region36: #{convnet_forward.1} parent=11 // pred_fallthru
        _
      // Predicated region
      $region37: #{convnet_forward.1} parent=11 // pred_check
        %p312 = pneg %p190
      $region38: #{convnet_forward.1} parent=11 // pred_check_branch
        %314 = sbr.rel (%p312) target = $region40
      $region39: #{convnet_forward.1} parent=11 // pred_region
        _
      $region40: #{convnet_forward.1} parent=11 // pred_fallthru
        _
      // Predicated region
      $region41: #{convnet_forward.1} parent=11 // pred_check
        %p315 = pneg %p211
      $region42: #{convnet_forward.1} parent=11 // pred_check_branch
        %317 = sbr.rel (%p315) target = $region44
      $region43: #{convnet_forward.1} parent=11 // pred_region
        _
      $region44: #{convnet_forward.1} parent=11 // pred_fallthru
        _
      // Predicated region
      $region45: #{convnet_forward.1} parent=11 // pred_check
        %p318 = pneg %p232
      $region46: #{convnet_forward.1} parent=11 // pred_check_branch
        %320 = sbr.rel (%p318) target = $region48
      $region47: #{convnet_forward.1} parent=11 // pred_region
        _
      $region48: #{convnet_forward.1} parent=11 // pred_fallthru
        _
      // Predicated region
      $region49: #{convnet_forward.1} parent=11 // pred_check
        %p321 = pneg %p253
      $region50: #{convnet_forward.1} parent=11 // pred_check_branch
        %323 = sbr.rel (%p321) target = $region52
      $region51: #{convnet_forward.1} parent=11 // pred_region
        _
      $region52: #{convnet_forward.1} parent=11 // pred_fallthru
        _
    $region12: #{convnet_forward.1} parent=5 // pred_fallthru
      _
    %p324 = scmp.lt.s32.totalorder %s17, 2
    // Predicated region
    $region53: #{convnet_forward.1} parent=5 // pred_check
      %p325 = pneg %p324
    $region54: #{convnet_forward.1} parent=5 // pred_check_branch
      %327 = sbr.rel (%p325) target = $region56
    $region55: #{convnet_forward.1} parent=5 // pred_region
      // Predicated region
      $region57: #{convnet_forward.1} parent=55 // pred_check
        %p328 = pneg %p37
      $region58: #{convnet_forward.1} parent=55 // pred_check_branch
        %330 = sbr.rel (%p328) target = $region60
      $region59: #{convnet_forward.1} parent=55 // pred_region
        %s331 = smul.u32 98, %s17
        %p332 = scmp.lt.s32.totalorder %s331, 195
        %s333 = scalar_select %p332, %s331, 195
        %s334 = smul.addr %s333, 4
        %s335 = scalar_lea.vmem %s0, %s334
        %s336 = smul.u32 98, %s17
      $region60: #{convnet_forward.1} parent=55 // pred_fallthru
        _
    $region56: #{convnet_forward.1} parent=5 // pred_fallthru
      _
    %p337 = scmp.le.s32.totalorder 1, %s17
    %p338 = scmp.lt.s32.totalorder %s17, 3
    %p339 = pnand %p337, %p338
    %p340 = pneg %p339
    // Predicated region
    $region61: #{convnet_forward.1} parent=5 // pred_check
      _
    $region62: #{convnet_forward.1} parent=5 // pred_check_branch
      %342 = sbr.rel (%p339) target = $region64
    $region63: #{convnet_forward.1} parent=5 // pred_region
      %s343 = ssub.s32 %s17, 1
      %s344 = smul.u32 98, %s22
      %p345 = scmp.lt.s32.totalorder %s344, 195
      %s346 = scalar_select %p345, %s344, 195
      %s347 = smul.addr %s346, 4
      %s348 = scalar_lea.vmem %s0, %s347
      %p349 = pneg %p43
      %p350 = pneg %p40
      %p351 = pneg %p64
      %p352 = pneg %p61
      %p353 = pneg %p85
      %p354 = pneg %p82
      %p355 = pneg %p106
      %p356 = pneg %p103
      %p357 = pneg %p127
      %p358 = pneg %p124
      %p359 = pneg %p148
      %p360 = pneg %p145
      %p361 = pneg %p169
      %p362 = pneg %p166
      %p363 = pneg %p190
      %p364 = pneg %p187
      %p365 = pneg %p211
      %p366 = pneg %p208
      %p367 = pneg %p232
      %p368 = pneg %p229
      %p369 = pneg %p253
      %p370 = pneg %p250
      %p371 = pneg %p279
      %p372 = pneg %p276
      %p373 = scmp.lt.s32.totalorder %s22, 1
      %s374 = scalar_select %p373, %s22, 1
      %s375 = smul.addr %s374, 8
      %s376 = scalar_lea.vmem %s11, %s375
      %s377 = smul.u32 98, %s22
      %p378 = scmp.lt.s32.totalorder %s377, 195
      %s379 = scalar_select %p378, %s377, 195
      %s380 = smul.addr %s379, 4
      %s381 = scalar_lea.vmem %s0, %s380
      %s382 = smul.u32 98, %s22
      %p383 = scmp.lt.s32.totalorder %s22, 1
      %s384 = scalar_select %p383, %s22, 1
      %s385 = smul.addr %s384, 8
      %s386 = scalar_lea.vmem %s11, %s385
      %v388 = vld [vmem:[%s381] sm:$0xf]
      %v389 = vld [vmem:[%s381 + $0x4] sm:$0xf]
      %v390 = vld [vmem:[%s381 + $0x8] sm:$0xf]
      %v391 = vld [vmem:[%s381 + $0xc] sm:$0xf]
      %v392 = vld [vmem:[%s381 + $0x10] sm:$0xf]
      %v393 = vld [vmem:[%s381 + $0x14] sm:$0xf]
      %v394 = vld [vmem:[%s381 + $0x18] sm:$0xf]
      %v395 = vld [vmem:[%s381 + $0x1c] sm:$0xf]
      %v396 = vld [vmem:[%s381 + $0x20] sm:$0xf]
      %v397 = vld [vmem:[%s381 + $0x24] sm:$0xf]
      %v398 = vld [vmem:[%s381 + $0x28] sm:$0xf]
      %v399 = vld [vmem:[%s381 + $0x2c] sm:$0xf]
      %v400 = vld [vmem:[%s381 + $0x30] sm:$0xf]
      %v401 = vld [vmem:[%s381 + $0x34] sm:$0xf]
      %v402 = vld [vmem:[%s381 + $0x38] sm:$0xf]
      %v403 = vld [vmem:[%s381 + $0x3c] sm:$0xf]
      %v404 = vld [vmem:[%s381 + $0x40] sm:$0xf]
      %v405 = vld [vmem:[%s381 + $0x44] sm:$0xf]
      %v406 = vld [vmem:[%s381 + $0x48] sm:$0xf]
      %v407 = vld [vmem:[%s381 + $0x4c] sm:$0xf]
      %v408 = vld [vmem:[%s381 + $0x50] sm:$0xf]
      %v409 = vld [vmem:[%s381 + $0x54] sm:$0xf]
      %v410 = vld [vmem:[%s381 + $0x58] sm:$0xf]
      %v411 = vld [vmem:[%s381 + $0x5c] sm:$0xf]
      %v412 = vld [vmem:[%s381 + $0x60] sm:$0xf]
      %v413 = vld [vmem:[%s381 + $0x64] sm:$0xf]
      %v414 = vld [vmem:[%s381 + $0x68] sm:$0xf]
      %v415 = vld [vmem:[%s381 + $0x6c] sm:$0xf]
      %v416 = vld [vmem:[%s381 + $0x70] sm:$0xf]
      %v417 = vld [vmem:[%s381 + $0x74] sm:$0xf]
      %v418 = vld [vmem:[%s381 + $0x78] sm:$0xf]
      %v419 = vld [vmem:[%s381 + $0x7c] sm:$0xf]
      %v420 = vld [vmem:[%s381 + $0x80] sm:$0xf]
      %v421 = vld [vmem:[%s381 + $0x84] sm:$0xf]
      %v422 = vld [vmem:[%s381 + $0x88] sm:$0xf]
      %v423 = vld [vmem:[%s381 + $0x8c] sm:$0xf]
      %v424 = vld [vmem:[%s381 + $0x90] sm:$0xf]
      %v425 = vld [vmem:[%s381 + $0x94] sm:$0xf]
      %v426 = vld [vmem:[%s381 + $0x98] sm:$0xf]
      %v427 = vld [vmem:[%s381 + $0x9c] sm:$0xf]
      %v428 = vld [vmem:[%s381 + $0xa0] sm:$0xf]
      %v429 = vld [vmem:[%s381 + $0xa4] sm:$0xf]
      %v430 = vld [vmem:[%s381 + $0xa8] sm:$0xf]
      %v431 = vld [vmem:[%s381 + $0xac] sm:$0xf]
      %v432 = vld [vmem:[%s381 + $0xb0] sm:$0xf]
      %v433 = vld [vmem:[%s381 + $0xb4] sm:$0xf]
      %v434 = vld [vmem:[%s381 + $0xb8] sm:$0xf]
      %v435 = vld [vmem:[%s381 + $0xbc] sm:$0xf]
      %v436 = vld [vmem:[%s381 + $0xc0] sm:$0xf]
      %v437 = vld [vmem:[%s381 + $0xc4] sm:$0xf]
      %v438 = vld [vmem:[%s381 + $0xc8] sm:$0xf]
      %v439 = vld [vmem:[%s381 + $0xcc] sm:$0xf]
      %v440 = vld [vmem:[%s381 + $0xd0] sm:$0xf]
      %v441 = vld [vmem:[%s381 + $0xd4] sm:$0xf]
      %v442 = vld [vmem:[%s381 + $0xd8] sm:$0xf]
      %v443 = vld [vmem:[%s381 + $0xdc] sm:$0xf]
      %v444 = vld [vmem:[%s381 + $0xe0] sm:$0xf]
      %v445 = vld [vmem:[%s381 + $0xe4] sm:$0xf]
      %v446 = vld [vmem:[%s381 + $0xe8] sm:$0xf]
      %v447 = vld [vmem:[%s381 + $0xec] sm:$0xf]
      %v448 = vld [vmem:[%s381 + $0xf0] sm:$0xf]
      %v449 = vld [vmem:[%s381 + $0xf4] sm:$0xf]
      %v450 = vld [vmem:[%s381 + $0xf8] sm:$0xf]
      %v451 = vld [vmem:[%s381 + $0xfc] sm:$0xf]
      %v452 = vld [vmem:[%s381 + $0x100] sm:$0xf]
      %v453 = vld [vmem:[%s381 + $0x104] sm:$0xf]
      %v454 = vld [vmem:[%s381 + $0x108] sm:$0xf]
      %v455 = vld [vmem:[%s381 + $0x10c] sm:$0xf]
      %v456 = vld [vmem:[%s381 + $0x110] sm:$0xf]
      %v457 = vld [vmem:[%s381 + $0x114] sm:$0xf]
      %v458 = vld [vmem:[%s381 + $0x118] sm:$0xf]
      %v459 = vld [vmem:[%s381 + $0x11c] sm:$0xf]
      %v460 = vld [vmem:[%s381 + $0x120] sm:$0xf]
      %v461 = vld [vmem:[%s381 + $0x124] sm:$0xf]
      %v462 = vld [vmem:[%s381 + $0x128] sm:$0xf]
      %v463 = vld [vmem:[%s381 + $0x12c] sm:$0xf]
      %v464 = vld [vmem:[%s381 + $0x130] sm:$0xf]
      %v465 = vld [vmem:[%s381 + $0x134] sm:$0xf]
      %v466 = vld [vmem:[%s381 + $0x138] sm:$0xf]
      %v467 = vld [vmem:[%s381 + $0x13c] sm:$0xf]
      %v468 = vld [vmem:[%s381 + $0x140] sm:$0xf]
      %v469 = vld [vmem:[%s381 + $0x144] sm:$0xf]
      %v470 = vld [vmem:[%s381 + $0x148] sm:$0xf]
      %v471 = vld [vmem:[%s381 + $0x14c] sm:$0xf]
      %v472 = vld [vmem:[%s381 + $0x150] sm:$0xf]
      %v473 = vld [vmem:[%s381 + $0x154] sm:$0xf]
      %v474 = vld [vmem:[%s381 + $0x158] sm:$0xf]
      %v475 = vld [vmem:[%s381 + $0x15c] sm:$0xf]
      %v476 = vld [vmem:[%s381 + $0x160] sm:$0xf]
      %v477 = vld [vmem:[%s381 + $0x164] sm:$0xf]
      %v478 = vld [vmem:[%s381 + $0x168] sm:$0xf]
      %v479 = vld [vmem:[%s381 + $0x16c] sm:$0xf]
      %v480 = vld [vmem:[%s381 + $0x170] sm:$0xf]
      %v481 = vld [vmem:[%s381 + $0x174] sm:$0xf]
      %v482 = vld [vmem:[%s381 + $0x178] sm:$0xf]
      %v483 = vld [vmem:[%s381 + $0x17c] sm:$0xf]
      %v484 = vld [vmem:[%s381 + $0x180] sm:$0xf]
      %v485 = vld [vmem:[%s381 + $0x184] sm:$0xf]
      %v486 = vld [vmem:[%s1] sm:$0xf]
      %v487 = vld [vmem:[%s1 + $0x4] sm:$0xf]
      %v488 = vld [vmem:[%s1 + $0x8] sm:$0xf]
      %v489 = vld [vmem:[%s1 + $0xc] sm:$0xf]
      %v490 = vld [vmem:[%s1 + $0x10] sm:$0xf]
      %v491 = vld [vmem:[%s1 + $0x14] sm:$0xf]
      %v492 = vld [vmem:[%s1 + $0x18] sm:$0xf]
      %v493 = vld [vmem:[%s1 + $0x1c] sm:$0xf]
      %v494 = vld [vmem:[%s1 + $0x20] sm:$0xf]
      %v495 = vld [vmem:[%s1 + $0x24] sm:$0x3]
      %v594 = vunpack.c.l.b16 %v388
      %v595 = vunpack.c.l.b16 %v389
      %v596 = vunpack.c.l.b16 %v390
      %v597 = vunpack.c.l.b16 %v391
      %v598 = vunpack.c.l.b16 %v392
      %v599 = vunpack.c.l.b16 %v393
      %v600 = vunpack.c.l.b16 %v394
      %v601 = vunpack.c.l.b16 %v395
      %v602 = vunpack.c.l.b16 %v396
      %v603 = vunpack.c.l.b16 %v397
      %v604 = vunpack.c.l.b16 %v398
      %v605 = vunpack.c.l.b16 %v399
      %v606 = vunpack.c.l.b16 %v400
      %v607 = vunpack.c.l.b16 %v401
      %v608 = vunpack.c.l.b16 %v402
      %v609 = vunpack.c.l.b16 %v403
      %v610 = vunpack.c.l.b16 %v404
      %v611 = vunpack.c.l.b16 %v405
      %v612 = vunpack.c.l.b16 %v406
      %v613 = vunpack.c.l.b16 %v407
      %v614 = vunpack.c.l.b16 %v408
      %v615 = vunpack.c.l.b16 %v409
      %v616 = vunpack.c.l.b16 %v410
      %v617 = vunpack.c.l.b16 %v411
      %v618 = vunpack.c.l.b16 %v412
      %v619 = vunpack.c.l.b16 %v413
      %v620 = vunpack.c.l.b16 %v414
      %v621 = vunpack.c.l.b16 %v415
      %v622 = vunpack.c.l.b16 %v416
      %v623 = vunpack.c.l.b16 %v417
      %v624 = vunpack.c.l.b16 %v418
      %v625 = vunpack.c.l.b16 %v419
      %v626 = vunpack.c.l.b16 %v420
      %v627 = vunpack.c.l.b16 %v421
      %v628 = vunpack.c.l.b16 %v422
      %v629 = vunpack.c.l.b16 %v423
      %v630 = vunpack.c.l.b16 %v424
      %v631 = vunpack.c.l.b16 %v425
      %v632 = vunpack.c.l.b16 %v426
      %v633 = vunpack.c.l.b16 %v427
      %v634 = vunpack.c.l.b16 %v428
      %v635 = vunpack.c.l.b16 %v429
      %v636 = vunpack.c.l.b16 %v430
      %v637 = vunpack.c.l.b16 %v431
      %v638 = vunpack.c.l.b16 %v432
      %v639 = vunpack.c.l.b16 %v433
      %v640 = vunpack.c.l.b16 %v434
      %v641 = vunpack.c.l.b16 %v435
      %v642 = vunpack.c.l.b16 %v436
      %v643 = vunpack.c.l.b16 %v437
      %v644 = vunpack.c.l.b16 %v438
      %v645 = vunpack.c.l.b16 %v439
      %v646 = vunpack.c.l.b16 %v440
      %v647 = vunpack.c.l.b16 %v441
      %v648 = vunpack.c.l.b16 %v442
      %v649 = vunpack.c.l.b16 %v443
      %v650 = vunpack.c.l.b16 %v444
      %v651 = vunpack.c.l.b16 %v445
      %v652 = vunpack.c.l.b16 %v446
      %v653 = vunpack.c.l.b16 %v447
      %v654 = vunpack.c.l.b16 %v448
      %v655 = vunpack.c.l.b16 %v449
      %v656 = vunpack.c.l.b16 %v450
      %v657 = vunpack.c.l.b16 %v451
      %v658 = vunpack.c.l.b16 %v452
      %v659 = vunpack.c.l.b16 %v453
      %v660 = vunpack.c.l.b16 %v454
      %v661 = vunpack.c.l.b16 %v455
      %v662 = vunpack.c.l.b16 %v456
      %v663 = vunpack.c.l.b16 %v457
      %v664 = vunpack.c.l.b16 %v458
      %v665 = vunpack.c.l.b16 %v459
      %v666 = vunpack.c.l.b16 %v460
      %v667 = vunpack.c.l.b16 %v461
      %v668 = vunpack.c.l.b16 %v462
      %v669 = vunpack.c.l.b16 %v463
      %v670 = vunpack.c.l.b16 %v464
      %v671 = vunpack.c.l.b16 %v465
      %v672 = vunpack.c.l.b16 %v466
      %v673 = vunpack.c.l.b16 %v467
      %v674 = vunpack.c.l.b16 %v468
      %v675 = vunpack.c.l.b16 %v469
      %v676 = vunpack.c.l.b16 %v470
      %v677 = vunpack.c.l.b16 %v471
      %v678 = vunpack.c.l.b16 %v472
      %v679 = vunpack.c.l.b16 %v473
      %v680 = vunpack.c.l.b16 %v474
      %v681 = vunpack.c.l.b16 %v475
      %v682 = vunpack.c.l.b16 %v476
      %v683 = vunpack.c.l.b16 %v477
      %v684 = vunpack.c.l.b16 %v478
      %v685 = vunpack.c.l.b16 %v479
      %v686 = vunpack.c.l.b16 %v480
      %v687 = vunpack.c.l.b16 %v481
      %v688 = vunpack.c.l.b16 %v482
      %v689 = vunpack.c.l.b16 %v483
      %v690 = vunpack.c.l.b16 %v484
      %v691 = vunpack.c.l.b16 %v485
      %v692 = vpack.c.b16 %v595, %v594
      %v693 = vpack.c.b16 %v597, %v596
      %v694 = vpack.c.b16 %v599, %v598
      %v695 = vpack.c.b16 %v601, %v600
      %v696 = vpack.c.b16 %v603, %v602
      %v697 = vpack.c.b16 %v605, %v604
      %v698 = vpack.c.b16 %v607, %v606
      %v699 = vpack.c.b16 %v609, %v608
      %v700 = vpack.c.b16 %v611, %v610
      %v701 = vpack.c.b16 %v613, %v612
      %v702 = vpack.c.b16 %v615, %v614
      %v703 = vpack.c.b16 %v617, %v616
      %v704 = vpack.c.b16 %v619, %v618
      %v705 = vpack.c.b16 %v621, %v620
      %v706 = vpack.c.b16 %v623, %v622
      %v707 = vpack.c.b16 %v625, %v624
      %v708 = vpack.c.b16 %v627, %v626
      %v709 = vpack.c.b16 %v629, %v628
      %v710 = vpack.c.b16 %v631, %v630
      %v711 = vpack.c.b16 %v633, %v632
      %v712 = vpack.c.b16 %v635, %v634
      %v713 = vpack.c.b16 %v637, %v636
      %v714 = vpack.c.b16 %v639, %v638
      %v715 = vpack.c.b16 %v641, %v640
      %v716 = vpack.c.b16 %v643, %v642
      %v717 = vpack.c.b16 %v645, %v644
      %v718 = vpack.c.b16 %v647, %v646
      %v719 = vpack.c.b16 %v649, %v648
      %v720 = vpack.c.b16 %v651, %v650
      %v721 = vpack.c.b16 %v653, %v652
      %v722 = vpack.c.b16 %v655, %v654
      %v723 = vpack.c.b16 %v657, %v656
      %v724 = vpack.c.b16 %v659, %v658
      %v725 = vpack.c.b16 %v661, %v660
      %v726 = vpack.c.b16 %v663, %v662
      %v727 = vpack.c.b16 %v665, %v664
      %v728 = vpack.c.b16 %v667, %v666
      %v729 = vpack.c.b16 %v669, %v668
      %v730 = vpack.c.b16 %v671, %v670
      %v731 = vpack.c.b16 %v673, %v672
      %v732 = vpack.c.b16 %v675, %v674
      %v733 = vpack.c.b16 %v677, %v676
      %v734 = vpack.c.b16 %v679, %v678
      %v735 = vpack.c.b16 %v681, %v680
      %v736 = vpack.c.b16 %v683, %v682
      %v737 = vpack.c.b16 %v685, %v684
      %v738 = vpack.c.b16 %v687, %v686
      %v739 = vpack.c.b16 %v689, %v688
      %v740 = vpack.c.b16 %v691, %v690
      %v751 = vunpack.c.l.b16 %v486
      %v752 = vunpack.c.l.b16 %v487
      %v753 = vunpack.c.l.b16 %v488
      %v754 = vunpack.c.l.b16 %v489
      %v755 = vunpack.c.l.b16 %v490
      %v756 = vunpack.c.l.b16 %v491
      %v757 = vunpack.c.l.b16 %v492
      %v758 = vunpack.c.l.b16 %v493
      %v759 = vunpack.c.l.b16 %v494
      %v760 = vunpack.c.l.b16 %v495
      %v761 = vpack.c.b16 %v752, %v751
      %v762 = vpack.c.b16 %v754, %v753
      %v763 = vpack.c.b16 %v756, %v755
      %v764 = vpack.c.b16 %v758, %v757
      %v765 = vpack.c.b16 %v760, %v759
      %vm770 = vcmask 613376
      %v772 = vsel %vm770, %v692, 0
      %v775 = vsel %vm770, %v693, 0
      %v778 = vsel %vm770, %v694, 0
      %v781 = vsel %vm770, %v695, 0
      %v784 = vsel %vm770, %v696, 0
      %v787 = vsel %vm770, %v697, 0
      %v790 = vsel %vm770, %v698, 0
      %v793 = vsel %vm770, %v699, 0
      %v796 = vsel %vm770, %v700, 0
      %v799 = vsel %vm770, %v701, 0
      %v802 = vsel %vm770, %v702, 0
      %v805 = vsel %vm770, %v703, 0
      %v808 = vsel %vm770, %v704, 0
      %v811 = vsel %vm770, %v705, 0
      %v814 = vsel %vm770, %v706, 0
      %v817 = vsel %vm770, %v707, 0
      %v820 = vsel %vm770, %v708, 0
      %v823 = vsel %vm770, %v709, 0
      %v826 = vsel %vm770, %v710, 0
      %v829 = vsel %vm770, %v711, 0
      %v832 = vsel %vm770, %v712, 0
      %v835 = vsel %vm770, %v713, 0
      %v838 = vsel %vm770, %v714, 0
      %v841 = vsel %vm770, %v715, 0
      %v844 = vsel %vm770, %v716, 0
      %v847 = vsel %vm770, %v717, 0
      %v850 = vsel %vm770, %v718, 0
      %v853 = vsel %vm770, %v719, 0
      %v856 = vsel %vm770, %v720, 0
      %v859 = vsel %vm770, %v721, 0
      %v862 = vsel %vm770, %v722, 0
      %v865 = vsel %vm770, %v723, 0
      %v868 = vsel %vm770, %v724, 0
      %v871 = vsel %vm770, %v725, 0
      %v874 = vsel %vm770, %v726, 0
      %v877 = vsel %vm770, %v727, 0
      %v880 = vsel %vm770, %v728, 0
      %v883 = vsel %vm770, %v729, 0
      %v886 = vsel %vm770, %v730, 0
      %v889 = vsel %vm770, %v731, 0
      %v892 = vsel %vm770, %v732, 0
      %v895 = vsel %vm770, %v733, 0
      %v898 = vsel %vm770, %v734, 0
      %v901 = vsel %vm770, %v735, 0
      %v904 = vsel %vm770, %v736, 0
      %v907 = vsel %vm770, %v737, 0
      %v910 = vsel %vm770, %v738, 0
      %v913 = vsel %vm770, %v739, 0
      %v916 = vsel %vm770, %v740, 0
      %vm918 = vcmask 1044480
      %vm919 = vcmask 1045504
      %v920 = vsel %vm918, 4294967295, 65535
      %v921 = vsel %vm919, %v920, 0
      %v923 = vand.u32 %v765, %v921
      %925 = vmatprep.subr.bf16.mxu0 0
      %926 = vmatpush1.bf16.msra.mxu0 %v761
      %927 = vmatprep.subr.bf16.mxu0 0
      %928 = vmatpush1.bf16.msra.mxu0 %v762
      %929 = vmatprep.subr.bf16.mxu0 0
      %930 = vmatpush1.bf16.msra.mxu0 %v763
      %931 = vmatprep.subr.bf16.mxu0 0
      %932 = vmatpush1.bf16.msra.mxu0 %v764
      %933 = vmatprep.subr.bf16.mxu0 0
      %934 = vmatpush1.bf16.msra.mxu0 %v923
      %935 = vmatprep.subr.bf16.mxu0 0
      %936 = vmatpush1.bf16.msra.mxu0 0
      %937 = vmatprep.subr.bf16.mxu0 0
      %938 = vmatpush1.bf16.msra.mxu0 0
      %939 = vmatprep.subr.bf16.mxu0 0
      %940 = vmatpush1.bf16.msra.mxu0 0
      %941 = vmatprep.subr.bf16.mxu0 0
      %942 = vmatpush1.bf16.msra.mxu0 0
      %943 = vmatprep.subr.bf16.mxu0 0
      %944 = vmatpush1.bf16.msra.mxu0 0
      %945 = vmatprep.subr.bf16.mxu0 0
      %946 = vmatpush1.bf16.msra.mxu0 0
      %947 = vmatprep.subr.bf16.mxu0 0
      %948 = vmatpush1.bf16.msra.mxu0 0
      %949 = vmatprep.subr.bf16.mxu0 0
      %950 = vmatpush1.bf16.msra.mxu0 0
      %951 = vmatprep.subr.bf16.mxu0 0
      %952 = vmatpush1.bf16.msra.mxu0 0
      %953 = vmatprep.subr.bf16.mxu0 0
      %954 = vmatpush1.bf16.msra.mxu0 0
      %955 = vmatprep.subr.bf16.mxu0 0
      %956 = vmatpush1.bf16.msra.mxu0 0
      %957 = vmatprep.mubr.bf16.mxu0 0
      %958 = vmatmul.mubr.bf16.gmra.mrb[0].mxu0 %v772
      %v959 = vpop.f32.mrb[0].mxu0
      %v960 = vadd.f32 0.0, %v959
      %v961 = vpop.f32.mrb[0].mxu0
      %v962 = vpop.f32.mrb[0].mxu0
      %v963 = vadd.f32 0.0, %v962
      %v964 = vpop.f32.mrb[0].mxu0
      %965 = vmatprep.mubr.bf16.mxu0 0
      %966 = vmatmul.mubr.bf16.gmra.mrb[0].mxu0 %v775
      %v967 = vpop.f32.mrb[0].mxu0
      %v968 = vadd.f32 0.0, %v967
      %v969 = vpop.f32.mrb[0].mxu0
      %v970 = vpop.f32.mrb[0].mxu0
      %v971 = vadd.f32 0.0, %v970
      %v972 = vpop.f32.mrb[0].mxu0
      %973 = vmatprep.mubr.bf16.mxu0 0
      %974 = vmatmul.mubr.bf16.gmra.mrb[0].mxu0 %v778
      %v975 = vpop.f32.mrb[0].mxu0
      %v976 = vadd.f32 0.0, %v975
      %v977 = vpop.f32.mrb[0].mxu0
      %v978 = vpop.f32.mrb[0].mxu0
      %v979 = vadd.f32 0.0, %v978
      %v980 = vpop.f32.mrb[0].mxu0
      %981 = vmatprep.mubr.bf16.mxu0 0
      %982 = vmatmul.mubr.bf16.gmra.mrb[0].mxu0 %v781
      %v983 = vpop.f32.mrb[0].mxu0
      %v984 = vadd.f32 0.0, %v983
      %v985 = vpop.f32.mrb[0].mxu0
      %v986 = vpop.f32.mrb[0].mxu0
      %v987 = vadd.f32 0.0, %v986
      %v988 = vpop.f32.mrb[0].mxu0
      %989 = vmatprep.mubr.bf16.mxu0 0
      %990 = vmatmul.mubr.bf16.gmra.mrb[0].mxu0 %v784
      %v991 = vpop.f32.mrb[0].mxu0
      %v992 = vadd.f32 0.0, %v991
      %v993 = vpop.f32.mrb[0].mxu0
      %v994 = vpop.f32.mrb[0].mxu0
      %v995 = vadd.f32 0.0, %v994
      %v996 = vpop.f32.mrb[0].mxu0
      %997 = vmatprep.mubr.bf16.mxu0 0
      %998 = vmatmul.mubr.bf16.gmra.mrb[0].mxu0 %v787
      %v999 = vpop.f32.mrb[0].mxu0
      %v1000 = vadd.f32 0.0, %v999
      %v1001 = vpop.f32.mrb[0].mxu0
      %v1002 = vpop.f32.mrb[0].mxu0
      %v1003 = vadd.f32 0.0, %v1002
      %v1004 = vpop.f32.mrb[0].mxu0
      %1005 = vmatprep.mubr.bf16.mxu0 0
      %1006 = vmatmul.mubr.bf16.gmra.mrb[0].mxu0 %v790
      %v1007 = vpop.f32.mrb[0].mxu0
      %v1008 = vadd.f32 0.0, %v1007
      %v1009 = vpop.f32.mrb[0].mxu0
      %v1010 = vpop.f32.mrb[0].mxu0
      %v1011 = vadd.f32 0.0, %v1010
      %v1012 = vpop.f32.mrb[0].mxu0
      %1013 = vmatprep.mubr.bf16.mxu0 0
      %1014 = vmatmul.mubr.bf16.gmra.mrb[0].mxu0 %v793
      %v1015 = vpop.f32.mrb[0].mxu0
      %v1016 = vadd.f32 0.0, %v1015
      %v1017 = vpop.f32.mrb[0].mxu0
      %v1018 = vpop.f32.mrb[0].mxu0
      %v1019 = vadd.f32 0.0, %v1018
      %v1020 = vpop.f32.mrb[0].mxu0
      %1021 = vmatprep.mubr.bf16.mxu0 0
      %1022 = vmatmul.mubr.bf16.gmra.mrb[0].mxu0 %v796
      %v1023 = vpop.f32.mrb[0].mxu0
      %v1024 = vadd.f32 0.0, %v1023
      %v1025 = vpop.f32.mrb[0].mxu0
      %v1026 = vpop.f32.mrb[0].mxu0
      %v1027 = vadd.f32 0.0, %v1026
      %v1028 = vpop.f32.mrb[0].mxu0
      %1029 = vmatprep.mubr.bf16.mxu0 0
      %1030 = vmatmul.mubr.bf16.gmra.mrb[0].mxu0 %v799
      %v1031 = vpop.f32.mrb[0].mxu0
      %v1032 = vadd.f32 0.0, %v1031
      %v1033 = vpop.f32.mrb[0].mxu0
      %v1034 = vpop.f32.mrb[0].mxu0
      %v1035 = vadd.f32 0.0, %v1034
      %v1036 = vpop.f32.mrb[0].mxu0
      %1037 = vmatprep.mubr.bf16.mxu0 0
      %1038 = vmatmul.mubr.bf16.gmra.mrb[0].mxu0 %v802
      %v1039 = vpop.f32.mrb[0].mxu0
      %v1040 = vadd.f32 0.0, %v1039
      %v1041 = vpop.f32.mrb[0].mxu0
      %v1042 = vpop.f32.mrb[0].mxu0
      %v1043 = vadd.f32 0.0, %v1042
      %v1044 = vpop.f32.mrb[0].mxu0
      %1045 = vmatprep.mubr.bf16.mxu0 0
      %1046 = vmatmul.mubr.bf16.gmra.mrb[0].mxu0 %v805
      %v1047 = vpop.f32.mrb[0].mxu0
      %v1048 = vadd.f32 0.0, %v1047
      %v1049 = vpop.f32.mrb[0].mxu0
      %v1050 = vpop.f32.mrb[0].mxu0
      %v1051 = vadd.f32 0.0, %v1050
      %v1052 = vpop.f32.mrb[0].mxu0
      %1053 = vmatprep.mubr.bf16.mxu0 0
      %1054 = vmatmul.mubr.bf16.gmra.mrb[0].mxu0 %v808
      %v1055 = vpop.f32.mrb[0].mxu0
      %v1056 = vadd.f32 0.0, %v1055
      %v1057 = vpop.f32.mrb[0].mxu0
      %v1058 = vpop.f32.mrb[0].mxu0
      %v1059 = vadd.f32 0.0, %v1058
      %v1060 = vpop.f32.mrb[0].mxu0
      %1061 = vmatprep.mubr.bf16.mxu0 0
      %1062 = vmatmul.mubr.bf16.gmra.mrb[0].mxu0 %v811
      %v1063 = vpop.f32.mrb[0].mxu0
      %v1064 = vadd.f32 0.0, %v1063
      %v1065 = vpop.f32.mrb[0].mxu0
      %v1066 = vpop.f32.mrb[0].mxu0
      %v1067 = vadd.f32 0.0, %v1066
      %v1068 = vpop.f32.mrb[0].mxu0
      %1069 = vmatprep.mubr.bf16.mxu0 0
      %1070 = vmatmul.mubr.bf16.gmra.mrb[0].mxu0 %v814
      %v1071 = vpop.f32.mrb[0].mxu0
      %v1072 = vadd.f32 0.0, %v1071
      %v1073 = vpop.f32.mrb[0].mxu0
      %v1074 = vpop.f32.mrb[0].mxu0
      %v1075 = vadd.f32 0.0, %v1074
      %v1076 = vpop.f32.mrb[0].mxu0
      %1077 = vmatprep.mubr.bf16.mxu0 0
      %1078 = vmatmul.mubr.bf16.gmra.mrb[0].mxu0 %v817
      %v1079 = vpop.f32.mrb[0].mxu0
      %v1080 = vadd.f32 0.0, %v1079
      %v1081 = vpop.f32.mrb[0].mxu0
      %v1082 = vpop.f32.mrb[0].mxu0
      %v1083 = vadd.f32 0.0, %v1082
      %v1084 = vpop.f32.mrb[0].mxu0
      %1085 = vmatprep.mubr.bf16.mxu0 0
      %1086 = vmatmul.mubr.bf16.gmra.mrb[0].mxu0 %v820
      %v1087 = vpop.f32.mrb[0].mxu0
      %v1088 = vadd.f32 0.0, %v1087
      %v1089 = vpop.f32.mrb[0].mxu0
      %v1090 = vpop.f32.mrb[0].mxu0
      %v1091 = vadd.f32 0.0, %v1090
      %v1092 = vpop.f32.mrb[0].mxu0
      %1093 = vmatprep.mubr.bf16.mxu0 0
      %1094 = vmatmul.mubr.bf16.gmra.mrb[0].mxu0 %v823
      %v1095 = vpop.f32.mrb[0].mxu0
      %v1096 = vadd.f32 0.0, %v1095
      %v1097 = vpop.f32.mrb[0].mxu0
      %v1098 = vpop.f32.mrb[0].mxu0
      %v1099 = vadd.f32 0.0, %v1098
      %v1100 = vpop.f32.mrb[0].mxu0
      %1101 = vmatprep.mubr.bf16.mxu0 0
      %1102 = vmatmul.mubr.bf16.gmra.mrb[0].mxu0 %v826
      %v1103 = vpop.f32.mrb[0].mxu0
      %v1104 = vadd.f32 0.0, %v1103
      %v1105 = vpop.f32.mrb[0].mxu0
      %v1106 = vpop.f32.mrb[0].mxu0
      %v1107 = vadd.f32 0.0, %v1106
      %v1108 = vpop.f32.mrb[0].mxu0
      %1109 = vmatprep.mubr.bf16.mxu0 0
      %1110 = vmatmul.mubr.bf16.gmra.mrb[0].mxu0 %v829
      %v1111 = vpop.f32.mrb[0].mxu0
      %v1112 = vadd.f32 0.0, %v1111
      %v1113 = vpop.f32.mrb[0].mxu0
      %v1114 = vpop.f32.mrb[0].mxu0
      %v1115 = vadd.f32 0.0, %v1114
      %v1116 = vpop.f32.mrb[0].mxu0
      %1117 = vmatprep.mubr.bf16.mxu0 0
      %1118 = vmatmul.mubr.bf16.gmra.mrb[0].mxu0 %v832
      %v1119 = vpop.f32.mrb[0].mxu0
      %v1120 = vadd.f32 0.0, %v1119
      %v1121 = vpop.f32.mrb[0].mxu0
      %v1122 = vpop.f32.mrb[0].mxu0
      %v1123 = vadd.f32 0.0, %v1122
      %v1124 = vpop.f32.mrb[0].mxu0
      %1125 = vmatprep.mubr.bf16.mxu0 0
      %1126 = vmatmul.mubr.bf16.gmra.mrb[0].mxu0 %v835
      %v1127 = vpop.f32.mrb[0].mxu0
      %v1128 = vadd.f32 0.0, %v1127
      %v1129 = vpop.f32.mrb[0].mxu0
      %v1130 = vpop.f32.mrb[0].mxu0
      %v1131 = vadd.f32 0.0, %v1130
      %v1132 = vpop.f32.mrb[0].mxu0
      %1133 = vmatprep.mubr.bf16.mxu0 0
      %1134 = vmatmul.mubr.bf16.gmra.mrb[0].mxu0 %v838
      %v1135 = vpop.f32.mrb[0].mxu0
      %v1136 = vadd.f32 0.0, %v1135
      %v1137 = vpop.f32.mrb[0].mxu0
      %v1138 = vpop.f32.mrb[0].mxu0
      %v1139 = vadd.f32 0.0, %v1138
      %v1140 = vpop.f32.mrb[0].mxu0
      %1141 = vmatprep.mubr.bf16.mxu0 0
      %1142 = vmatmul.mubr.bf16.gmra.mrb[0].mxu0 %v841
      %v1143 = vpop.f32.mrb[0].mxu0
      %v1144 = vadd.f32 0.0, %v1143
      %v1145 = vpop.f32.mrb[0].mxu0
      %v1146 = vpop.f32.mrb[0].mxu0
      %v1147 = vadd.f32 0.0, %v1146
      %v1148 = vpop.f32.mrb[0].mxu0
      %1149 = vmatprep.mubr.bf16.mxu0 0
      %1150 = vmatmul.mubr.bf16.gmra.mrb[0].mxu0 %v844
      %v1151 = vpop.f32.mrb[0].mxu0
      %v1152 = vadd.f32 0.0, %v1151
      %v1153 = vpop.f32.mrb[0].mxu0
      %v1154 = vpop.f32.mrb[0].mxu0
      %v1155 = vadd.f32 0.0, %v1154
      %v1156 = vpop.f32.mrb[0].mxu0
      %1157 = vmatprep.mubr.bf16.mxu0 0
      %1158 = vmatmul.mubr.bf16.gmra.mrb[0].mxu0 %v847
      %v1159 = vpop.f32.mrb[0].mxu0
      %v1160 = vadd.f32 0.0, %v1159
      %v1161 = vpop.f32.mrb[0].mxu0
      %v1162 = vpop.f32.mrb[0].mxu0
      %v1163 = vadd.f32 0.0, %v1162
      %v1164 = vpop.f32.mrb[0].mxu0
      %1165 = vmatprep.mubr.bf16.mxu0 0
      %1166 = vmatmul.mubr.bf16.gmra.mrb[0].mxu0 %v850
      %v1167 = vpop.f32.mrb[0].mxu0
      %v1168 = vadd.f32 0.0, %v1167
      %v1169 = vpop.f32.mrb[0].mxu0
      %v1170 = vpop.f32.mrb[0].mxu0
      %v1171 = vadd.f32 0.0, %v1170
      %v1172 = vpop.f32.mrb[0].mxu0
      %1173 = vmatprep.mubr.bf16.mxu0 0
      %1174 = vmatmul.mubr.bf16.gmra.mrb[0].mxu0 %v853
      %v1175 = vpop.f32.mrb[0].mxu0
      %v1176 = vadd.f32 0.0, %v1175
      %v1177 = vpop.f32.mrb[0].mxu0
      %v1178 = vpop.f32.mrb[0].mxu0
      %v1179 = vadd.f32 0.0, %v1178
      %v1180 = vpop.f32.mrb[0].mxu0
      %1181 = vmatprep.mubr.bf16.mxu0 0
      %1182 = vmatmul.mubr.bf16.gmra.mrb[0].mxu0 %v856
      %v1183 = vpop.f32.mrb[0].mxu0
      %v1184 = vadd.f32 0.0, %v1183
      %v1185 = vpop.f32.mrb[0].mxu0
      %v1186 = vpop.f32.mrb[0].mxu0
      %v1187 = vadd.f32 0.0, %v1186
      %v1188 = vpop.f32.mrb[0].mxu0
      %1189 = vmatprep.mubr.bf16.mxu0 0
      %1190 = vmatmul.mubr.bf16.gmra.mrb[0].mxu0 %v859
      %v1191 = vpop.f32.mrb[0].mxu0
      %v1192 = vadd.f32 0.0, %v1191
      %v1193 = vpop.f32.mrb[0].mxu0
      %v1194 = vpop.f32.mrb[0].mxu0
      %v1195 = vadd.f32 0.0, %v1194
      %v1196 = vpop.f32.mrb[0].mxu0
      %1197 = vmatprep.mubr.bf16.mxu0 0
      %1198 = vmatmul.mubr.bf16.gmra.mrb[0].mxu0 %v862
      %v1199 = vpop.f32.mrb[0].mxu0
      %v1200 = vadd.f32 0.0, %v1199
      %v1201 = vpop.f32.mrb[0].mxu0
      %v1202 = vpop.f32.mrb[0].mxu0
      %v1203 = vadd.f32 0.0, %v1202
      %v1204 = vpop.f32.mrb[0].mxu0
      %1205 = vmatprep.mubr.bf16.mxu0 0
      %1206 = vmatmul.mubr.bf16.gmra.mrb[0].mxu0 %v865
      %v1207 = vpop.f32.mrb[0].mxu0
      %v1208 = vadd.f32 0.0, %v1207
      %v1209 = vpop.f32.mrb[0].mxu0
      %v1210 = vpop.f32.mrb[0].mxu0
      %v1211 = vadd.f32 0.0, %v1210
      %v1212 = vpop.f32.mrb[0].mxu0
      %1213 = vmatprep.mubr.bf16.mxu0 0
      %1214 = vmatmul.mubr.bf16.gmra.mrb[0].mxu0 %v868
      %v1215 = vpop.f32.mrb[0].mxu0
      %v1216 = vadd.f32 0.0, %v1215
      %v1217 = vpop.f32.mrb[0].mxu0
      %v1218 = vpop.f32.mrb[0].mxu0
      %v1219 = vadd.f32 0.0, %v1218
      %v1220 = vpop.f32.mrb[0].mxu0
      %1221 = vmatprep.mubr.bf16.mxu0 0
      %1222 = vmatmul.mubr.bf16.gmra.mrb[0].mxu0 %v871
      %v1223 = vpop.f32.mrb[0].mxu0
      %v1224 = vadd.f32 0.0, %v1223
      %v1225 = vpop.f32.mrb[0].mxu0
      %v1226 = vpop.f32.mrb[0].mxu0
      %v1227 = vadd.f32 0.0, %v1226
      %v1228 = vpop.f32.mrb[0].mxu0
      %1229 = vmatprep.mubr.bf16.mxu0 0
      %1230 = vmatmul.mubr.bf16.gmra.mrb[0].mxu0 %v874
      %v1231 = vpop.f32.mrb[0].mxu0
      %v1232 = vadd.f32 0.0, %v1231
      %v1233 = vpop.f32.mrb[0].mxu0
      %v1234 = vpop.f32.mrb[0].mxu0
      %v1235 = vadd.f32 0.0, %v1234
      %v1236 = vpop.f32.mrb[0].mxu0
      %1237 = vmatprep.mubr.bf16.mxu0 0
      %1238 = vmatmul.mubr.bf16.gmra.mrb[0].mxu0 %v877
      %v1239 = vpop.f32.mrb[0].mxu0
      %v1240 = vadd.f32 0.0, %v1239
      %v1241 = vpop.f32.mrb[0].mxu0
      %v1242 = vpop.f32.mrb[0].mxu0
      %v1243 = vadd.f32 0.0, %v1242
      %v1244 = vpop.f32.mrb[0].mxu0
      %1245 = vmatprep.mubr.bf16.mxu0 0
      %1246 = vmatmul.mubr.bf16.gmra.mrb[0].mxu0 %v880
      %v1247 = vpop.f32.mrb[0].mxu0
      %v1248 = vadd.f32 0.0, %v1247
      %v1249 = vpop.f32.mrb[0].mxu0
      %v1250 = vpop.f32.mrb[0].mxu0
      %v1251 = vadd.f32 0.0, %v1250
      %v1252 = vpop.f32.mrb[0].mxu0
      %1253 = vmatprep.mubr.bf16.mxu0 0
      %1254 = vmatmul.mubr.bf16.gmra.mrb[0].mxu0 %v883
      %v1255 = vpop.f32.mrb[0].mxu0
      %v1256 = vadd.f32 0.0, %v1255
      %v1257 = vpop.f32.mrb[0].mxu0
      %v1258 = vpop.f32.mrb[0].mxu0
      %v1259 = vadd.f32 0.0, %v1258
      %v1260 = vpop.f32.mrb[0].mxu0
      %1261 = vmatprep.mubr.bf16.mxu0 0
      %1262 = vmatmul.mubr.bf16.gmra.mrb[0].mxu0 %v886
      %v1263 = vpop.f32.mrb[0].mxu0
      %v1264 = vadd.f32 0.0, %v1263
      %v1265 = vpop.f32.mrb[0].mxu0
      %v1266 = vpop.f32.mrb[0].mxu0
      %v1267 = vadd.f32 0.0, %v1266
      %v1268 = vpop.f32.mrb[0].mxu0
      %1269 = vmatprep.mubr.bf16.mxu0 0
      %1270 = vmatmul.mubr.bf16.gmra.mrb[0].mxu0 %v889
      %v1271 = vpop.f32.mrb[0].mxu0
      %v1272 = vadd.f32 0.0, %v1271
      %v1273 = vpop.f32.mrb[0].mxu0
      %v1274 = vpop.f32.mrb[0].mxu0
      %v1275 = vadd.f32 0.0, %v1274
      %v1276 = vpop.f32.mrb[0].mxu0
      %1277 = vmatprep.mubr.bf16.mxu0 0
      %1278 = vmatmul.mubr.bf16.gmra.mrb[0].mxu0 %v892
      %v1279 = vpop.f32.mrb[0].mxu0
      %v1280 = vadd.f32 0.0, %v1279
      %v1281 = vpop.f32.mrb[0].mxu0
      %v1282 = vpop.f32.mrb[0].mxu0
      %v1283 = vadd.f32 0.0, %v1282
      %v1284 = vpop.f32.mrb[0].mxu0
      %1285 = vmatprep.mubr.bf16.mxu0 0
      %1286 = vmatmul.mubr.bf16.gmra.mrb[0].mxu0 %v895
      %v1287 = vpop.f32.mrb[0].mxu0
      %v1288 = vadd.f32 0.0, %v1287
      %v1289 = vpop.f32.mrb[0].mxu0
      %v1290 = vpop.f32.mrb[0].mxu0
      %v1291 = vadd.f32 0.0, %v1290
      %v1292 = vpop.f32.mrb[0].mxu0
      %1293 = vmatprep.mubr.bf16.mxu0 0
      %1294 = vmatmul.mubr.bf16.gmra.mrb[0].mxu0 %v898
      %v1295 = vpop.f32.mrb[0].mxu0
      %v1296 = vadd.f32 0.0, %v1295
      %v1297 = vpop.f32.mrb[0].mxu0
      %v1298 = vpop.f32.mrb[0].mxu0
      %v1299 = vadd.f32 0.0, %v1298
      %v1300 = vpop.f32.mrb[0].mxu0
      %1301 = vmatprep.mubr.bf16.mxu0 0
      %1302 = vmatmul.mubr.bf16.gmra.mrb[0].mxu0 %v901
      %v1303 = vpop.f32.mrb[0].mxu0
      %v1304 = vadd.f32 0.0, %v1303
      %v1305 = vpop.f32.mrb[0].mxu0
      %v1306 = vpop.f32.mrb[0].mxu0
      %v1307 = vadd.f32 0.0, %v1306
      %v1308 = vpop.f32.mrb[0].mxu0
      %1309 = vmatprep.mubr.bf16.mxu0 0
      %1310 = vmatmul.mubr.bf16.gmra.mrb[0].mxu0 %v904
      %v1311 = vpop.f32.mrb[0].mxu0
      %v1312 = vadd.f32 0.0, %v1311
      %v1313 = vpop.f32.mrb[0].mxu0
      %v1314 = vpop.f32.mrb[0].mxu0
      %v1315 = vadd.f32 0.0, %v1314
      %v1316 = vpop.f32.mrb[0].mxu0
      %1317 = vmatprep.mubr.bf16.mxu0 0
      %1318 = vmatmul.mubr.bf16.gmra.mrb[0].mxu0 %v907
      %v1319 = vpop.f32.mrb[0].mxu0
      %v1320 = vadd.f32 0.0, %v1319
      %v1321 = vpop.f32.mrb[0].mxu0
      %v1322 = vpop.f32.mrb[0].mxu0
      %v1323 = vadd.f32 0.0, %v1322
      %v1324 = vpop.f32.mrb[0].mxu0
      %1325 = vmatprep.mubr.bf16.mxu0 0
      %1326 = vmatmul.mubr.bf16.gmra.mrb[0].mxu0 %v910
      %v1327 = vpop.f32.mrb[0].mxu0
      %v1328 = vadd.f32 0.0, %v1327
      %v1329 = vpop.f32.mrb[0].mxu0
      %v1330 = vpop.f32.mrb[0].mxu0
      %v1331 = vadd.f32 0.0, %v1330
      %v1332 = vpop.f32.mrb[0].mxu0
      %1333 = vmatprep.mubr.bf16.mxu0 0
      %1334 = vmatmul.mubr.bf16.gmra.mrb[0].mxu0 %v913
      %v1335 = vpop.f32.mrb[0].mxu0
      %v1336 = vadd.f32 0.0, %v1335
      %v1337 = vpop.f32.mrb[0].mxu0
      %v1338 = vpop.f32.mrb[0].mxu0
      %v1339 = vadd.f32 0.0, %v1338
      %v1340 = vpop.f32.mrb[0].mxu0
      %1341 = vmatprep.mubr.bf16.mxu0 0
      %1342 = vmatmul.mubr.bf16.gmra.mrb[0].mxu0 %v916
      %v1343 = vpop.f32.mrb[0].mxu0
      %v1344 = vadd.f32 0.0, %v1343
      %v1345 = vpop.f32.mrb[0].mxu0
      %v1346 = vpop.f32.mrb[0].mxu0
      %v1347 = vadd.f32 0.0, %v1346
      %v1348 = vpop.f32.mrb[0].mxu0
      %1349 = vdwg.mxu0
      %1350 = vst [vmem:[#allocation2] sm:$0xff] %v960
      %1351 = vst [vmem:[#allocation2 + $0x8] sm:$0xff] %v963
      %1352 = vst [vmem:[#allocation2 + $0x10] sm:$0xff] %v968
      %1353 = vst [vmem:[#allocation2 + $0x18] sm:$0xff] %v971
      %1354 = vst [vmem:[#allocation2 + $0x20] sm:$0xff] %v976
      %1355 = vst [vmem:[#allocation2 + $0x28] sm:$0xff] %v979
      %1356 = vst [vmem:[#allocation2 + $0x30] sm:$0xff] %v984
      %1357 = vst [vmem:[#allocation2 + $0x38] sm:$0xff] %v987
      %1358 = vst [vmem:[#allocation2 + $0x40] sm:$0xff] %v992
      %1359 = vst [vmem:[#allocation2 + $0x48] sm:$0xff] %v995
      %1360 = vst [vmem:[#allocation2 + $0x50] sm:$0xff] %v1000
      %1361 = vst [vmem:[#allocation2 + $0x58] sm:$0xff] %v1003
      %1362 = vst [vmem:[#allocation2 + $0x60] sm:$0xff] %v1008
      %1363 = vst [vmem:[#allocation2 + $0x68] sm:$0xff] %v1011
      %1364 = vst [vmem:[#allocation2 + $0x70] sm:$0xff] %v1016
      %1365 = vst [vmem:[#allocation2 + $0x78] sm:$0xff] %v1019
      %1366 = vst [vmem:[#allocation2 + $0x80] sm:$0xff] %v1024
      %1367 = vst [vmem:[#allocation2 + $0x88] sm:$0xff] %v1027
      %1368 = vst [vmem:[#allocation2 + $0x90] sm:$0xff] %v1032
      %1369 = vst [vmem:[#allocation2 + $0x98] sm:$0xff] %v1035
      %1370 = vst [vmem:[#allocation2 + $0xa0] sm:$0xff] %v1040
      %1371 = vst [vmem:[#allocation2 + $0xa8] sm:$0xff] %v1043
      %1372 = vst [vmem:[#allocation2 + $0xb0] sm:$0xff] %v1048
      %1373 = vst [vmem:[#allocation2 + $0xb8] sm:$0xff] %v1051
      %1374 = vst [vmem:[#allocation2 + $0xc0] sm:$0xff] %v1056
      %1375 = vst [vmem:[#allocation2 + $0xc8] sm:$0xff] %v1059
      %1376 = vst [vmem:[#allocation2 + $0xd0] sm:$0xff] %v1064
      %1377 = vst [vmem:[#allocation2 + $0xd8] sm:$0xff] %v1067
      %1378 = vst [vmem:[#allocation2 + $0xe0] sm:$0xff] %v1072
      %1379 = vst [vmem:[#allocation2 + $0xe8] sm:$0xff] %v1075
      %1380 = vst [vmem:[#allocation2 + $0xf0] sm:$0xff] %v1080
      %1381 = vst [vmem:[#allocation2 + $0xf8] sm:$0xff] %v1083
      %1382 = vst [vmem:[#allocation2 + $0x100] sm:$0xff] %v1088
      %1383 = vst [vmem:[#allocation2 + $0x108] sm:$0xff] %v1091
      %1384 = vst [vmem:[#allocation2 + $0x110] sm:$0xff] %v1096
      %1385 = vst [vmem:[#allocation2 + $0x118] sm:$0xff] %v1099
      %1386 = vst [vmem:[#allocation2 + $0x120] sm:$0xff] %v1104
      %1387 = vst [vmem:[#allocation2 + $0x128] sm:$0xff] %v1107
      %1388 = vst [vmem:[#allocation2 + $0x130] sm:$0xff] %v1112
      %1389 = vst [vmem:[#allocation2 + $0x138] sm:$0xff] %v1115
      %1390 = vst [vmem:[#allocation2 + $0x140] sm:$0xff] %v1120
      %1391 = vst [vmem:[#allocation2 + $0x148] sm:$0xff] %v1123
      %1392 = vst [vmem:[#allocation2 + $0x150] sm:$0xff] %v1128
      %1393 = vst [vmem:[#allocation2 + $0x158] sm:$0xff] %v1131
      %1394 = vst [vmem:[#allocation2 + $0x160] sm:$0xff] %v1136
      %1395 = vst [vmem:[#allocation2 + $0x168] sm:$0xff] %v1139
      %1396 = vst [vmem:[#allocation2 + $0x170] sm:$0xff] %v1144
      %1397 = vst [vmem:[#allocation2 + $0x178] sm:$0xff] %v1147
      %1398 = vst [vmem:[#allocation2 + $0x180] sm:$0xff] %v1152
      %1399 = vst [vmem:[#allocation2 + $0x188] sm:$0xff] %v1155
      %1400 = vst [vmem:[#allocation2 + $0x190] sm:$0xff] %v1160
      %1401 = vst [vmem:[#allocation2 + $0x198] sm:$0xff] %v1163
      %1402 = vst [vmem:[#allocation2 + $0x1a0] sm:$0xff] %v1168
      %1403 = vst [vmem:[#allocation2 + $0x1a8] sm:$0xff] %v1171
      %1404 = vst [vmem:[#allocation2 + $0x1b0] sm:$0xff] %v1176
      %1405 = vst [vmem:[#allocation2 + $0x1b8] sm:$0xff] %v1179
      %1406 = vst [vmem:[#allocation2 + $0x1c0] sm:$0xff] %v1184
      %1407 = vst [vmem:[#allocation2 + $0x1c8] sm:$0xff] %v1187
      %1408 = vst [vmem:[#allocation2 + $0x1d0] sm:$0xff] %v1192
      %1409 = vst [vmem:[#allocation2 + $0x1d8] sm:$0xff] %v1195
      %1410 = vst [vmem:[#allocation2 + $0x1e0] sm:$0xff] %v1200
      %1411 = vst [vmem:[#allocation2 + $0x1e8] sm:$0xff] %v1203
      %1412 = vst [vmem:[#allocation2 + $0x1f0] sm:$0xff] %v1208
      %1413 = vst [vmem:[#allocation2 + $0x1f8] sm:$0xff] %v1211
      %1414 = vst [vmem:[#allocation2 + $0x200] sm:$0xff] %v1216
      %1415 = vst [vmem:[#allocation2 + $0x208] sm:$0xff] %v1219
      %1416 = vst [vmem:[#allocation2 + $0x210] sm:$0xff] %v1224
      %1417 = vst [vmem:[#allocation2 + $0x218] sm:$0xff] %v1227
      %1418 = vst [vmem:[#allocation2 + $0x220] sm:$0xff] %v1232
      %1419 = vst [vmem:[#allocation2 + $0x228] sm:$0xff] %v1235
      %1420 = vst [vmem:[#allocation2 + $0x230] sm:$0xff] %v1240
      %1421 = vst [vmem:[#allocation2 + $0x238] sm:$0xff] %v1243
      %1422 = vst [vmem:[#allocation2 + $0x240] sm:$0xff] %v1248
      %1423 = vst [vmem:[#allocation2 + $0x248] sm:$0xff] %v1251
      %1424 = vst [vmem:[#allocation2 + $0x250] sm:$0xff] %v1256
      %1425 = vst [vmem:[#allocation2 + $0x258] sm:$0xff] %v1259
      %1426 = vst [vmem:[#allocation2 + $0x260] sm:$0xff] %v1264
      %1427 = vst [vmem:[#allocation2 + $0x268] sm:$0xff] %v1267
      %1428 = vst [vmem:[#allocation2 + $0x270] sm:$0xff] %v1272
      %1429 = vst [vmem:[#allocation2 + $0x278] sm:$0xff] %v1275
      %1430 = vst [vmem:[#allocation2 + $0x280] sm:$0xff] %v1280
      %1431 = vst [vmem:[#allocation2 + $0x288] sm:$0xff] %v1283
      %1432 = vst [vmem:[#allocation2 + $0x290] sm:$0xff] %v1288
      %1433 = vst [vmem:[#allocation2 + $0x298] sm:$0xff] %v1291
      %1434 = vst [vmem:[#allocation2 + $0x2a0] sm:$0xff] %v1296
      %1435 = vst [vmem:[#allocation2 + $0x2a8] sm:$0xff] %v1299
      %1436 = vst [vmem:[#allocation2 + $0x2b0] sm:$0xff] %v1304
      %1437 = vst [vmem:[#allocation2 + $0x2b8] sm:$0xff] %v1307
      %1438 = vst [vmem:[#allocation2 + $0x2c0] sm:$0xff] %v1312
      %1439 = vst [vmem:[#allocation2 + $0x2c8] sm:$0xff] %v1315
      %1440 = vst [vmem:[#allocation2 + $0x2d0] sm:$0xff] %v1320
      %1441 = vst [vmem:[#allocation2 + $0x2d8] sm:$0xff] %v1323
      %1442 = vst [vmem:[#allocation2 + $0x2e0] sm:$0xff] %v1328
      %1443 = vst [vmem:[#allocation2 + $0x2e8] sm:$0xff] %v1331
      %1444 = vst [vmem:[#allocation2 + $0x2f0] sm:$0xff] %v1336
      %1445 = vst [vmem:[#allocation2 + $0x2f8] sm:$0xff] %v1339
      %1446 = vst [vmem:[#allocation2 + $0x300] sm:$0xff] %v1344
      %1447 = vst [vmem:[#allocation2 + $0x308] sm:$0xff] %v1347
      %1448 = vst [vmem:[#allocation6] sm:$0xff] 0
      %1449 = vst [vmem:[#allocation6 + $0x8] sm:$0xff] 0
      %v1450 = vld [vmem:[#allocation2] sm:$0xff]
      %v1451 = vld [vmem:[#allocation2 + $0x8] sm:$0xff]
      %v1452 = vld [vmem:[#allocation2 + $0x10] sm:$0xff]
      %v1453 = vld [vmem:[#allocation2 + $0x18] sm:$0xff]
      %v1454 = vld [vmem:[#allocation2 + $0x20] sm:$0xff]
      %v1455 = vld [vmem:[#allocation2 + $0x28] sm:$0xff]
      %v1456 = vld [vmem:[#allocation2 + $0x30] sm:$0xff]
      %v1457 = vld [vmem:[#allocation2 + $0x38] sm:$0xff]
      %v1458 = vld [vmem:[#allocation2 + $0x40] sm:$0xff]
      %v1459 = vld [vmem:[#allocation2 + $0x48] sm:$0xff]
      %v1460 = vld [vmem:[#allocation2 + $0x50] sm:$0xff]
      %v1461 = vld [vmem:[#allocation2 + $0x58] sm:$0xff]
      %v1462 = vld [vmem:[#allocation2 + $0x60] sm:$0xff]
      %v1463 = vld [vmem:[#allocation2 + $0x68] sm:$0xff]
      %v1464 = vld [vmem:[#allocation2 + $0x70] sm:$0xff]
      %v1465 = vld [vmem:[#allocation2 + $0x78] sm:$0xff]
      %v1466 = vld [vmem:[#allocation2 + $0x80] sm:$0xff]
      %v1467 = vld [vmem:[#allocation2 + $0x88] sm:$0xff]
      %v1468 = vld [vmem:[#allocation2 + $0x90] sm:$0xff]
      %v1469 = vld [vmem:[#allocation2 + $0x98] sm:$0xff]
      %v1470 = vld [vmem:[#allocation2 + $0xa0] sm:$0xff]
      %v1471 = vld [vmem:[#allocation2 + $0xa8] sm:$0xff]
      %v1472 = vld [vmem:[#allocation2 + $0xb0] sm:$0xff]
      %v1473 = vld [vmem:[#allocation2 + $0xb8] sm:$0xff]
      %v1474 = vld [vmem:[#allocation2 + $0xc0] sm:$0xf]
      %v1475 = vld [vmem:[#allocation2 + $0xc4] sm:$0xff]
      %v1476 = vld [vmem:[#allocation2 + $0xcc] sm:$0xff]
      %v1477 = vld [vmem:[#allocation2 + $0xd4] sm:$0xff]
      %v1478 = vld [vmem:[#allocation2 + $0xdc] sm:$0xff]
      %v1479 = vld [vmem:[#allocation2 + $0xe4] sm:$0xff]
      %v1480 = vld [vmem:[#allocation2 + $0xec] sm:$0xff]
      %v1481 = vld [vmem:[#allocation2 + $0xf4] sm:$0xff]
      %v1482 = vld [vmem:[#allocation2 + $0xfc] sm:$0xff]
      %v1483 = vld [vmem:[#allocation2 + $0x104] sm:$0xff]
      %v1484 = vld [vmem:[#allocation2 + $0x10c] sm:$0xff]
      %v1485 = vld [vmem:[#allocation2 + $0x114] sm:$0xff]
      %v1486 = vld [vmem:[#allocation2 + $0x11c] sm:$0xff]
      %v1487 = vld [vmem:[#allocation2 + $0x124] sm:$0xff]
      %v1488 = vld [vmem:[#allocation2 + $0x12c] sm:$0xff]
      %v1489 = vld [vmem:[#allocation2 + $0x134] sm:$0xff]
      %v1490 = vld [vmem:[#allocation2 + $0x13c] sm:$0xff]
      %v1491 = vld [vmem:[#allocation2 + $0x144] sm:$0xff]
      %v1492 = vld [vmem:[#allocation2 + $0x14c] sm:$0xff]
      %v1493 = vld [vmem:[#allocation2 + $0x154] sm:$0xff]
      %v1494 = vld [vmem:[#allocation2 + $0x15c] sm:$0xff]
      %v1495 = vld [vmem:[#allocation2 + $0x164] sm:$0xff]
      %v1496 = vld [vmem:[#allocation2 + $0x16c] sm:$0xff]
      %v1497 = vld [vmem:[#allocation2 + $0x174] sm:$0xff]
      %v1498 = vld [vmem:[#allocation2 + $0x17c] sm:$0xff]
      %v1499 = vld [vmem:[#allocation2 + $0x184] sm:$0xf]
      %v1500 = vld [vmem:[#allocation2 + $0x188] sm:$0xff]
      %v1501 = vld [vmem:[#allocation2 + $0x190] sm:$0xff]
      %v1502 = vld [vmem:[#allocation2 + $0x198] sm:$0xff]
      %v1503 = vld [vmem:[#allocation2 + $0x1a0] sm:$0xff]
      %v1504 = vld [vmem:[#allocation2 + $0x1a8] sm:$0xff]
      %v1505 = vld [vmem:[#allocation2 + $0x1b0] sm:$0xff]
      %v1506 = vld [vmem:[#allocation2 + $0x1b8] sm:$0xff]
      %v1507 = vld [vmem:[#allocation2 + $0x1c0] sm:$0xff]
      %v1508 = vld [vmem:[#allocation2 + $0x1c8] sm:$0xff]
      %v1509 = vld [vmem:[#allocation2 + $0x1d0] sm:$0xff]
      %v1510 = vld [vmem:[#allocation2 + $0x1d8] sm:$0xff]
      %v1511 = vld [vmem:[#allocation2 + $0x1e0] sm:$0xff]
      %v1512 = vld [vmem:[#allocation2 + $0x1e8] sm:$0xff]
      %v1513 = vld [vmem:[#allocation2 + $0x1f0] sm:$0xff]
      %v1514 = vld [vmem:[#allocation2 + $0x1f8] sm:$0xff]
      %v1515 = vld [vmem:[#allocation2 + $0x200] sm:$0xff]
      %v1516 = vld [vmem:[#allocation2 + $0x208] sm:$0xff]
      %v1517 = vld [vmem:[#allocation2 + $0x210] sm:$0xff]
      %v1518 = vld [vmem:[#allocation2 + $0x218] sm:$0xff]
      %v1519 = vld [vmem:[#allocation2 + $0x220] sm:$0xff]
      %v1520 = vld [vmem:[#allocation2 + $0x228] sm:$0xff]
      %v1521 = vld [vmem:[#allocation2 + $0x230] sm:$0xff]
      %v1522 = vld [vmem:[#allocation2 + $0x238] sm:$0xff]
      %v1523 = vld [vmem:[#allocation2 + $0x240] sm:$0xff]
      %v1524 = vld [vmem:[#allocation2 + $0x248] sm:$0xf]
      %v1525 = vld [vmem:[#allocation2 + $0x24c] sm:$0xff]
      %v1526 = vld [vmem:[#allocation2 + $0x254] sm:$0xff]
      %v1527 = vld [vmem:[#allocation2 + $0x25c] sm:$0xff]
      %v1528 = vld [vmem:[#allocation2 + $0x264] sm:$0xff]
      %v1529 = vld [vmem:[#allocation2 + $0x26c] sm:$0xff]
      %v1530 = vld [vmem:[#allocation2 + $0x274] sm:$0xff]
      %v1531 = vld [vmem:[#allocation2 + $0x27c] sm:$0xff]
      %v1532 = vld [vmem:[#allocation2 + $0x284] sm:$0xff]
      %v1533 = vld [vmem:[#allocation2 + $0x28c] sm:$0xff]
      %v1534 = vld [vmem:[#allocation2 + $0x294] sm:$0xff]
      %v1535 = vld [vmem:[#allocation2 + $0x29c] sm:$0xff]
      %v1536 = vld [vmem:[#allocation2 + $0x2a4] sm:$0xff]
      %v1537 = vld [vmem:[#allocation2 + $0x2ac] sm:$0xff]
      %v1538 = vld [vmem:[#allocation2 + $0x2b4] sm:$0xff]
      %v1539 = vld [vmem:[#allocation2 + $0x2bc] sm:$0xff]
      %v1540 = vld [vmem:[#allocation2 + $0x2c4] sm:$0xff]
      %v1541 = vld [vmem:[#allocation2 + $0x2cc] sm:$0xff]
      %v1542 = vld [vmem:[#allocation2 + $0x2d4] sm:$0xff]
      %v1543 = vld [vmem:[#allocation2 + $0x2dc] sm:$0xff]
      %v1544 = vld [vmem:[#allocation2 + $0x2e4] sm:$0xff]
      %v1545 = vld [vmem:[#allocation2 + $0x2ec] sm:$0xff]
      %v1546 = vld [vmem:[#allocation2 + $0x2f4] sm:$0xff]
      %v1547 = vld [vmem:[#allocation2 + $0x2fc] sm:$0xff]
      %v1548 = vld [vmem:[#allocation2 + $0x304] sm:$0xff]
      %v1549 = vld [vmem:[#allocation2 + $0x30c] sm:$0xf]
      %v1550 = vmax.f32 %v1450, %v1475
      %v1551 = vmax.f32 %v1451, %v1476
      %v1552 = vmax.f32 %v1452, %v1477
      %v1553 = vmax.f32 %v1453, %v1478
      %v1554 = vmax.f32 %v1454, %v1479
      %v1555 = vmax.f32 %v1455, %v1480
      %v1556 = vmax.f32 %v1456, %v1481
      %v1557 = vmax.f32 %v1457, %v1482
      %v1558 = vmax.f32 %v1458, %v1483
      %v1559 = vmax.f32 %v1459, %v1484
      %v1560 = vmax.f32 %v1460, %v1485
      %v1561 = vmax.f32 %v1461, %v1486
      %v1562 = vmax.f32 %v1462, %v1487
      %v1563 = vmax.f32 %v1463, %v1488
      %v1564 = vmax.f32 %v1464, %v1489
      %v1565 = vmax.f32 %v1465, %v1490
      %v1566 = vmax.f32 %v1466, %v1491
      %v1567 = vmax.f32 %v1467, %v1492
      %v1568 = vmax.f32 %v1468, %v1493
      %v1569 = vmax.f32 %v1469, %v1494
      %v1570 = vmax.f32 %v1470, %v1495
      %v1571 = vmax.f32 %v1471, %v1496
      %v1572 = vmax.f32 %v1472, %v1497
      %v1573 = vmax.f32 %v1473, %v1498
      %v1574 = vmax.f32 %v1474, %v1499
      %v1575 = vmax.f32 %v1500, %v1525
      %v1576 = vmax.f32 %v1501, %v1526
      %v1577 = vmax.f32 %v1502, %v1527
      %v1578 = vmax.f32 %v1503, %v1528
      %v1579 = vmax.f32 %v1504, %v1529
      %v1580 = vmax.f32 %v1505, %v1530
      %v1581 = vmax.f32 %v1506, %v1531
      %v1582 = vmax.f32 %v1507, %v1532
      %v1583 = vmax.f32 %v1508, %v1533
      %v1584 = vmax.f32 %v1509, %v1534
      %v1585 = vmax.f32 %v1510, %v1535
      %v1586 = vmax.f32 %v1511, %v1536
      %v1587 = vmax.f32 %v1512, %v1537
      %v1588 = vmax.f32 %v1513, %v1538
      %v1589 = vmax.f32 %v1514, %v1539
      %v1590 = vmax.f32 %v1515, %v1540
      %v1591 = vmax.f32 %v1516, %v1541
      %v1592 = vmax.f32 %v1517, %v1542
      %v1593 = vmax.f32 %v1518, %v1543
      %v1594 = vmax.f32 %v1519, %v1544
      %v1595 = vmax.f32 %v1520, %v1545
      %v1596 = vmax.f32 %v1521, %v1546
      %v1597 = vmax.f32 %v1522, %v1547
      %v1598 = vmax.f32 %v1523, %v1548
      %v1599 = vmax.f32 %v1524, %v1549
      %v1600 = vmax.f32 %v1550, %v1575
      %v1601 = vmax.f32 %v1551, %v1576
      %v1602 = vmax.f32 %v1552, %v1577
      %v1603 = vmax.f32 %v1553, %v1578
      %v1604 = vmax.f32 %v1554, %v1579
      %v1605 = vmax.f32 %v1555, %v1580
      %v1606 = vmax.f32 %v1556, %v1581
      %v1607 = vmax.f32 %v1557, %v1582
      %v1608 = vmax.f32 %v1558, %v1583
      %v1609 = vmax.f32 %v1559, %v1584
      %v1610 = vmax.f32 %v1560, %v1585
      %v1611 = vmax.f32 %v1561, %v1586
      %v1612 = vmax.f32 %v1562, %v1587
      %v1613 = vmax.f32 %v1563, %v1588
      %v1614 = vmax.f32 %v1564, %v1589
      %v1615 = vmax.f32 %v1565, %v1590
      %v1616 = vmax.f32 %v1566, %v1591
      %v1617 = vmax.f32 %v1567, %v1592
      %v1618 = vmax.f32 %v1568, %v1593
      %v1619 = vmax.f32 %v1569, %v1594
      %v1620 = vmax.f32 %v1570, %v1595
      %v1621 = vmax.f32 %v1571, %v1596
      %v1622 = vmax.f32 %v1572, %v1597
      %v1623 = vmax.f32 %v1573, %v1598
      %v1624 = vmax.f32 %v1574, %v1599
      %v1625 = vld [vmem:[%s2] sm:$0x1]
      %v1627 = vlaneseq
      %v1628 = vshrl.u32 %v1627, 7
      %v1629 = vsub.s32 0, %v1628
      %v1630 = vrot.slane %v1625, %v1629
      %v1632 = vadd.f32 %v1600, %v1630
      %v1633 = vadd.f32 %v1601, %v1630
      %v1634 = vadd.f32 %v1602, %v1630
      %v1635 = vadd.f32 %v1603, %v1630
      %v1636 = vadd.f32 %v1604, %v1630
      %v1637 = vadd.f32 %v1605, %v1630
      %v1638 = vadd.f32 %v1606, %v1630
      %v1639 = vadd.f32 %v1607, %v1630
      %v1640 = vadd.f32 %v1608, %v1630
      %v1641 = vadd.f32 %v1609, %v1630
      %v1642 = vadd.f32 %v1610, %v1630
      %v1643 = vadd.f32 %v1611, %v1630
      %v1644 = vadd.f32 %v1612, %v1630
      %v1645 = vadd.f32 %v1613, %v1630
      %v1646 = vadd.f32 %v1614, %v1630
      %v1647 = vadd.f32 %v1615, %v1630
      %v1648 = vadd.f32 %v1616, %v1630
      %v1649 = vadd.f32 %v1617, %v1630
      %v1650 = vadd.f32 %v1618, %v1630
      %v1651 = vadd.f32 %v1619, %v1630
      %v1652 = vadd.f32 %v1620, %v1630
      %v1653 = vadd.f32 %v1621, %v1630
      %v1654 = vadd.f32 %v1622, %v1630
      %v1655 = vadd.f32 %v1623, %v1630
      %v1656 = vadd.f32 %v1624, %v1630
      %v1657 = vmax.f32 %v1632, 0.0
      %v1658 = vmax.f32 %v1633, 0.0
      %v1659 = vmax.f32 %v1634, 0.0
      %v1660 = vmax.f32 %v1635, 0.0
      %v1661 = vmax.f32 %v1636, 0.0
      %v1662 = vmax.f32 %v1637, 0.0
      %v1663 = vmax.f32 %v1638, 0.0
      %v1664 = vmax.f32 %v1639, 0.0
      %v1665 = vmax.f32 %v1640, 0.0
      %v1666 = vmax.f32 %v1641, 0.0
      %v1667 = vmax.f32 %v1642, 0.0
      %v1668 = vmax.f32 %v1643, 0.0
      %v1669 = vmax.f32 %v1644, 0.0
      %v1670 = vmax.f32 %v1645, 0.0
      %v1671 = vmax.f32 %v1646, 0.0
      %v1672 = vmax.f32 %v1647, 0.0
      %v1673 = vmax.f32 %v1648, 0.0
      %v1674 = vmax.f32 %v1649, 0.0
      %v1675 = vmax.f32 %v1650, 0.0
      %v1676 = vmax.f32 %v1651, 0.0
      %v1677 = vmax.f32 %v1652, 0.0
      %v1678 = vmax.f32 %v1653, 0.0
      %v1679 = vmax.f32 %v1654, 0.0
      %v1680 = vmax.f32 %v1655, 0.0
      %v1681 = vmax.f32 %v1656, 0.0
      %v1682 = vpack.c.bf16 %v1658, %v1657
      %v1683 = vpack.c.bf16 %v1660, %v1659
      %v1684 = vpack.c.bf16 %v1662, %v1661
      %v1685 = vpack.c.bf16 %v1664, %v1663
      %v1686 = vpack.c.bf16 %v1666, %v1665
      %v1687 = vpack.c.bf16 %v1668, %v1667
      %v1688 = vpack.c.bf16 %v1670, %v1669
      %v1689 = vpack.c.bf16 %v1672, %v1671
      %v1690 = vpack.c.bf16 %v1674, %v1673
      %v1691 = vpack.c.bf16 %v1676, %v1675
      %v1692 = vpack.c.bf16 %v1678, %v1677
      %v1693 = vpack.c.bf16 %v1680, %v1679
      %v1694 = vpack.c.bf16 %v1681, %v1681
      %v1708 = vunpack.c.l.b16 %v1682
      %v1709 = vunpack.c.h.b16 %v1682
      %v1710 = vunpack.c.l.b16 %v1683
      %v1711 = vunpack.c.h.b16 %v1683
      %v1712 = vunpack.c.l.b16 %v1684
      %v1713 = vunpack.c.h.b16 %v1684
      %v1714 = vunpack.c.l.b16 %v1685
      %v1715 = vunpack.c.h.b16 %v1685
      %v1716 = vunpack.c.l.b16 %v1686
      %v1717 = vunpack.c.h.b16 %v1686
      %v1718 = vunpack.c.l.b16 %v1687
      %v1719 = vunpack.c.h.b16 %v1687
      %v1720 = vunpack.c.l.b16 %v1688
      %v1721 = vunpack.c.h.b16 %v1688
      %v1722 = vunpack.c.l.b16 %v1689
      %v1723 = vunpack.c.h.b16 %v1689
      %v1724 = vunpack.c.l.b16 %v1690
      %v1725 = vunpack.c.h.b16 %v1690
      %v1726 = vunpack.c.l.b16 %v1691
      %v1727 = vunpack.c.h.b16 %v1691
      %v1728 = vunpack.c.l.b16 %v1692
      %v1729 = vunpack.c.h.b16 %v1692
      %v1730 = vunpack.c.l.b16 %v1693
      %v1731 = vunpack.c.h.b16 %v1693
      %v1732 = vunpack.c.l.b16 %v1694
      %v1733 = vpack.c.b16 %v1708, %v1708
      %v1734 = vpack.c.b16 %v1709, %v1709
      %v1735 = vpack.c.b16 %v1710, %v1710
      %v1736 = vpack.c.b16 %v1711, %v1711
      %v1737 = vpack.c.b16 %v1712, %v1712
      %v1738 = vpack.c.b16 %v1713, %v1713
      %v1739 = vpack.c.b16 %v1714, %v1714
      %v1740 = vpack.c.b16 %v1715, %v1715
      %v1741 = vpack.c.b16 %v1716, %v1716
      %v1742 = vpack.c.b16 %v1717, %v1717
      %v1743 = vpack.c.b16 %v1718, %v1718
      %v1744 = vpack.c.b16 %v1719, %v1719
      %v1745 = vpack.c.b16 %v1720, %v1720
      %v1746 = vpack.c.b16 %v1721, %v1721
      %v1747 = vpack.c.b16 %v1722, %v1722
      %v1748 = vpack.c.b16 %v1723, %v1723
      %v1749 = vpack.c.b16 %v1724, %v1724
      %v1750 = vpack.c.b16 %v1725, %v1725
      %v1751 = vpack.c.b16 %v1726, %v1726
      %v1752 = vpack.c.b16 %v1727, %v1727
      %v1753 = vpack.c.b16 %v1728, %v1728
      %v1754 = vpack.c.b16 %v1729, %v1729
      %v1755 = vpack.c.b16 %v1730, %v1730
      %v1756 = vpack.c.b16 %v1731, %v1731
      %v1757 = vpack.c.b16 %v1732, %v1732
      %1783 = vst [vmem:[#allocation3] sm:$0xf] %v1733
      %1784 = vst [vmem:[#allocation3 + $0x4] sm:$0xf] %v1734
      %1785 = vst [vmem:[#allocation3 + $0x8] sm:$0xf] %v1735
      %1786 = vst [vmem:[#allocation3 + $0xc] sm:$0xf] %v1736
      %1787 = vst [vmem:[#allocation3 + $0x10] sm:$0xf] %v1737
      %1788 = vst [vmem:[#allocation3 + $0x14] sm:$0xf] %v1738
      %1789 = vst [vmem:[#allocation3 + $0x18] sm:$0xf] %v1739
      %1790 = vst [vmem:[#allocation3 + $0x1c] sm:$0xf] %v1740
      %1791 = vst [vmem:[#allocation3 + $0x20] sm:$0xf] %v1741
      %1792 = vst [vmem:[#allocation3 + $0x24] sm:$0xf] %v1742
      %1793 = vst [vmem:[#allocation3 + $0x28] sm:$0xf] %v1743
      %1794 = vst [vmem:[#allocation3 + $0x2c] sm:$0xf] %v1744
      %1795 = vst [vmem:[#allocation3 + $0x30] sm:$0xf] %v1745
      %1796 = vst [vmem:[#allocation3 + $0x34] sm:$0xf] %v1746
      %1797 = vst [vmem:[#allocation3 + $0x38] sm:$0xf] %v1747
      %1798 = vst [vmem:[#allocation3 + $0x3c] sm:$0xf] %v1748
      %1799 = vst [vmem:[#allocation3 + $0x40] sm:$0xf] %v1749
      %1800 = vst [vmem:[#allocation3 + $0x44] sm:$0xf] %v1750
      %1801 = vst [vmem:[#allocation3 + $0x48] sm:$0xf] %v1751
      %1802 = vst [vmem:[#allocation3 + $0x4c] sm:$0xf] %v1752
      %1803 = vst [vmem:[#allocation3 + $0x50] sm:$0xf] %v1753
      %1804 = vst [vmem:[#allocation3 + $0x54] sm:$0xf] %v1754
      %1805 = vst [vmem:[#allocation3 + $0x58] sm:$0xf] %v1755
      %1806 = vst [vmem:[#allocation3 + $0x5c] sm:$0xf] %v1756
      %1807 = vst [vmem:[#allocation3 + $0x60] sm:$0x3] %v1757
      %v1808 = vld [vmem:[#allocation3] sm:$0xf]
      %v1809 = vld [vmem:[#allocation3 + $0x4] sm:$0xf]
      %v1810 = vld [vmem:[#allocation3 + $0x8] sm:$0xf]
      %v1811 = vld [vmem:[#allocation3 + $0xc] sm:$0xf]
      %v1812 = vld [vmem:[#allocation3 + $0x10] sm:$0xf]
      %v1813 = vld [vmem:[#allocation3 + $0x14] sm:$0xf]
      %v1814 = vld [vmem:[#allocation3 + $0x18] sm:$0xf]
      %v1815 = vld [vmem:[#allocation3 + $0x1c] sm:$0xf]
      %v1816 = vld [vmem:[#allocation3 + $0x20] sm:$0xf]
      %v1817 = vld [vmem:[#allocation3 + $0x24] sm:$0xf]
      %v1818 = vld [vmem:[#allocation3 + $0x28] sm:$0xf]
      %v1819 = vld [vmem:[#allocation3 + $0x2c] sm:$0xf]
      %v1820 = vld [vmem:[#allocation3 + $0x30] sm:$0xf]
      %v1821 = vld [vmem:[#allocation3 + $0x34] sm:$0xf]
      %v1822 = vld [vmem:[#allocation3 + $0x38] sm:$0xf]
      %v1823 = vld [vmem:[#allocation3 + $0x3c] sm:$0xf]
      %v1824 = vld [vmem:[#allocation3 + $0x40] sm:$0xf]
      %v1825 = vld [vmem:[#allocation3 + $0x44] sm:$0xf]
      %v1826 = vld [vmem:[#allocation3 + $0x48] sm:$0xf]
      %v1827 = vld [vmem:[#allocation3 + $0x4c] sm:$0xf]
      %v1828 = vld [vmem:[#allocation3 + $0x50] sm:$0xf]
      %v1829 = vld [vmem:[#allocation3 + $0x54] sm:$0xf]
      %v1830 = vld [vmem:[#allocation3 + $0x58] sm:$0xf]
      %v1831 = vld [vmem:[#allocation3 + $0x5c] sm:$0xf]
      %v1856 = vunpack.c.l.b16 %v1808
      %v1857 = vunpack.c.l.b16 %v1809
      %v1858 = vunpack.c.l.b16 %v1810
      %v1859 = vunpack.c.l.b16 %v1811
      %v1860 = vunpack.c.l.b16 %v1812
      %v1861 = vunpack.c.l.b16 %v1813
      %v1862 = vunpack.c.l.b16 %v1814
      %v1863 = vunpack.c.l.b16 %v1815
      %v1864 = vunpack.c.l.b16 %v1816
      %v1865 = vunpack.c.l.b16 %v1817
      %v1866 = vunpack.c.l.b16 %v1818
      %v1867 = vunpack.c.l.b16 %v1819
      %v1868 = vunpack.c.l.b16 %v1820
      %v1869 = vunpack.c.l.b16 %v1821
      %v1870 = vunpack.c.l.b16 %v1822
      %v1871 = vunpack.c.l.b16 %v1823
      %v1872 = vunpack.c.l.b16 %v1824
      %v1873 = vunpack.c.l.b16 %v1825
      %v1874 = vunpack.c.l.b16 %v1826
      %v1875 = vunpack.c.l.b16 %v1827
      %v1876 = vunpack.c.l.b16 %v1828
      %v1877 = vunpack.c.l.b16 %v1829
      %v1878 = vunpack.c.l.b16 %v1830
      %v1879 = vunpack.c.l.b16 %v1831
      %v1880 = vpack.c.b16 %v1857, %v1856
      %v1881 = vpack.c.b16 %v1859, %v1858
      %v1882 = vpack.c.b16 %v1861, %v1860
      %v1883 = vpack.c.b16 %v1863, %v1862
      %v1884 = vpack.c.b16 %v1865, %v1864
      %v1885 = vpack.c.b16 %v1867, %v1866
      %v1886 = vpack.c.b16 %v1869, %v1868
      %v1887 = vpack.c.b16 %v1871, %v1870
      %v1888 = vpack.c.b16 %v1873, %v1872
      %v1889 = vpack.c.b16 %v1875, %v1874
      %v1890 = vpack.c.b16 %v1877, %v1876
      %v1891 = vpack.c.b16 %v1879, %v1878
      %vm1904 = vcmask 64512
      %1905 = vst.msk [vmem:[#allocation4] sm:$0xff] %vm1904, %v1880
      %1906 = vst.msk [vmem:[#allocation4 + $0x8] sm:$0xff] %vm1904, %v1881
      %1907 = vst.msk [vmem:[#allocation4 + $0x10] sm:$0xff] %vm1904, %v1882
      %1908 = vst.msk [vmem:[#allocation4 + $0x18] sm:$0xff] %vm1904, %v1883
      %1909 = vst.msk [vmem:[#allocation4 + $0x20] sm:$0xff] %vm1904, %v1884
      %1910 = vst.msk [vmem:[#allocation4 + $0x28] sm:$0xff] %vm1904, %v1885
      %1911 = vst.msk [vmem:[#allocation4 + $0x30] sm:$0xff] %vm1904, %v1886
      %1912 = vst.msk [vmem:[#allocation4 + $0x38] sm:$0xff] %vm1904, %v1887
      %1913 = vst.msk [vmem:[#allocation4 + $0x40] sm:$0xff] %vm1904, %v1888
      %1914 = vst.msk [vmem:[#allocation4 + $0x48] sm:$0xff] %vm1904, %v1889
      %1915 = vst.msk [vmem:[#allocation4 + $0x50] sm:$0xff] %vm1904, %v1890
      %1916 = vst.msk [vmem:[#allocation4 + $0x58] sm:$0xff] %vm1904, %v1891
      %v1917 = vld [vmem:[#allocation3] sm:$0xf]
      %v1918 = vld [vmem:[#allocation3 + $0x4] sm:$0xf]
      %v1919 = vld [vmem:[#allocation3 + $0x8] sm:$0xf]
      %v1920 = vld [vmem:[#allocation3 + $0xc] sm:$0xf]
      %v1921 = vld [vmem:[#allocation3 + $0x10] sm:$0xf]
      %v1922 = vld [vmem:[#allocation3 + $0x14] sm:$0xf]
      %v1923 = vld [vmem:[#allocation3 + $0x18] sm:$0xf]
      %v1924 = vld [vmem:[#allocation3 + $0x1c] sm:$0xf]
      %v1925 = vld [vmem:[#allocation3 + $0x20] sm:$0xf]
      %v1926 = vld [vmem:[#allocation3 + $0x24] sm:$0xf]
      %v1927 = vld [vmem:[#allocation3 + $0x28] sm:$0xf]
      %v1928 = vld [vmem:[#allocation3 + $0x2c] sm:$0xf]
      %v1929 = vld [vmem:[#allocation3 + $0x30] sm:$0xf]
      %v1930 = vld [vmem:[#allocation3 + $0x34] sm:$0xf]
      %v1931 = vld [vmem:[#allocation3 + $0x38] sm:$0xf]
      %v1932 = vld [vmem:[#allocation3 + $0x3c] sm:$0xf]
      %v1933 = vld [vmem:[#allocation3 + $0x40] sm:$0xf]
      %v1934 = vld [vmem:[#allocation3 + $0x44] sm:$0xf]
      %v1935 = vld [vmem:[#allocation3 + $0x48] sm:$0xf]
      %v1936 = vld [vmem:[#allocation3 + $0x4c] sm:$0xf]
      %v1937 = vld [vmem:[#allocation3 + $0x50] sm:$0xf]
      %v1938 = vld [vmem:[#allocation3 + $0x54] sm:$0xf]
      %v1939 = vld [vmem:[#allocation3 + $0x58] sm:$0xf]
      %v1940 = vld [vmem:[#allocation3 + $0x5c] sm:$0xf]
      %v1941 = vld [vmem:[#allocation3 + $0x60] sm:$0x1]
      %v1967 = vunpack.c.l.b16 %v1917
      %v1968 = vunpack.c.l.b16 %v1918
      %v1969 = vunpack.c.l.b16 %v1919
      %v1970 = vunpack.c.l.b16 %v1920
      %v1971 = vunpack.c.l.b16 %v1921
      %v1972 = vunpack.c.l.b16 %v1922
      %v1973 = vunpack.c.l.b16 %v1923
      %v1974 = vunpack.c.l.b16 %v1924
      %v1975 = vunpack.c.l.b16 %v1925
      %v1976 = vunpack.c.l.b16 %v1926
      %v1977 = vunpack.c.l.b16 %v1927
      %v1978 = vunpack.c.l.b16 %v1928
      %v1979 = vunpack.c.l.b16 %v1929
      %v1980 = vunpack.c.l.b16 %v1930
      %v1981 = vunpack.c.l.b16 %v1931
      %v1982 = vunpack.c.l.b16 %v1932
      %v1983 = vunpack.c.l.b16 %v1933
      %v1984 = vunpack.c.l.b16 %v1934
      %v1985 = vunpack.c.l.b16 %v1935
      %v1986 = vunpack.c.l.b16 %v1936
      %v1987 = vunpack.c.l.b16 %v1937
      %v1988 = vunpack.c.l.b16 %v1938
      %v1989 = vunpack.c.l.b16 %v1939
      %v1990 = vunpack.c.l.b16 %v1940
      %v1991 = vunpack.c.l.b16 %v1941
      %v1992 = vpack.c.b16 %v1968, %v1967
      %v1993 = vpack.c.b16 %v1970, %v1969
      %v1994 = vpack.c.b16 %v1972, %v1971
      %v1995 = vpack.c.b16 %v1974, %v1973
      %v1996 = vpack.c.b16 %v1976, %v1975
      %v1997 = vpack.c.b16 %v1978, %v1977
      %v1998 = vpack.c.b16 %v1980, %v1979
      %v1999 = vpack.c.b16 %v1982, %v1981
      %v2000 = vpack.c.b16 %v1984, %v1983
      %v2001 = vpack.c.b16 %v1986, %v1985
      %v2002 = vpack.c.b16 %v1988, %v1987
      %v2003 = vpack.c.b16 %v1990, %v1989
      %v2004 = vpack.c.b16 %v1991, %v1991
      %vm2005 = vsmask.f32 7424
      %v2007 = vshrl.u32 %v1992, 16
      %v2009 = vshll.u32 %v1992, 16
      %v2011 = vrot.slane %v2009, 1
      %v2012 = vor.u32 %v2007, %v2011
      %v2014 = vshll.u32 %v1993, 16
      %v2016 = vrot.slane %v2014, 1
      %v2017 = vsel %vm2005, %v2012, %v2016
      %v2018 = vshrl.u32 %v1993, 16
      %v2020 = vor.u32 %v2018, %v2016
      %v2022 = vshll.u32 %v1994, 16
      %v2024 = vrot.slane %v2022, 1
      %v2025 = vsel %vm2005, %v2020, %v2024
      %v2026 = vshrl.u32 %v1994, 16
      %v2028 = vor.u32 %v2026, %v2024
      %v2030 = vshll.u32 %v1995, 16
      %v2032 = vrot.slane %v2030, 1
      %v2033 = vsel %vm2005, %v2028, %v2032
      %v2034 = vshrl.u32 %v1995, 16
      %v2036 = vor.u32 %v2034, %v2032
      %v2038 = vshll.u32 %v1996, 16
      %v2040 = vrot.slane %v2038, 1
      %v2041 = vsel %vm2005, %v2036, %v2040
      %v2042 = vshrl.u32 %v1996, 16
      %v2044 = vor.u32 %v2042, %v2040
      %v2046 = vshll.u32 %v1997, 16
      %v2048 = vrot.slane %v2046, 1
      %v2049 = vsel %vm2005, %v2044, %v2048
      %v2050 = vshrl.u32 %v1997, 16
      %v2052 = vor.u32 %v2050, %v2048
      %v2054 = vshll.u32 %v1998, 16
      %v2056 = vrot.slane %v2054, 1
      %v2057 = vsel %vm2005, %v2052, %v2056
      %v2058 = vshrl.u32 %v1998, 16
      %v2060 = vor.u32 %v2058, %v2056
      %v2062 = vshll.u32 %v1999, 16
      %v2064 = vrot.slane %v2062, 1
      %v2065 = vsel %vm2005, %v2060, %v2064
      %v2066 = vshrl.u32 %v1999, 16
      %v2068 = vor.u32 %v2066, %v2064
      %v2070 = vshll.u32 %v2000, 16
      %v2072 = vrot.slane %v2070, 1
      %v2073 = vsel %vm2005, %v2068, %v2072
      %v2074 = vshrl.u32 %v2000, 16
      %v2076 = vor.u32 %v2074, %v2072
      %v2078 = vshll.u32 %v2001, 16
      %v2080 = vrot.slane %v2078, 1
      %v2081 = vsel %vm2005, %v2076, %v2080
      %v2082 = vshrl.u32 %v2001, 16
      %v2084 = vor.u32 %v2082, %v2080
      %v2086 = vshll.u32 %v2002, 16
      %v2088 = vrot.slane %v2086, 1
      %v2089 = vsel %vm2005, %v2084, %v2088
      %v2090 = vshrl.u32 %v2002, 16
      %v2092 = vor.u32 %v2090, %v2088
      %v2094 = vshll.u32 %v2003, 16
      %v2096 = vrot.slane %v2094, 1
      %v2097 = vsel %vm2005, %v2092, %v2096
      %v2098 = vshrl.u32 %v2003, 16
      %v2100 = vor.u32 %v2098, %v2096
      %v2102 = vshll.u32 %v2004, 16
      %v2104 = vrot.slane %v2102, 1
      %v2105 = vsel %vm2005, %v2100, %v2104
      %2106 = vrot.lane.b32.xlu0 %v2017, 8
      %v2107 = vpop.permute.xlu0 %2106
      %2108 = vrot.lane.b32.xlu0 %v2025, 8
      %v2109 = vpop.permute.xlu0 %2108
      %2110 = vrot.lane.b32.xlu0 %v2033, 8
      %v2111 = vpop.permute.xlu0 %2110
      %2112 = vrot.lane.b32.xlu0 %v2041, 8
      %v2113 = vpop.permute.xlu0 %2112
      %2114 = vrot.lane.b32.xlu0 %v2049, 8
      %v2115 = vpop.permute.xlu0 %2114
      %2116 = vrot.lane.b32.xlu0 %v2057, 8
      %v2117 = vpop.permute.xlu0 %2116
      %2118 = vrot.lane.b32.xlu0 %v2065, 8
      %v2119 = vpop.permute.xlu0 %2118
      %2120 = vrot.lane.b32.xlu0 %v2073, 8
      %v2121 = vpop.permute.xlu0 %2120
      %2122 = vrot.lane.b32.xlu0 %v2081, 8
      %v2123 = vpop.permute.xlu0 %2122
      %2124 = vrot.lane.b32.xlu0 %v2089, 8
      %v2125 = vpop.permute.xlu0 %2124
      %2126 = vrot.lane.b32.xlu0 %v2097, 8
      %v2127 = vpop.permute.xlu0 %2126
      %2128 = vrot.lane.b32.xlu0 %v2105, 8
      %v2129 = vpop.permute.xlu0 %2128
      %vm2142 = vcmask 130112
      %2143 = vst.msk [vmem:[#allocation4] sm:$0xff] %vm2142, %v2107
      %2144 = vst.msk [vmem:[#allocation4 + $0x8] sm:$0xff] %vm2142, %v2109
      %2145 = vst.msk [vmem:[#allocation4 + $0x10] sm:$0xff] %vm2142, %v2111
      %2146 = vst.msk [vmem:[#allocation4 + $0x18] sm:$0xff] %vm2142, %v2113
      %2147 = vst.msk [vmem:[#allocation4 + $0x20] sm:$0xff] %vm2142, %v2115
      %2148 = vst.msk [vmem:[#allocation4 + $0x28] sm:$0xff] %vm2142, %v2117
      %2149 = vst.msk [vmem:[#allocation4 + $0x30] sm:$0xff] %vm2142, %v2119
      %2150 = vst.msk [vmem:[#allocation4 + $0x38] sm:$0xff] %vm2142, %v2121
      %2151 = vst.msk [vmem:[#allocation4 + $0x40] sm:$0xff] %vm2142, %v2123
      %2152 = vst.msk [vmem:[#allocation4 + $0x48] sm:$0xff] %vm2142, %v2125
      %2153 = vst.msk [vmem:[#allocation4 + $0x50] sm:$0xff] %vm2142, %v2127
      %2154 = vst.msk [vmem:[#allocation4 + $0x58] sm:$0xff] %vm2142, %v2129
      %v2155 = vld [vmem:[#allocation3] sm:$0xe]
      %v2156 = vld [vmem:[#allocation3 + $0x4] sm:$0xf]
      %v2157 = vld [vmem:[#allocation3 + $0x8] sm:$0xf]
      %v2158 = vld [vmem:[#allocation3 + $0xc] sm:$0xf]
      %v2159 = vld [vmem:[#allocation3 + $0x10] sm:$0xf]
      %v2160 = vld [vmem:[#allocation3 + $0x14] sm:$0xf]
      %v2161 = vld [vmem:[#allocation3 + $0x18] sm:$0xf]
      %v2162 = vld [vmem:[#allocation3 + $0x1c] sm:$0xf]
      %v2163 = vld [vmem:[#allocation3 + $0x20] sm:$0xf]
      %v2164 = vld [vmem:[#allocation3 + $0x24] sm:$0xf]
      %v2165 = vld [vmem:[#allocation3 + $0x28] sm:$0xf]
      %v2166 = vld [vmem:[#allocation3 + $0x2c] sm:$0xf]
      %v2167 = vld [vmem:[#allocation3 + $0x30] sm:$0xf]
      %v2168 = vld [vmem:[#allocation3 + $0x34] sm:$0xf]
      %v2169 = vld [vmem:[#allocation3 + $0x38] sm:$0xf]
      %v2170 = vld [vmem:[#allocation3 + $0x3c] sm:$0xf]
      %v2171 = vld [vmem:[#allocation3 + $0x40] sm:$0xf]
      %v2172 = vld [vmem:[#allocation3 + $0x44] sm:$0xf]
      %v2173 = vld [vmem:[#allocation3 + $0x48] sm:$0xf]
      %v2174 = vld [vmem:[#allocation3 + $0x4c] sm:$0xf]
      %v2175 = vld [vmem:[#allocation3 + $0x50] sm:$0xf]
      %v2176 = vld [vmem:[#allocation3 + $0x54] sm:$0xf]
      %v2177 = vld [vmem:[#allocation3 + $0x58] sm:$0xf]
      %v2178 = vld [vmem:[#allocation3 + $0x5c] sm:$0xf]
      %v2179 = vld [vmem:[#allocation3 + $0x60] sm:$0x1]
      %v2205 = vunpack.c.l.b16 %v2155
      %v2206 = vunpack.c.l.b16 %v2156
      %v2207 = vunpack.c.l.b16 %v2157
      %v2208 = vunpack.c.l.b16 %v2158
      %v2209 = vunpack.c.l.b16 %v2159
      %v2210 = vunpack.c.l.b16 %v2160
      %v2211 = vunpack.c.l.b16 %v2161
      %v2212 = vunpack.c.l.b16 %v2162
      %v2213 = vunpack.c.l.b16 %v2163
      %v2214 = vunpack.c.l.b16 %v2164
      %v2215 = vunpack.c.l.b16 %v2165
      %v2216 = vunpack.c.l.b16 %v2166
      %v2217 = vunpack.c.l.b16 %v2167
      %v2218 = vunpack.c.l.b16 %v2168
      %v2219 = vunpack.c.l.b16 %v2169
      %v2220 = vunpack.c.l.b16 %v2170
      %v2221 = vunpack.c.l.b16 %v2171
      %v2222 = vunpack.c.l.b16 %v2172
      %v2223 = vunpack.c.l.b16 %v2173
      %v2224 = vunpack.c.l.b16 %v2174
      %v2225 = vunpack.c.l.b16 %v2175
      %v2226 = vunpack.c.l.b16 %v2176
      %v2227 = vunpack.c.l.b16 %v2177
      %v2228 = vunpack.c.l.b16 %v2178
      %v2229 = vunpack.c.l.b16 %v2179
      %v2230 = vpack.c.b16 %v2206, %v2205
      %v2231 = vpack.c.b16 %v2208, %v2207
      %v2232 = vpack.c.b16 %v2210, %v2209
      %v2233 = vpack.c.b16 %v2212, %v2211
      %v2234 = vpack.c.b16 %v2214, %v2213
      %v2235 = vpack.c.b16 %v2216, %v2215
      %v2236 = vpack.c.b16 %v2218, %v2217
      %v2237 = vpack.c.b16 %v2220, %v2219
      %v2238 = vpack.c.b16 %v2222, %v2221
      %v2239 = vpack.c.b16 %v2224, %v2223
      %v2240 = vpack.c.b16 %v2226, %v2225
      %v2241 = vpack.c.b16 %v2228, %v2227
      %v2242 = vpack.c.b16 %v2229, %v2229
      %vm2243 = vcmask 1046528
      %v2244 = vrot.slane %v2230, 1
      %v2245 = vrot.slane %v2231, 1
      %v2246 = vsel %vm2243, %v2244, %v2245
      %v2247 = vrot.slane %v2232, 1
      %v2248 = vsel %vm2243, %v2245, %v2247
      %v2249 = vrot.slane %v2233, 1
      %v2250 = vsel %vm2243, %v2247, %v2249
      %v2251 = vrot.slane %v2234, 1
      %v2252 = vsel %vm2243, %v2249, %v2251
      %v2253 = vrot.slane %v2235, 1
      %v2254 = vsel %vm2243, %v2251, %v2253
      %v2255 = vrot.slane %v2236, 1
      %v2256 = vsel %vm2243, %v2253, %v2255
      %v2257 = vrot.slane %v2237, 1
      %v2258 = vsel %vm2243, %v2255, %v2257
      %v2259 = vrot.slane %v2238, 1
      %v2260 = vsel %vm2243, %v2257, %v2259
      %v2261 = vrot.slane %v2239, 1
      %v2262 = vsel %vm2243, %v2259, %v2261
      %v2263 = vrot.slane %v2240, 1
      %v2264 = vsel %vm2243, %v2261, %v2263
      %v2265 = vrot.slane %v2241, 1
      %v2266 = vsel %vm2243, %v2263, %v2265
      %v2267 = vrot.slane %v2242, 1
      %v2268 = vsel %vm2243, %v2265, %v2267
      %2269 = vrot.lane.b32.xlu0 %v2246, 16
      %v2270 = vpop.permute.xlu0 %2269
      %2271 = vrot.lane.b32.xlu0 %v2248, 16
      %v2272 = vpop.permute.xlu0 %2271
      %2273 = vrot.lane.b32.xlu0 %v2250, 16
      %v2274 = vpop.permute.xlu0 %2273
      %2275 = vrot.lane.b32.xlu0 %v2252, 16
      %v2276 = vpop.permute.xlu0 %2275
      %2277 = vrot.lane.b32.xlu0 %v2254, 16
      %v2278 = vpop.permute.xlu0 %2277
      %2279 = vrot.lane.b32.xlu0 %v2256, 16
      %v2280 = vpop.permute.xlu0 %2279
      %2281 = vrot.lane.b32.xlu0 %v2258, 16
      %v2282 = vpop.permute.xlu0 %2281
      %2283 = vrot.lane.b32.xlu0 %v2260, 16
      %v2284 = vpop.permute.xlu0 %2283
      %2285 = vrot.lane.b32.xlu0 %v2262, 16
      %v2286 = vpop.permute.xlu0 %2285
      %2287 = vrot.lane.b32.xlu0 %v2264, 16
      %v2288 = vpop.permute.xlu0 %2287
      %2289 = vrot.lane.b32.xlu0 %v2266, 16
      %v2290 = vpop.permute.xlu0 %2289
      %2291 = vrot.lane.b32.xlu0 %v2268, 16
      %v2292 = vpop.permute.xlu0 %2291
      %vm2305 = vcmask 195712
      %2306 = vst.msk [vmem:[#allocation4] sm:$0xff] %vm2305, %v2270
      %2307 = vst.msk [vmem:[#allocation4 + $0x8] sm:$0xff] %vm2305, %v2272
      %2308 = vst.msk [vmem:[#allocation4 + $0x10] sm:$0xff] %vm2305, %v2274
      %2309 = vst.msk [vmem:[#allocation4 + $0x18] sm:$0xff] %vm2305, %v2276
      %2310 = vst.msk [vmem:[#allocation4 + $0x20] sm:$0xff] %vm2305, %v2278
      %2311 = vst.msk [vmem:[#allocation4 + $0x28] sm:$0xff] %vm2305, %v2280
      %2312 = vst.msk [vmem:[#allocation4 + $0x30] sm:$0xff] %vm2305, %v2282
      %2313 = vst.msk [vmem:[#allocation4 + $0x38] sm:$0xff] %vm2305, %v2284
      %2314 = vst.msk [vmem:[#allocation4 + $0x40] sm:$0xff] %vm2305, %v2286
      %2315 = vst.msk [vmem:[#allocation4 + $0x48] sm:$0xff] %vm2305, %v2288
      %2316 = vst.msk [vmem:[#allocation4 + $0x50] sm:$0xff] %vm2305, %v2290
      %2317 = vst.msk [vmem:[#allocation4 + $0x58] sm:$0xff] %vm2305, %v2292
      %v2318 = vld [vmem:[#allocation3] sm:$0xe]
      %v2319 = vld [vmem:[#allocation3 + $0x4] sm:$0xf]
      %v2320 = vld [vmem:[#allocation3 + $0x8] sm:$0xf]
      %v2321 = vld [vmem:[#allocation3 + $0xc] sm:$0xf]
      %v2322 = vld [vmem:[#allocation3 + $0x10] sm:$0xf]
      %v2323 = vld [vmem:[#allocation3 + $0x14] sm:$0xf]
      %v2324 = vld [vmem:[#allocation3 + $0x18] sm:$0xf]
      %v2325 = vld [vmem:[#allocation3 + $0x1c] sm:$0xf]
      %v2326 = vld [vmem:[#allocation3 + $0x20] sm:$0xf]
      %v2327 = vld [vmem:[#allocation3 + $0x24] sm:$0xf]
      %v2328 = vld [vmem:[#allocation3 + $0x28] sm:$0xf]
      %v2329 = vld [vmem:[#allocation3 + $0x2c] sm:$0xf]
      %v2330 = vld [vmem:[#allocation3 + $0x30] sm:$0xf]
      %v2331 = vld [vmem:[#allocation3 + $0x34] sm:$0xf]
      %v2332 = vld [vmem:[#allocation3 + $0x38] sm:$0xf]
      %v2333 = vld [vmem:[#allocation3 + $0x3c] sm:$0xf]
      %v2334 = vld [vmem:[#allocation3 + $0x40] sm:$0xf]
      %v2335 = vld [vmem:[#allocation3 + $0x44] sm:$0xf]
      %v2336 = vld [vmem:[#allocation3 + $0x48] sm:$0xf]
      %v2337 = vld [vmem:[#allocation3 + $0x4c] sm:$0xf]
      %v2338 = vld [vmem:[#allocation3 + $0x50] sm:$0xf]
      %v2339 = vld [vmem:[#allocation3 + $0x54] sm:$0xf]
      %v2340 = vld [vmem:[#allocation3 + $0x58] sm:$0xf]
      %v2341 = vld [vmem:[#allocation3 + $0x5c] sm:$0xf]
      %v2342 = vld [vmem:[#allocation3 + $0x60] sm:$0x3]
      %v2368 = vunpack.c.l.b16 %v2318
      %v2369 = vunpack.c.l.b16 %v2319
      %v2370 = vunpack.c.l.b16 %v2320
      %v2371 = vunpack.c.l.b16 %v2321
      %v2372 = vunpack.c.l.b16 %v2322
      %v2373 = vunpack.c.l.b16 %v2323
      %v2374 = vunpack.c.l.b16 %v2324
      %v2375 = vunpack.c.l.b16 %v2325
      %v2376 = vunpack.c.l.b16 %v2326
      %v2377 = vunpack.c.l.b16 %v2327
      %v2378 = vunpack.c.l.b16 %v2328
      %v2379 = vunpack.c.l.b16 %v2329
      %v2380 = vunpack.c.l.b16 %v2330
      %v2381 = vunpack.c.l.b16 %v2331
      %v2382 = vunpack.c.l.b16 %v2332
      %v2383 = vunpack.c.l.b16 %v2333
      %v2384 = vunpack.c.l.b16 %v2334
      %v2385 = vunpack.c.l.b16 %v2335
      %v2386 = vunpack.c.l.b16 %v2336
      %v2387 = vunpack.c.l.b16 %v2337
      %v2388 = vunpack.c.l.b16 %v2338
      %v2389 = vunpack.c.l.b16 %v2339
      %v2390 = vunpack.c.l.b16 %v2340
      %v2391 = vunpack.c.l.b16 %v2341
      %v2392 = vunpack.c.l.b16 %v2342
      %v2393 = vpack.c.b16 %v2369, %v2368
      %v2394 = vpack.c.b16 %v2371, %v2370
      %v2395 = vpack.c.b16 %v2373, %v2372
      %v2396 = vpack.c.b16 %v2375, %v2374
      %v2397 = vpack.c.b16 %v2377, %v2376
      %v2398 = vpack.c.b16 %v2379, %v2378
      %v2399 = vpack.c.b16 %v2381, %v2380
      %v2400 = vpack.c.b16 %v2383, %v2382
      %v2401 = vpack.c.b16 %v2385, %v2384
      %v2402 = vpack.c.b16 %v2387, %v2386
      %v2403 = vpack.c.b16 %v2389, %v2388
      %v2404 = vpack.c.b16 %v2391, %v2390
      %v2405 = vpack.c.b16 %v2392, %v2392
      %vm2406 = vsmask.f32 6400
      %v2408 = vshrl.u32 %v2393, 16
      %v2410 = vrot.slane %v2408, 1
      %v2411 = vshll.u32 %v2393, 16
      %v2413 = vrot.slane %v2411, 2
      %v2414 = vor.u32 %v2410, %v2413
      %v2416 = vshrl.u32 %v2394, 16
      %v2418 = vrot.slane %v2416, 1
      %v2419 = vshll.u32 %v2394, 16
      %v2421 = vrot.slane %v2419, 2
      %v2422 = vor.u32 %v2418, %v2421
      %v2423 = vsel %vm2406, %v2414, %v2422
      %v2425 = vshrl.u32 %v2395, 16
      %v2427 = vrot.slane %v2425, 1
      %v2428 = vshll.u32 %v2395, 16
      %v2430 = vrot.slane %v2428, 2
      %v2431 = vor.u32 %v2427, %v2430
      %v2432 = vsel %vm2406, %v2422, %v2431
      %v2434 = vshrl.u32 %v2396, 16
      %v2436 = vrot.slane %v2434, 1
      %v2437 = vshll.u32 %v2396, 16
      %v2439 = vrot.slane %v2437, 2
      %v2440 = vor.u32 %v2436, %v2439
      %v2441 = vsel %vm2406, %v2431, %v2440
      %v2443 = vshrl.u32 %v2397, 16
      %v2445 = vrot.slane %v2443, 1
      %v2446 = vshll.u32 %v2397, 16
      %v2448 = vrot.slane %v2446, 2
      %v2449 = vor.u32 %v2445, %v2448
      %v2450 = vsel %vm2406, %v2440, %v2449
      %v2452 = vshrl.u32 %v2398, 16
      %v2454 = vrot.slane %v2452, 1
      %v2455 = vshll.u32 %v2398, 16
      %v2457 = vrot.slane %v2455, 2
      %v2458 = vor.u32 %v2454, %v2457
      %v2459 = vsel %vm2406, %v2449, %v2458
      %v2461 = vshrl.u32 %v2399, 16
      %v2463 = vrot.slane %v2461, 1
      %v2464 = vshll.u32 %v2399, 16
      %v2466 = vrot.slane %v2464, 2
      %v2467 = vor.u32 %v2463, %v2466
      %v2468 = vsel %vm2406, %v2458, %v2467
      %v2470 = vshrl.u32 %v2400, 16
      %v2472 = vrot.slane %v2470, 1
      %v2473 = vshll.u32 %v2400, 16
      %v2475 = vrot.slane %v2473, 2
      %v2476 = vor.u32 %v2472, %v2475
      %v2477 = vsel %vm2406, %v2467, %v2476
      %v2479 = vshrl.u32 %v2401, 16
      %v2481 = vrot.slane %v2479, 1
      %v2482 = vshll.u32 %v2401, 16
      %v2484 = vrot.slane %v2482, 2
      %v2485 = vor.u32 %v2481, %v2484
      %v2486 = vsel %vm2406, %v2476, %v2485
      %v2488 = vshrl.u32 %v2402, 16
      %v2490 = vrot.slane %v2488, 1
      %v2491 = vshll.u32 %v2402, 16
      %v2493 = vrot.slane %v2491, 2
      %v2494 = vor.u32 %v2490, %v2493
      %v2495 = vsel %vm2406, %v2485, %v2494
      %v2497 = vshrl.u32 %v2403, 16
      %v2499 = vrot.slane %v2497, 1
      %v2500 = vshll.u32 %v2403, 16
      %v2502 = vrot.slane %v2500, 2
      %v2503 = vor.u32 %v2499, %v2502
      %v2504 = vsel %vm2406, %v2494, %v2503
      %v2506 = vshrl.u32 %v2404, 16
      %v2508 = vrot.slane %v2506, 1
      %v2509 = vshll.u32 %v2404, 16
      %v2511 = vrot.slane %v2509, 2
      %v2512 = vor.u32 %v2508, %v2511
      %v2513 = vsel %vm2406, %v2503, %v2512
      %v2515 = vshrl.u32 %v2405, 16
      %v2517 = vrot.slane %v2515, 1
      %v2518 = vshll.u32 %v2405, 16
      %v2520 = vrot.slane %v2518, 2
      %v2521 = vor.u32 %v2517, %v2520
      %v2522 = vsel %vm2406, %v2512, %v2521
      %2523 = vrot.lane.b32.xlu0 %v2423, 24
      %v2524 = vpop.permute.xlu0 %2523
      %2525 = vrot.lane.b32.xlu0 %v2432, 24
      %v2526 = vpop.permute.xlu0 %2525
      %2527 = vrot.lane.b32.xlu0 %v2441, 24
      %v2528 = vpop.permute.xlu0 %2527
      %2529 = vrot.lane.b32.xlu0 %v2450, 24
      %v2530 = vpop.permute.xlu0 %2529
      %2531 = vrot.lane.b32.xlu0 %v2459, 24
      %v2532 = vpop.permute.xlu0 %2531
      %2533 = vrot.lane.b32.xlu0 %v2468, 24
      %v2534 = vpop.permute.xlu0 %2533
      %2535 = vrot.lane.b32.xlu0 %v2477, 24
      %v2536 = vpop.permute.xlu0 %2535
      %2537 = vrot.lane.b32.xlu0 %v2486, 24
      %v2538 = vpop.permute.xlu0 %2537
      %2539 = vrot.lane.b32.xlu0 %v2495, 24
      %v2540 = vpop.permute.xlu0 %2539
      %2541 = vrot.lane.b32.xlu0 %v2504, 24
      %v2542 = vpop.permute.xlu0 %2541
      %2543 = vrot.lane.b32.xlu0 %v2513, 24
      %v2544 = vpop.permute.xlu0 %2543
      %2545 = vrot.lane.b32.xlu0 %v2522, 24
      %v2546 = vpop.permute.xlu0 %2545
      %vm2559 = vcmask 261312
      %2560 = vst.msk [vmem:[#allocation4] sm:$0xff] %vm2559, %v2524
      %2561 = vst.msk [vmem:[#allocation4 + $0x8] sm:$0xff] %vm2559, %v2526
      %2562 = vst.msk [vmem:[#allocation4 + $0x10] sm:$0xff] %vm2559, %v2528
      %2563 = vst.msk [vmem:[#allocation4 + $0x18] sm:$0xff] %vm2559, %v2530
      %2564 = vst.msk [vmem:[#allocation4 + $0x20] sm:$0xff] %vm2559, %v2532
      %2565 = vst.msk [vmem:[#allocation4 + $0x28] sm:$0xff] %vm2559, %v2534
      %2566 = vst.msk [vmem:[#allocation4 + $0x30] sm:$0xff] %vm2559, %v2536
      %2567 = vst.msk [vmem:[#allocation4 + $0x38] sm:$0xff] %vm2559, %v2538
      %2568 = vst.msk [vmem:[#allocation4 + $0x40] sm:$0xff] %vm2559, %v2540
      %2569 = vst.msk [vmem:[#allocation4 + $0x48] sm:$0xff] %vm2559, %v2542
      %2570 = vst.msk [vmem:[#allocation4 + $0x50] sm:$0xff] %vm2559, %v2544
      %2571 = vst.msk [vmem:[#allocation4 + $0x58] sm:$0xff] %vm2559, %v2546
      %v2572 = vld [vmem:[#allocation3] sm:$0xc]
      %v2573 = vld [vmem:[#allocation3 + $0x4] sm:$0xf]
      %v2574 = vld [vmem:[#allocation3 + $0x8] sm:$0xf]
      %v2575 = vld [vmem:[#allocation3 + $0xc] sm:$0xf]
      %v2576 = vld [vmem:[#allocation3 + $0x10] sm:$0xf]
      %v2577 = vld [vmem:[#allocation3 + $0x14] sm:$0xf]
      %v2578 = vld [vmem:[#allocation3 + $0x18] sm:$0xf]
      %v2579 = vld [vmem:[#allocation3 + $0x1c] sm:$0xf]
      %v2580 = vld [vmem:[#allocation3 + $0x20] sm:$0xf]
      %v2581 = vld [vmem:[#allocation3 + $0x24] sm:$0xf]
      %v2582 = vld [vmem:[#allocation3 + $0x28] sm:$0xf]
      %v2583 = vld [vmem:[#allocation3 + $0x2c] sm:$0xf]
      %v2584 = vld [vmem:[#allocation3 + $0x30] sm:$0xf]
      %v2585 = vld [vmem:[#allocation3 + $0x34] sm:$0xf]
      %v2586 = vld [vmem:[#allocation3 + $0x38] sm:$0xf]
      %v2587 = vld [vmem:[#allocation3 + $0x3c] sm:$0xf]
      %v2588 = vld [vmem:[#allocation3 + $0x40] sm:$0xf]
      %v2589 = vld [vmem:[#allocation3 + $0x44] sm:$0xf]
      %v2590 = vld [vmem:[#allocation3 + $0x48] sm:$0xf]
      %v2591 = vld [vmem:[#allocation3 + $0x4c] sm:$0xf]
      %v2592 = vld [vmem:[#allocation3 + $0x50] sm:$0xf]
      %v2593 = vld [vmem:[#allocation3 + $0x54] sm:$0xf]
      %v2594 = vld [vmem:[#allocation3 + $0x58] sm:$0xf]
      %v2595 = vld [vmem:[#allocation3 + $0x5c] sm:$0xf]
      %v2596 = vld [vmem:[#allocation3 + $0x60] sm:$0x3]
      %v2622 = vunpack.c.l.b16 %v2572
      %v2623 = vunpack.c.l.b16 %v2573
      %v2624 = vunpack.c.l.b16 %v2574
      %v2625 = vunpack.c.l.b16 %v2575
      %v2626 = vunpack.c.l.b16 %v2576
      %v2627 = vunpack.c.l.b16 %v2577
      %v2628 = vunpack.c.l.b16 %v2578
      %v2629 = vunpack.c.l.b16 %v2579
      %v2630 = vunpack.c.l.b16 %v2580
      %v2631 = vunpack.c.l.b16 %v2581
      %v2632 = vunpack.c.l.b16 %v2582
      %v2633 = vunpack.c.l.b16 %v2583
      %v2634 = vunpack.c.l.b16 %v2584
      %v2635 = vunpack.c.l.b16 %v2585
      %v2636 = vunpack.c.l.b16 %v2586
      %v2637 = vunpack.c.l.b16 %v2587
      %v2638 = vunpack.c.l.b16 %v2588
      %v2639 = vunpack.c.l.b16 %v2589
      %v2640 = vunpack.c.l.b16 %v2590
      %v2641 = vunpack.c.l.b16 %v2591
      %v2642 = vunpack.c.l.b16 %v2592
      %v2643 = vunpack.c.l.b16 %v2593
      %v2644 = vunpack.c.l.b16 %v2594
      %v2645 = vunpack.c.l.b16 %v2595
      %v2646 = vunpack.c.l.b16 %v2596
      %v2647 = vpack.c.b16 %v2623, %v2622
      %v2648 = vpack.c.b16 %v2625, %v2624
      %v2649 = vpack.c.b16 %v2627, %v2626
      %v2650 = vpack.c.b16 %v2629, %v2628
      %v2651 = vpack.c.b16 %v2631, %v2630
      %v2652 = vpack.c.b16 %v2633, %v2632
      %v2653 = vpack.c.b16 %v2635, %v2634
      %v2654 = vpack.c.b16 %v2637, %v2636
      %v2655 = vpack.c.b16 %v2639, %v2638
      %v2656 = vpack.c.b16 %v2641, %v2640
      %v2657 = vpack.c.b16 %v2643, %v2642
      %v2658 = vpack.c.b16 %v2645, %v2644
      %v2659 = vpack.c.b16 %v2646, %v2646
      %vm2660 = vcmask 1045504
      %v2661 = vrot.slane %v2647, 2
      %v2662 = vrot.slane %v2648, 2
      %v2663 = vsel %vm2660, %v2661, %v2662
      %v2664 = vrot.slane %v2649, 2
      %v2665 = vsel %vm2660, %v2662, %v2664
      %v2666 = vrot.slane %v2650, 2
      %v2667 = vsel %vm2660, %v2664, %v2666
      %v2668 = vrot.slane %v2651, 2
      %v2669 = vsel %vm2660, %v2666, %v2668
      %v2670 = vrot.slane %v2652, 2
      %v2671 = vsel %vm2660, %v2668, %v2670
      %v2672 = vrot.slane %v2653, 2
      %v2673 = vsel %vm2660, %v2670, %v2672
      %v2674 = vrot.slane %v2654, 2
      %v2675 = vsel %vm2660, %v2672, %v2674
      %v2676 = vrot.slane %v2655, 2
      %v2677 = vsel %vm2660, %v2674, %v2676
      %v2678 = vrot.slane %v2656, 2
      %v2679 = vsel %vm2660, %v2676, %v2678
      %v2680 = vrot.slane %v2657, 2
      %v2681 = vsel %vm2660, %v2678, %v2680
      %v2682 = vrot.slane %v2658, 2
      %v2683 = vsel %vm2660, %v2680, %v2682
      %v2684 = vrot.slane %v2659, 2
      %v2685 = vsel %vm2660, %v2682, %v2684
      %2686 = vrot.lane.b32.xlu0 %v2663, 32
      %v2687 = vpop.permute.xlu0 %2686
      %2688 = vrot.lane.b32.xlu0 %v2665, 32
      %v2689 = vpop.permute.xlu0 %2688
      %2690 = vrot.lane.b32.xlu0 %v2667, 32
      %v2691 = vpop.permute.xlu0 %2690
      %2692 = vrot.lane.b32.xlu0 %v2669, 32
      %v2693 = vpop.permute.xlu0 %2692
      %2694 = vrot.lane.b32.xlu0 %v2671, 32
      %v2695 = vpop.permute.xlu0 %2694
      %2696 = vrot.lane.b32.xlu0 %v2673, 32
      %v2697 = vpop.permute.xlu0 %2696
      %2698 = vrot.lane.b32.xlu0 %v2675, 32
      %v2699 = vpop.permute.xlu0 %2698
      %2700 = vrot.lane.b32.xlu0 %v2677, 32
      %v2701 = vpop.permute.xlu0 %2700
      %2702 = vrot.lane.b32.xlu0 %v2679, 32
      %v2703 = vpop.permute.xlu0 %2702
      %2704 = vrot.lane.b32.xlu0 %v2681, 32
      %v2705 = vpop.permute.xlu0 %2704
      %2706 = vrot.lane.b32.xlu0 %v2683, 32
      %v2707 = vpop.permute.xlu0 %2706
      %2708 = vrot.lane.b32.xlu0 %v2685, 32
      %v2709 = vpop.permute.xlu0 %2708
      %vm2722 = vcmask 326912
      %2723 = vst.msk [vmem:[#allocation4] sm:$0xff] %vm2722, %v2687
      %2724 = vst.msk [vmem:[#allocation4 + $0x8] sm:$0xff] %vm2722, %v2689
      %2725 = vst.msk [vmem:[#allocation4 + $0x10] sm:$0xff] %vm2722, %v2691
      %2726 = vst.msk [vmem:[#allocation4 + $0x18] sm:$0xff] %vm2722, %v2693
      %2727 = vst.msk [vmem:[#allocation4 + $0x20] sm:$0xff] %vm2722, %v2695
      %2728 = vst.msk [vmem:[#allocation4 + $0x28] sm:$0xff] %vm2722, %v2697
      %2729 = vst.msk [vmem:[#allocation4 + $0x30] sm:$0xff] %vm2722, %v2699
      %2730 = vst.msk [vmem:[#allocation4 + $0x38] sm:$0xff] %vm2722, %v2701
      %2731 = vst.msk [vmem:[#allocation4 + $0x40] sm:$0xff] %vm2722, %v2703
      %2732 = vst.msk [vmem:[#allocation4 + $0x48] sm:$0xff] %vm2722, %v2705
      %2733 = vst.msk [vmem:[#allocation4 + $0x50] sm:$0xff] %vm2722, %v2707
      %2734 = vst.msk [vmem:[#allocation4 + $0x58] sm:$0xff] %vm2722, %v2709
      %v2735 = vld [vmem:[#allocation4] sm:$0xff]
      %v2736 = vld [vmem:[#allocation4 + $0x8] sm:$0xff]
      %v2737 = vld [vmem:[#allocation4 + $0x10] sm:$0xff]
      %v2738 = vld [vmem:[#allocation4 + $0x18] sm:$0xff]
      %v2739 = vld [vmem:[#allocation4 + $0x20] sm:$0xff]
      %v2740 = vld [vmem:[#allocation4 + $0x28] sm:$0xff]
      %v2741 = vld [vmem:[#allocation4 + $0x30] sm:$0xff]
      %v2742 = vld [vmem:[#allocation4 + $0x38] sm:$0xff]
      %v2743 = vld [vmem:[#allocation4 + $0x40] sm:$0xf]
      %v2744 = vld [vmem:[%s3] sm:$0xf]
      %v2745 = vld [vmem:[%s3 + $0x4] sm:$0xf]
      %v2746 = vld [vmem:[%s3 + $0x8] sm:$0xf]
      %v2747 = vld [vmem:[%s3 + $0xc] sm:$0xf]
      %v2748 = vld [vmem:[%s3 + $0x10] sm:$0xf]
      %v2749 = vld [vmem:[#allocation4] sm:$0x80]
      %v2750 = vld [vmem:[#allocation4 + $0x40] sm:$0xff]
      %v2751 = vld [vmem:[#allocation4 + $0x48] sm:$0x7]
      %s2752 = scalar_lea.vmem %s3, 20
      %v2753 = vld [vmem:[%s2752] sm:$0xf]
      %v2754 = vld [vmem:[%s2752 + $0x4] sm:$0xf]
      %v2755 = vld [vmem:[%s2752 + $0x8] sm:$0xf]
      %v2756 = vld [vmem:[%s2752 + $0xc] sm:$0xf]
      %v2757 = vld [vmem:[%s2752 + $0x10] sm:$0xf]
      %vm2768 = vcmask 1040384
      %v2769 = vrot.slane %v2749, 7
      %v2770 = vrot.slane %v2736, 7
      %v2771 = vsel %vm2768, %v2769, %v2770
      %v2772 = vrot.slane %v2737, 7
      %v2773 = vsel %vm2768, %v2770, %v2772
      %v2774 = vrot.slane %v2738, 7
      %v2775 = vsel %vm2768, %v2772, %v2774
      %v2776 = vrot.slane %v2739, 7
      %v2777 = vsel %vm2768, %v2774, %v2776
      %v2778 = vrot.slane %v2740, 7
      %v2779 = vsel %vm2768, %v2776, %v2778
      %v2780 = vrot.slane %v2741, 7
      %v2781 = vsel %vm2768, %v2778, %v2780
      %v2782 = vrot.slane %v2742, 7
      %v2783 = vsel %vm2768, %v2780, %v2782
      %v2784 = vrot.slane %v2750, 7
      %v2785 = vsel %vm2768, %v2782, %v2784
      %v2786 = vrot.slane %v2751, 7
      %v2787 = vsel %vm2768, %v2784, %v2786
      %v2793 = vunpack.c.l.b16 %v2753
      %v2794 = vunpack.c.l.b16 %v2754
      %v2795 = vunpack.c.l.b16 %v2755
      %v2796 = vunpack.c.l.b16 %v2756
      %v2797 = vunpack.c.l.b16 %v2757
      %v2798 = vpack.c.b16 %v2794, %v2793
      %v2799 = vpack.c.b16 %v2796, %v2795
      %v2800 = vpack.c.b16 %v2797, %v2797
      %vm2803 = vcmask 326656
      %v2805 = vsel %vm2803, %v2771, 0
      %v2808 = vsel %vm2803, %v2773, 0
      %v2811 = vsel %vm2803, %v2775, 0
      %v2814 = vsel %vm2803, %v2777, 0
      %v2817 = vsel %vm2803, %v2779, 0
      %v2820 = vsel %vm2803, %v2781, 0
      %v2823 = vsel %vm2803, %v2783, 0
      %v2826 = vsel %vm2803, %v2785, 0
      %v2829 = vsel %vm2803, %v2787, 0
      %vm2831 = vcmask 1043456
      %v2833 = vsel %vm2831, %v2800, 0
      %2835 = vmatprep.subr.bf16.mxu0 0
      %2836 = vmatpush1.bf16.msra.mxu0 %v2798
      %2837 = vmatprep.subr.bf16.mxu0 0
      %2838 = vmatpush1.bf16.msra.mxu0 %v2799
      %2839 = vmatprep.subr.bf16.mxu0 0
      %2840 = vmatpush1.bf16.msra.mxu0 %v2833
      %2841 = vmatprep.subr.bf16.mxu0 0
      %2842 = vmatpush1.bf16.msra.mxu0 0
      %2843 = vmatprep.subr.bf16.mxu0 0
      %2844 = vmatpush1.bf16.msra.mxu0 0
      %2845 = vmatprep.subr.bf16.mxu0 0
      %2846 = vmatpush1.bf16.msra.mxu0 0
      %2847 = vmatprep.subr.bf16.mxu0 0
      %2848 = vmatpush1.bf16.msra.mxu0 0
      %2849 = vmatprep.subr.bf16.mxu0 0
      %2850 = vmatpush1.bf16.msra.mxu0 0
      %2851 = vmatprep.subr.bf16.mxu0 0
      %2852 = vmatpush1.bf16.msra.mxu0 0
      %2853 = vmatprep.subr.bf16.mxu0 0
      %2854 = vmatpush1.bf16.msra.mxu0 0
      %2855 = vmatprep.subr.bf16.mxu0 0
      %2856 = vmatpush1.bf16.msra.mxu0 0
      %2857 = vmatprep.subr.bf16.mxu0 0
      %2858 = vmatpush1.bf16.msra.mxu0 0
      %2859 = vmatprep.subr.bf16.mxu0 0
      %2860 = vmatpush1.bf16.msra.mxu0 0
      %2861 = vmatprep.subr.bf16.mxu0 0
      %2862 = vmatpush1.bf16.msra.mxu0 0
      %2863 = vmatprep.subr.bf16.mxu0 0
      %2864 = vmatpush1.bf16.msra.mxu0 0
      %2865 = vmatprep.subr.bf16.mxu0 0
      %2866 = vmatpush1.bf16.msra.mxu0 0
      %2867 = vmatprep.mubr.bf16.mxu0 0
      %2868 = vmatmul.mubr.bf16.gmra.mrb[0].mxu0 %v2805
      %v2869 = vpop.f32.mrb[0].mxu0
      %v2870 = vadd.f32 0.0, %v2869
      %v2871 = vpop.f32.mrb[0].mxu0
      %v2872 = vpop.f32.mrb[0].mxu0
      %v2873 = vadd.f32 0.0, %v2872
      %v2874 = vpop.f32.mrb[0].mxu0
      %2875 = vmatprep.mubr.bf16.mxu0 0
      %2876 = vmatmul.mubr.bf16.gmra.mrb[0].mxu0 %v2808
      %v2877 = vpop.f32.mrb[0].mxu0
      %v2878 = vadd.f32 0.0, %v2877
      %v2879 = vpop.f32.mrb[0].mxu0
      %v2880 = vpop.f32.mrb[0].mxu0
      %v2881 = vadd.f32 0.0, %v2880
      %v2882 = vpop.f32.mrb[0].mxu0
      %2883 = vmatprep.mubr.bf16.mxu0 0
      %2884 = vmatmul.mubr.bf16.gmra.mrb[0].mxu0 %v2811
      %v2885 = vpop.f32.mrb[0].mxu0
      %v2886 = vadd.f32 0.0, %v2885
      %v2887 = vpop.f32.mrb[0].mxu0
      %v2888 = vpop.f32.mrb[0].mxu0
      %v2889 = vadd.f32 0.0, %v2888
      %v2890 = vpop.f32.mrb[0].mxu0
      %2891 = vmatprep.mubr.bf16.mxu0 0
      %2892 = vmatmul.mubr.bf16.gmra.mrb[0].mxu0 %v2814
      %v2893 = vpop.f32.mrb[0].mxu0
      %v2894 = vadd.f32 0.0, %v2893
      %v2895 = vpop.f32.mrb[0].mxu0
      %v2896 = vpop.f32.mrb[0].mxu0
      %v2897 = vadd.f32 0.0, %v2896
      %v2898 = vpop.f32.mrb[0].mxu0
      %2899 = vmatprep.mubr.bf16.mxu0 0
      %2900 = vmatmul.mubr.bf16.gmra.mrb[0].mxu0 %v2817
      %v2901 = vpop.f32.mrb[0].mxu0
      %v2902 = vadd.f32 0.0, %v2901
      %v2903 = vpop.f32.mrb[0].mxu0
      %v2904 = vpop.f32.mrb[0].mxu0
      %v2905 = vadd.f32 0.0, %v2904
      %v2906 = vpop.f32.mrb[0].mxu0
      %2907 = vmatprep.mubr.bf16.mxu0 0
      %2908 = vmatmul.mubr.bf16.gmra.mrb[0].mxu0 %v2820
      %v2909 = vpop.f32.mrb[0].mxu0
      %v2910 = vadd.f32 0.0, %v2909
      %v2911 = vpop.f32.mrb[0].mxu0
      %v2912 = vpop.f32.mrb[0].mxu0
      %v2913 = vadd.f32 0.0, %v2912
      %v2914 = vpop.f32.mrb[0].mxu0
      %2915 = vmatprep.mubr.bf16.mxu0 0
      %2916 = vmatmul.mubr.bf16.gmra.mrb[0].mxu0 %v2823
      %v2917 = vpop.f32.mrb[0].mxu0
      %v2918 = vadd.f32 0.0, %v2917
      %v2919 = vpop.f32.mrb[0].mxu0
      %v2920 = vpop.f32.mrb[0].mxu0
      %v2921 = vadd.f32 0.0, %v2920
      %v2922 = vpop.f32.mrb[0].mxu0
      %2923 = vmatprep.mubr.bf16.mxu0 0
      %2924 = vmatmul.mubr.bf16.gmra.mrb[0].mxu0 %v2826
      %v2925 = vpop.f32.mrb[0].mxu0
      %v2926 = vadd.f32 0.0, %v2925
      %v2927 = vpop.f32.mrb[0].mxu0
      %v2928 = vpop.f32.mrb[0].mxu0
      %v2929 = vadd.f32 0.0, %v2928
      %v2930 = vpop.f32.mrb[0].mxu0
      %2931 = vmatprep.mubr.bf16.mxu0 0
      %2932 = vmatmul.mubr.bf16.gmra.mrb[0].mxu0 %v2829
      %v2933 = vpop.f32.mrb[0].mxu0
      %v2934 = vadd.f32 0.0, %v2933
      %v2935 = vpop.f32.mrb[0].mxu0
      %v2936 = vpop.f32.mrb[0].mxu0
      %v2937 = vpop.f32.mrb[0].mxu0
      %2938 = vdwg.mxu0
      %v2944 = vunpack.c.l.b16 %v2744
      %v2945 = vunpack.c.l.b16 %v2745
      %v2946 = vunpack.c.l.b16 %v2746
      %v2947 = vunpack.c.l.b16 %v2747
      %v2948 = vunpack.c.l.b16 %v2748
      %v2949 = vpack.c.b16 %v2945, %v2944
      %v2950 = vpack.c.b16 %v2947, %v2946
      %v2951 = vpack.c.b16 %v2948, %v2948
      %v2955 = vsel %vm2803, %v2735, 0
      %v2958 = vsel %vm2803, %v2736, 0
      %v2961 = vsel %vm2803, %v2737, 0
      %v2964 = vsel %vm2803, %v2738, 0
      %v2967 = vsel %vm2803, %v2739, 0
      %v2970 = vsel %vm2803, %v2740, 0
      %v2973 = vsel %vm2803, %v2741, 0
      %v2976 = vsel %vm2803, %v2742, 0
      %v2979 = vsel %vm2803, %v2743, 0
      %v2982 = vsel %vm2831, %v2951, 0
      %2984 = vmatprep.subr.bf16.mxu0 0
      %2985 = vmatpush1.bf16.msra.mxu0 %v2949
      %2986 = vmatprep.subr.bf16.mxu0 0
      %2987 = vmatpush1.bf16.msra.mxu0 %v2950
      %2988 = vmatprep.subr.bf16.mxu0 0
      %2989 = vmatpush1.bf16.msra.mxu0 %v2982
      %2990 = vmatprep.subr.bf16.mxu0 0
      %2991 = vmatpush1.bf16.msra.mxu0 0
      %2992 = vmatprep.subr.bf16.mxu0 0
      %2993 = vmatpush1.bf16.msra.mxu0 0
      %2994 = vmatprep.subr.bf16.mxu0 0
      %2995 = vmatpush1.bf16.msra.mxu0 0
      %2996 = vmatprep.subr.bf16.mxu0 0
      %2997 = vmatpush1.bf16.msra.mxu0 0
      %2998 = vmatprep.subr.bf16.mxu0 0
      %2999 = vmatpush1.bf16.msra.mxu0 0
      %3000 = vmatprep.subr.bf16.mxu0 0
      %3001 = vmatpush1.bf16.msra.mxu0 0
      %3002 = vmatprep.subr.bf16.mxu0 0
      %3003 = vmatpush1.bf16.msra.mxu0 0
      %3004 = vmatprep.subr.bf16.mxu0 0
      %3005 = vmatpush1.bf16.msra.mxu0 0
      %3006 = vmatprep.subr.bf16.mxu0 0
      %3007 = vmatpush1.bf16.msra.mxu0 0
      %3008 = vmatprep.subr.bf16.mxu0 0
      %3009 = vmatpush1.bf16.msra.mxu0 0
      %3010 = vmatprep.subr.bf16.mxu0 0
      %3011 = vmatpush1.bf16.msra.mxu0 0
      %3012 = vmatprep.subr.bf16.mxu0 0
      %3013 = vmatpush1.bf16.msra.mxu0 0
      %3014 = vmatprep.subr.bf16.mxu0 0
      %3015 = vmatpush1.bf16.msra.mxu0 0
      %3016 = vmatprep.mubr.bf16.mxu0 0
      %3017 = vmatmul.mubr.bf16.gmra.mrb[0].mxu0 %v2955
      %v3018 = vpop.f32.mrb[0].mxu0
      %v3019 = vadd.f32 %v2870, %v3018
      %v3020 = vpop.f32.mrb[0].mxu0
      %v3021 = vpop.f32.mrb[0].mxu0
      %v3022 = vadd.f32 %v2873, %v3021
      %v3023 = vpop.f32.mrb[0].mxu0
      %3024 = vmatprep.mubr.bf16.mxu0 0
      %3025 = vmatmul.mubr.bf16.gmra.mrb[0].mxu0 %v2958
      %v3026 = vpop.f32.mrb[0].mxu0
      %v3027 = vadd.f32 %v2878, %v3026
      %v3028 = vpop.f32.mrb[0].mxu0
      %v3029 = vpop.f32.mrb[0].mxu0
      %v3030 = vadd.f32 %v2881, %v3029
      %v3031 = vpop.f32.mrb[0].mxu0
      %3032 = vmatprep.mubr.bf16.mxu0 0
      %3033 = vmatmul.mubr.bf16.gmra.mrb[0].mxu0 %v2961
      %v3034 = vpop.f32.mrb[0].mxu0
      %v3035 = vadd.f32 %v2886, %v3034
      %v3036 = vpop.f32.mrb[0].mxu0
      %v3037 = vpop.f32.mrb[0].mxu0
      %v3038 = vadd.f32 %v2889, %v3037
      %v3039 = vpop.f32.mrb[0].mxu0
      %3040 = vmatprep.mubr.bf16.mxu0 0
      %3041 = vmatmul.mubr.bf16.gmra.mrb[0].mxu0 %v2964
      %v3042 = vpop.f32.mrb[0].mxu0
      %v3043 = vadd.f32 %v2894, %v3042
      %v3044 = vpop.f32.mrb[0].mxu0
      %v3045 = vpop.f32.mrb[0].mxu0
      %v3046 = vadd.f32 %v2897, %v3045
      %v3047 = vpop.f32.mrb[0].mxu0
      %3048 = vmatprep.mubr.bf16.mxu0 0
      %3049 = vmatmul.mubr.bf16.gmra.mrb[0].mxu0 %v2967
      %v3050 = vpop.f32.mrb[0].mxu0
      %v3051 = vadd.f32 %v2902, %v3050
      %v3052 = vpop.f32.mrb[0].mxu0
      %v3053 = vpop.f32.mrb[0].mxu0
      %v3054 = vadd.f32 %v2905, %v3053
      %v3055 = vpop.f32.mrb[0].mxu0
      %3056 = vmatprep.mubr.bf16.mxu0 0
      %3057 = vmatmul.mubr.bf16.gmra.mrb[0].mxu0 %v2970
      %v3058 = vpop.f32.mrb[0].mxu0
      %v3059 = vadd.f32 %v2910, %v3058
      %v3060 = vpop.f32.mrb[0].mxu0
      %v3061 = vpop.f32.mrb[0].mxu0
      %v3062 = vadd.f32 %v2913, %v3061
      %v3063 = vpop.f32.mrb[0].mxu0
      %3064 = vmatprep.mubr.bf16.mxu0 0
      %3065 = vmatmul.mubr.bf16.gmra.mrb[0].mxu0 %v2973
      %v3066 = vpop.f32.mrb[0].mxu0
      %v3067 = vadd.f32 %v2918, %v3066
      %v3068 = vpop.f32.mrb[0].mxu0
      %v3069 = vpop.f32.mrb[0].mxu0
      %v3070 = vadd.f32 %v2921, %v3069
      %v3071 = vpop.f32.mrb[0].mxu0
      %3072 = vmatprep.mubr.bf16.mxu0 0
      %3073 = vmatmul.mubr.bf16.gmra.mrb[0].mxu0 %v2976
      %v3074 = vpop.f32.mrb[0].mxu0
      %v3075 = vadd.f32 %v2926, %v3074
      %v3076 = vpop.f32.mrb[0].mxu0
      %v3077 = vpop.f32.mrb[0].mxu0
      %v3078 = vadd.f32 %v2929, %v3077
      %v3079 = vpop.f32.mrb[0].mxu0
      %3080 = vmatprep.mubr.bf16.mxu0 0
      %3081 = vmatmul.mubr.bf16.gmra.mrb[0].mxu0 %v2979
      %v3082 = vpop.f32.mrb[0].mxu0
      %v3083 = vadd.f32 %v2934, %v3082
      %v3084 = vpop.f32.mrb[0].mxu0
      %v3085 = vpop.f32.mrb[0].mxu0
      %v3086 = vpop.f32.mrb[0].mxu0
      %3087 = vdwg.mxu0
      %v3088 = vld [vmem:[#allocation4 + $0x8] sm:$0xc0]
      %v3089 = vld [vmem:[#allocation4 + $0x10] sm:$0xff]
      %v3090 = vld [vmem:[#allocation4 + $0x18] sm:$0xff]
      %v3091 = vld [vmem:[#allocation4 + $0x20] sm:$0xff]
      %v3092 = vld [vmem:[#allocation4 + $0x28] sm:$0xff]
      %v3093 = vld [vmem:[#allocation4 + $0x30] sm:$0xff]
      %v3094 = vld [vmem:[#allocation4 + $0x38] sm:$0xff]
      %v3095 = vld [vmem:[#allocation4 + $0x40] sm:$0xff]
      %v3096 = vld [vmem:[#allocation4 + $0x48] sm:$0xff]
      %v3097 = vld [vmem:[#allocation4 + $0x50] sm:$0x3]
      %s3098 = scalar_lea.vmem %s3, 40
      %v3099 = vld [vmem:[%s3098] sm:$0xf]
      %v3100 = vld [vmem:[%s3098 + $0x4] sm:$0xf]
      %v3101 = vld [vmem:[%s3098 + $0x8] sm:$0xf]
      %v3102 = vld [vmem:[%s3098 + $0xc] sm:$0xf]
      %v3103 = vld [vmem:[%s3098 + $0x10] sm:$0xf]
      %vm3114 = vcmask 1041408
      %v3115 = vrot.slane %v3088, 6
      %v3116 = vrot.slane %v3089, 6
      %v3117 = vsel %vm3114, %v3115, %v3116
      %v3118 = vrot.slane %v3090, 6
      %v3119 = vsel %vm3114, %v3116, %v3118
      %v3120 = vrot.slane %v3091, 6
      %v3121 = vsel %vm3114, %v3118, %v3120
      %v3122 = vrot.slane %v3092, 6
      %v3123 = vsel %vm3114, %v3120, %v3122
      %v3124 = vrot.slane %v3093, 6
      %v3125 = vsel %vm3114, %v3122, %v3124
      %v3126 = vrot.slane %v3094, 6
      %v3127 = vsel %vm3114, %v3124, %v3126
      %v3128 = vrot.slane %v3095, 6
      %v3129 = vsel %vm3114, %v3126, %v3128
      %v3130 = vrot.slane %v3096, 6
      %v3131 = vsel %vm3114, %v3128, %v3130
      %v3132 = vrot.slane %v3097, 6
      %v3133 = vsel %vm3114, %v3130, %v3132
      %v3139 = vunpack.c.l.b16 %v3099
      %v3140 = vunpack.c.l.b16 %v3100
      %v3141 = vunpack.c.l.b16 %v3101
      %v3142 = vunpack.c.l.b16 %v3102
      %v3143 = vunpack.c.l.b16 %v3103
      %v3144 = vpack.c.b16 %v3140, %v3139
      %v3145 = vpack.c.b16 %v3142, %v3141
      %v3146 = vpack.c.b16 %v3143, %v3143
      %v3150 = vsel %vm2803, %v3117, 0
      %v3153 = vsel %vm2803, %v3119, 0
      %v3156 = vsel %vm2803, %v3121, 0
      %v3159 = vsel %vm2803, %v3123, 0
      %v3162 = vsel %vm2803, %v3125, 0
      %v3165 = vsel %vm2803, %v3127, 0
      %v3168 = vsel %vm2803, %v3129, 0
      %v3171 = vsel %vm2803, %v3131, 0
      %v3174 = vsel %vm2803, %v3133, 0
      %v3177 = vsel %vm2831, %v3146, 0
      %3179 = vmatprep.subr.bf16.mxu0 0
      %3180 = vmatpush1.bf16.msra.mxu0 %v3144
      %3181 = vmatprep.subr.bf16.mxu0 0
      %3182 = vmatpush1.bf16.msra.mxu0 %v3145
      %3183 = vmatprep.subr.bf16.mxu0 0
      %3184 = vmatpush1.bf16.msra.mxu0 %v3177
      %3185 = vmatprep.subr.bf16.mxu0 0
      %3186 = vmatpush1.bf16.msra.mxu0 0
      %3187 = vmatprep.subr.bf16.mxu0 0
      %3188 = vmatpush1.bf16.msra.mxu0 0
      %3189 = vmatprep.subr.bf16.mxu0 0
      %3190 = vmatpush1.bf16.msra.mxu0 0
      %3191 = vmatprep.subr.bf16.mxu0 0
      %3192 = vmatpush1.bf16.msra.mxu0 0
      %3193 = vmatprep.subr.bf16.mxu0 0
      %3194 = vmatpush1.bf16.msra.mxu0 0
      %3195 = vmatprep.subr.bf16.mxu0 0
      %3196 = vmatpush1.bf16.msra.mxu0 0
      %3197 = vmatprep.subr.bf16.mxu0 0
      %3198 = vmatpush1.bf16.msra.mxu0 0
      %3199 = vmatprep.subr.bf16.mxu0 0
      %3200 = vmatpush1.bf16.msra.mxu0 0
      %3201 = vmatprep.subr.bf16.mxu0 0
      %3202 = vmatpush1.bf16.msra.mxu0 0
      %3203 = vmatprep.subr.bf16.mxu0 0
      %3204 = vmatpush1.bf16.msra.mxu0 0
      %3205 = vmatprep.subr.bf16.mxu0 0
      %3206 = vmatpush1.bf16.msra.mxu0 0
      %3207 = vmatprep.subr.bf16.mxu0 0
      %3208 = vmatpush1.bf16.msra.mxu0 0
      %3209 = vmatprep.subr.bf16.mxu0 0
      %3210 = vmatpush1.bf16.msra.mxu0 0
      %3211 = vmatprep.mubr.bf16.mxu0 0
      %3212 = vmatmul.mubr.bf16.gmra.mrb[0].mxu0 %v3150
      %v3213 = vpop.f32.mrb[0].mxu0
      %v3214 = vadd.f32 0.0, %v3213
      %v3215 = vpop.f32.mrb[0].mxu0
      %v3216 = vpop.f32.mrb[0].mxu0
      %v3217 = vadd.f32 0.0, %v3216
      %v3218 = vpop.f32.mrb[0].mxu0
      %3219 = vmatprep.mubr.bf16.mxu0 0
      %3220 = vmatmul.mubr.bf16.gmra.mrb[0].mxu0 %v3153
      %v3221 = vpop.f32.mrb[0].mxu0
      %v3222 = vadd.f32 0.0, %v3221
      %v3223 = vpop.f32.mrb[0].mxu0
      %v3224 = vpop.f32.mrb[0].mxu0
      %v3225 = vadd.f32 0.0, %v3224
      %v3226 = vpop.f32.mrb[0].mxu0
      %3227 = vmatprep.mubr.bf16.mxu0 0
      %3228 = vmatmul.mubr.bf16.gmra.mrb[0].mxu0 %v3156
      %v3229 = vpop.f32.mrb[0].mxu0
      %v3230 = vadd.f32 0.0, %v3229
      %v3231 = vpop.f32.mrb[0].mxu0
      %v3232 = vpop.f32.mrb[0].mxu0
      %v3233 = vadd.f32 0.0, %v3232
      %v3234 = vpop.f32.mrb[0].mxu0
      %3235 = vmatprep.mubr.bf16.mxu0 0
      %3236 = vmatmul.mubr.bf16.gmra.mrb[0].mxu0 %v3159
      %v3237 = vpop.f32.mrb[0].mxu0
      %v3238 = vadd.f32 0.0, %v3237
      %v3239 = vpop.f32.mrb[0].mxu0
      %v3240 = vpop.f32.mrb[0].mxu0
      %v3241 = vadd.f32 0.0, %v3240
      %v3242 = vpop.f32.mrb[0].mxu0
      %3243 = vmatprep.mubr.bf16.mxu0 0
      %3244 = vmatmul.mubr.bf16.gmra.mrb[0].mxu0 %v3162
      %v3245 = vpop.f32.mrb[0].mxu0
      %v3246 = vadd.f32 0.0, %v3245
      %v3247 = vpop.f32.mrb[0].mxu0
      %v3248 = vpop.f32.mrb[0].mxu0
      %v3249 = vadd.f32 0.0, %v3248
      %v3250 = vpop.f32.mrb[0].mxu0
      %3251 = vmatprep.mubr.bf16.mxu0 0
      %3252 = vmatmul.mubr.bf16.gmra.mrb[0].mxu0 %v3165
      %v3253 = vpop.f32.mrb[0].mxu0
      %v3254 = vadd.f32 0.0, %v3253
      %v3255 = vpop.f32.mrb[0].mxu0
      %v3256 = vpop.f32.mrb[0].mxu0
      %v3257 = vadd.f32 0.0, %v3256
      %v3258 = vpop.f32.mrb[0].mxu0
      %3259 = vmatprep.mubr.bf16.mxu0 0
      %3260 = vmatmul.mubr.bf16.gmra.mrb[0].mxu0 %v3168
      %v3261 = vpop.f32.mrb[0].mxu0
      %v3262 = vadd.f32 0.0, %v3261
      %v3263 = vpop.f32.mrb[0].mxu0
      %v3264 = vpop.f32.mrb[0].mxu0
      %v3265 = vadd.f32 0.0, %v3264
      %v3266 = vpop.f32.mrb[0].mxu0
      %3267 = vmatprep.mubr.bf16.mxu0 0
      %3268 = vmatmul.mubr.bf16.gmra.mrb[0].mxu0 %v3171
      %v3269 = vpop.f32.mrb[0].mxu0
      %v3270 = vadd.f32 0.0, %v3269
      %v3271 = vpop.f32.mrb[0].mxu0
      %v3272 = vpop.f32.mrb[0].mxu0
      %v3273 = vadd.f32 0.0, %v3272
      %v3274 = vpop.f32.mrb[0].mxu0
      %3275 = vmatprep.mubr.bf16.mxu0 0
      %3276 = vmatmul.mubr.bf16.gmra.mrb[0].mxu0 %v3174
      %v3277 = vpop.f32.mrb[0].mxu0
      %v3278 = vadd.f32 0.0, %v3277
      %v3279 = vpop.f32.mrb[0].mxu0
      %v3280 = vpop.f32.mrb[0].mxu0
      %v3281 = vpop.f32.mrb[0].mxu0
      %3282 = vdwg.mxu0
      %v3283 = vadd.f32 %v3019, %v3214
      %v3284 = vadd.f32 %v3022, %v3217
      %v3285 = vadd.f32 %v3027, %v3222
      %v3286 = vadd.f32 %v3030, %v3225
      %v3287 = vadd.f32 %v3035, %v3230
      %v3288 = vadd.f32 %v3038, %v3233
      %v3289 = vadd.f32 %v3043, %v3238
      %v3290 = vadd.f32 %v3046, %v3241
      %v3291 = vadd.f32 %v3051, %v3246
      %v3292 = vadd.f32 %v3054, %v3249
      %v3293 = vadd.f32 %v3059, %v3254
      %v3294 = vadd.f32 %v3062, %v3257
      %v3295 = vadd.f32 %v3067, %v3262
      %v3296 = vadd.f32 %v3070, %v3265
      %v3297 = vadd.f32 %v3075, %v3270
      %v3298 = vadd.f32 %v3078, %v3273
      %v3299 = vadd.f32 %v3083, %v3278
      %v3300 = vld [vmem:[#allocation4 + $0x10] sm:$0xe0]
      %v3301 = vld [vmem:[#allocation4 + $0x18] sm:$0xff]
      %v3302 = vld [vmem:[#allocation4 + $0x20] sm:$0xff]
      %v3303 = vld [vmem:[#allocation4 + $0x28] sm:$0xff]
      %v3304 = vld [vmem:[#allocation4 + $0x30] sm:$0xff]
      %v3305 = vld [vmem:[#allocation4 + $0x38] sm:$0xff]
      %v3306 = vld [vmem:[#allocation4 + $0x40] sm:$0xff]
      %v3307 = vld [vmem:[#allocation4 + $0x48] sm:$0xff]
      %v3308 = vld [vmem:[#allocation4 + $0x50] sm:$0xff]
      %v3309 = vld [vmem:[#allocation4 + $0x58] sm:$0x1]
      %s3310 = scalar_lea.vmem %s3, 60
      %v3311 = vld [vmem:[%s3310] sm:$0xf]
      %v3312 = vld [vmem:[%s3310 + $0x4] sm:$0xf]
      %v3313 = vld [vmem:[%s3310 + $0x8] sm:$0xf]
      %v3314 = vld [vmem:[%s3310 + $0xc] sm:$0xf]
      %v3315 = vld [vmem:[%s3310 + $0x10] sm:$0xf]
      %vm3326 = vcmask 1042432
      %v3327 = vrot.slane %v3300, 5
      %v3328 = vrot.slane %v3301, 5
      %v3329 = vsel %vm3326, %v3327, %v3328
      %v3330 = vrot.slane %v3302, 5
      %v3331 = vsel %vm3326, %v3328, %v3330
      %v3332 = vrot.slane %v3303, 5
      %v3333 = vsel %vm3326, %v3330, %v3332
      %v3334 = vrot.slane %v3304, 5
      %v3335 = vsel %vm3326, %v3332, %v3334
      %v3336 = vrot.slane %v3305, 5
      %v3337 = vsel %vm3326, %v3334, %v3336
      %v3338 = vrot.slane %v3306, 5
      %v3339 = vsel %vm3326, %v3336, %v3338
      %v3340 = vrot.slane %v3307, 5
      %v3341 = vsel %vm3326, %v3338, %v3340
      %v3342 = vrot.slane %v3308, 5
      %v3343 = vsel %vm3326, %v3340, %v3342
      %v3344 = vrot.slane %v3309, 5
      %v3345 = vsel %vm3326, %v3342, %v3344
      %v3351 = vunpack.c.l.b16 %v3311
      %v3352 = vunpack.c.l.b16 %v3312
      %v3353 = vunpack.c.l.b16 %v3313
      %v3354 = vunpack.c.l.b16 %v3314
      %v3355 = vunpack.c.l.b16 %v3315
      %v3356 = vpack.c.b16 %v3352, %v3351
      %v3357 = vpack.c.b16 %v3354, %v3353
      %v3358 = vpack.c.b16 %v3355, %v3355
      %v3362 = vsel %vm2803, %v3329, 0
      %v3365 = vsel %vm2803, %v3331, 0
      %v3368 = vsel %vm2803, %v3333, 0
      %v3371 = vsel %vm2803, %v3335, 0
      %v3374 = vsel %vm2803, %v3337, 0
      %v3377 = vsel %vm2803, %v3339, 0
      %v3380 = vsel %vm2803, %v3341, 0
      %v3383 = vsel %vm2803, %v3343, 0
      %v3386 = vsel %vm2803, %v3345, 0
      %v3389 = vsel %vm2831, %v3358, 0
      %3391 = vmatprep.subr.bf16.mxu0 0
      %3392 = vmatpush1.bf16.msra.mxu0 %v3356
      %3393 = vmatprep.subr.bf16.mxu0 0
      %3394 = vmatpush1.bf16.msra.mxu0 %v3357
      %3395 = vmatprep.subr.bf16.mxu0 0
      %3396 = vmatpush1.bf16.msra.mxu0 %v3389
      %3397 = vmatprep.subr.bf16.mxu0 0
      %3398 = vmatpush1.bf16.msra.mxu0 0
      %3399 = vmatprep.subr.bf16.mxu0 0
      %3400 = vmatpush1.bf16.msra.mxu0 0
      %3401 = vmatprep.subr.bf16.mxu0 0
      %3402 = vmatpush1.bf16.msra.mxu0 0
      %3403 = vmatprep.subr.bf16.mxu0 0
      %3404 = vmatpush1.bf16.msra.mxu0 0
      %3405 = vmatprep.subr.bf16.mxu0 0
      %3406 = vmatpush1.bf16.msra.mxu0 0
      %3407 = vmatprep.subr.bf16.mxu0 0
      %3408 = vmatpush1.bf16.msra.mxu0 0
      %3409 = vmatprep.subr.bf16.mxu0 0
      %3410 = vmatpush1.bf16.msra.mxu0 0
      %3411 = vmatprep.subr.bf16.mxu0 0
      %3412 = vmatpush1.bf16.msra.mxu0 0
      %3413 = vmatprep.subr.bf16.mxu0 0
      %3414 = vmatpush1.bf16.msra.mxu0 0
      %3415 = vmatprep.subr.bf16.mxu0 0
      %3416 = vmatpush1.bf16.msra.mxu0 0
      %3417 = vmatprep.subr.bf16.mxu0 0
      %3418 = vmatpush1.bf16.msra.mxu0 0
      %3419 = vmatprep.subr.bf16.mxu0 0
      %3420 = vmatpush1.bf16.msra.mxu0 0
      %3421 = vmatprep.subr.bf16.mxu0 0
      %3422 = vmatpush1.bf16.msra.mxu0 0
      %3423 = vmatprep.mubr.bf16.mxu0 0
      %3424 = vmatmul.mubr.bf16.gmra.mrb[0].mxu0 %v3362
      %v3425 = vpop.f32.mrb[0].mxu0
      %v3426 = vadd.f32 0.0, %v3425
      %v3427 = vpop.f32.mrb[0].mxu0
      %v3428 = vpop.f32.mrb[0].mxu0
      %v3429 = vadd.f32 0.0, %v3428
      %v3430 = vpop.f32.mrb[0].mxu0
      %3431 = vmatprep.mubr.bf16.mxu0 0
      %3432 = vmatmul.mubr.bf16.gmra.mrb[0].mxu0 %v3365
      %v3433 = vpop.f32.mrb[0].mxu0
      %v3434 = vadd.f32 0.0, %v3433
      %v3435 = vpop.f32.mrb[0].mxu0
      %v3436 = vpop.f32.mrb[0].mxu0
      %v3437 = vadd.f32 0.0, %v3436
      %v3438 = vpop.f32.mrb[0].mxu0
      %3439 = vmatprep.mubr.bf16.mxu0 0
      %3440 = vmatmul.mubr.bf16.gmra.mrb[0].mxu0 %v3368
      %v3441 = vpop.f32.mrb[0].mxu0
      %v3442 = vadd.f32 0.0, %v3441
      %v3443 = vpop.f32.mrb[0].mxu0
      %v3444 = vpop.f32.mrb[0].mxu0
      %v3445 = vadd.f32 0.0, %v3444
      %v3446 = vpop.f32.mrb[0].mxu0
      %3447 = vmatprep.mubr.bf16.mxu0 0
      %3448 = vmatmul.mubr.bf16.gmra.mrb[0].mxu0 %v3371
      %v3449 = vpop.f32.mrb[0].mxu0
      %v3450 = vadd.f32 0.0, %v3449
      %v3451 = vpop.f32.mrb[0].mxu0
      %v3452 = vpop.f32.mrb[0].mxu0
      %v3453 = vadd.f32 0.0, %v3452
      %v3454 = vpop.f32.mrb[0].mxu0
      %3455 = vmatprep.mubr.bf16.mxu0 0
      %3456 = vmatmul.mubr.bf16.gmra.mrb[0].mxu0 %v3374
      %v3457 = vpop.f32.mrb[0].mxu0
      %v3458 = vadd.f32 0.0, %v3457
      %v3459 = vpop.f32.mrb[0].mxu0
      %v3460 = vpop.f32.mrb[0].mxu0
      %v3461 = vadd.f32 0.0, %v3460
      %v3462 = vpop.f32.mrb[0].mxu0
      %3463 = vmatprep.mubr.bf16.mxu0 0
      %3464 = vmatmul.mubr.bf16.gmra.mrb[0].mxu0 %v3377
      %v3465 = vpop.f32.mrb[0].mxu0
      %v3466 = vadd.f32 0.0, %v3465
      %v3467 = vpop.f32.mrb[0].mxu0
      %v3468 = vpop.f32.mrb[0].mxu0
      %v3469 = vadd.f32 0.0, %v3468
      %v3470 = vpop.f32.mrb[0].mxu0
      %3471 = vmatprep.mubr.bf16.mxu0 0
      %3472 = vmatmul.mubr.bf16.gmra.mrb[0].mxu0 %v3380
      %v3473 = vpop.f32.mrb[0].mxu0
      %v3474 = vadd.f32 0.0, %v3473
      %v3475 = vpop.f32.mrb[0].mxu0
      %v3476 = vpop.f32.mrb[0].mxu0
      %v3477 = vadd.f32 0.0, %v3476
      %v3478 = vpop.f32.mrb[0].mxu0
      %3479 = vmatprep.mubr.bf16.mxu0 0
      %3480 = vmatmul.mubr.bf16.gmra.mrb[0].mxu0 %v3383
      %v3481 = vpop.f32.mrb[0].mxu0
      %v3482 = vadd.f32 0.0, %v3481
      %v3483 = vpop.f32.mrb[0].mxu0
      %v3484 = vpop.f32.mrb[0].mxu0
      %v3485 = vadd.f32 0.0, %v3484
      %v3486 = vpop.f32.mrb[0].mxu0
      %3487 = vmatprep.mubr.bf16.mxu0 0
      %3488 = vmatmul.mubr.bf16.gmra.mrb[0].mxu0 %v3386
      %v3489 = vpop.f32.mrb[0].mxu0
      %v3490 = vadd.f32 0.0, %v3489
      %v3491 = vpop.f32.mrb[0].mxu0
      %v3492 = vpop.f32.mrb[0].mxu0
      %v3493 = vpop.f32.mrb[0].mxu0
      %3494 = vdwg.mxu0
      %v3495 = vadd.f32 %v3283, %v3426
      %v3496 = vadd.f32 %v3284, %v3429
      %v3497 = vadd.f32 %v3285, %v3434
      %v3498 = vadd.f32 %v3286, %v3437
      %v3499 = vadd.f32 %v3287, %v3442
      %v3500 = vadd.f32 %v3288, %v3445
      %v3501 = vadd.f32 %v3289, %v3450
      %v3502 = vadd.f32 %v3290, %v3453
      %v3503 = vadd.f32 %v3291, %v3458
      %v3504 = vadd.f32 %v3292, %v3461
      %v3505 = vadd.f32 %v3293, %v3466
      %v3506 = vadd.f32 %v3294, %v3469
      %v3507 = vadd.f32 %v3295, %v3474
      %v3508 = vadd.f32 %v3296, %v3477
      %v3509 = vadd.f32 %v3297, %v3482
      %v3510 = vadd.f32 %v3298, %v3485
      %v3511 = vadd.f32 %v3299, %v3490
      %v3512 = vld [vmem:[#allocation4 + $0x18] sm:$0xf0]
      %v3513 = vld [vmem:[#allocation4 + $0x58] sm:$0xff]
      %s3514 = scalar_lea.vmem %s3, 80
      %v3515 = vld [vmem:[%s3514] sm:$0xf]
      %v3516 = vld [vmem:[%s3514 + $0x4] sm:$0xf]
      %v3517 = vld [vmem:[%s3514 + $0x8] sm:$0xf]
      %v3518 = vld [vmem:[%s3514 + $0xc] sm:$0xf]
      %v3519 = vld [vmem:[%s3514 + $0x10] sm:$0xf]
      %vm3522 = vcmask 1043456
      %v3523 = vrot.slane %v3512, 4
      %v3524 = vrot.slane %v3302, 4
      %v3525 = vsel %vm3522, %v3523, %v3524
      %v3526 = vrot.slane %v3303, 4
      %v3527 = vsel %vm3522, %v3524, %v3526
      %v3528 = vrot.slane %v3304, 4
      %v3529 = vsel %vm3522, %v3526, %v3528
      %v3530 = vrot.slane %v3305, 4
      %v3531 = vsel %vm3522, %v3528, %v3530
      %v3532 = vrot.slane %v3306, 4
      %v3533 = vsel %vm3522, %v3530, %v3532
      %v3534 = vrot.slane %v3307, 4
      %v3535 = vsel %vm3522, %v3532, %v3534
      %v3536 = vrot.slane %v3308, 4
      %v3537 = vsel %vm3522, %v3534, %v3536
      %v3538 = vrot.slane %v3513, 4
      %v3539 = vsel %vm3522, %v3536, %v3538
      %v3545 = vunpack.c.l.b16 %v3515
      %v3546 = vunpack.c.l.b16 %v3516
      %v3547 = vunpack.c.l.b16 %v3517
      %v3548 = vunpack.c.l.b16 %v3518
      %v3549 = vunpack.c.l.b16 %v3519
      %v3550 = vpack.c.b16 %v3546, %v3545
      %v3551 = vpack.c.b16 %v3548, %v3547
      %v3552 = vpack.c.b16 %v3549, %v3549
      %v3556 = vsel %vm2803, %v3525, 0
      %v3559 = vsel %vm2803, %v3527, 0
      %v3562 = vsel %vm2803, %v3529, 0
      %v3565 = vsel %vm2803, %v3531, 0
      %v3568 = vsel %vm2803, %v3533, 0
      %v3571 = vsel %vm2803, %v3535, 0
      %v3574 = vsel %vm2803, %v3537, 0
      %v3577 = vsel %vm2803, %v3539, 0
      %v3580 = vsel %vm2803, %v3538, 0
      %v3583 = vsel %vm2831, %v3552, 0
      %3585 = vmatprep.subr.bf16.mxu0 0
      %3586 = vmatpush1.bf16.msra.mxu0 %v3550
      %3587 = vmatprep.subr.bf16.mxu0 0
      %3588 = vmatpush1.bf16.msra.mxu0 %v3551
      %3589 = vmatprep.subr.bf16.mxu0 0
      %3590 = vmatpush1.bf16.msra.mxu0 %v3583
      %3591 = vmatprep.subr.bf16.mxu0 0
      %3592 = vmatpush1.bf16.msra.mxu0 0
      %3593 = vmatprep.subr.bf16.mxu0 0
      %3594 = vmatpush1.bf16.msra.mxu0 0
      %3595 = vmatprep.subr.bf16.mxu0 0
      %3596 = vmatpush1.bf16.msra.mxu0 0
      %3597 = vmatprep.subr.bf16.mxu0 0
      %3598 = vmatpush1.bf16.msra.mxu0 0
      %3599 = vmatprep.subr.bf16.mxu0 0
      %3600 = vmatpush1.bf16.msra.mxu0 0
      %3601 = vmatprep.subr.bf16.mxu0 0
      %3602 = vmatpush1.bf16.msra.mxu0 0
      %3603 = vmatprep.subr.bf16.mxu0 0
      %3604 = vmatpush1.bf16.msra.mxu0 0
      %3605 = vmatprep.subr.bf16.mxu0 0
      %3606 = vmatpush1.bf16.msra.mxu0 0
      %3607 = vmatprep.subr.bf16.mxu0 0
      %3608 = vmatpush1.bf16.msra.mxu0 0
      %3609 = vmatprep.subr.bf16.mxu0 0
      %3610 = vmatpush1.bf16.msra.mxu0 0
      %3611 = vmatprep.subr.bf16.mxu0 0
      %3612 = vmatpush1.bf16.msra.mxu0 0
      %3613 = vmatprep.subr.bf16.mxu0 0
      %3614 = vmatpush1.bf16.msra.mxu0 0
      %3615 = vmatprep.subr.bf16.mxu0 0
      %3616 = vmatpush1.bf16.msra.mxu0 0
      %3617 = vmatprep.mubr.bf16.mxu0 0
      %3618 = vmatmul.mubr.bf16.gmra.mrb[0].mxu0 %v3556
      %v3619 = vpop.f32.mrb[0].mxu0
      %v3620 = vadd.f32 0.0, %v3619
      %v3621 = vpop.f32.mrb[0].mxu0
      %v3622 = vpop.f32.mrb[0].mxu0
      %v3623 = vadd.f32 0.0, %v3622
      %v3624 = vpop.f32.mrb[0].mxu0
      %3625 = vmatprep.mubr.bf16.mxu0 0
      %3626 = vmatmul.mubr.bf16.gmra.mrb[0].mxu0 %v3559
      %v3627 = vpop.f32.mrb[0].mxu0
      %v3628 = vadd.f32 0.0, %v3627
      %v3629 = vpop.f32.mrb[0].mxu0
      %v3630 = vpop.f32.mrb[0].mxu0
      %v3631 = vadd.f32 0.0, %v3630
      %v3632 = vpop.f32.mrb[0].mxu0
      %3633 = vmatprep.mubr.bf16.mxu0 0
      %3634 = vmatmul.mubr.bf16.gmra.mrb[0].mxu0 %v3562
      %v3635 = vpop.f32.mrb[0].mxu0
      %v3636 = vadd.f32 0.0, %v3635
      %v3637 = vpop.f32.mrb[0].mxu0
      %v3638 = vpop.f32.mrb[0].mxu0
      %v3639 = vadd.f32 0.0, %v3638
      %v3640 = vpop.f32.mrb[0].mxu0
      %3641 = vmatprep.mubr.bf16.mxu0 0
      %3642 = vmatmul.mubr.bf16.gmra.mrb[0].mxu0 %v3565
      %v3643 = vpop.f32.mrb[0].mxu0
      %v3644 = vadd.f32 0.0, %v3643
      %v3645 = vpop.f32.mrb[0].mxu0
      %v3646 = vpop.f32.mrb[0].mxu0
      %v3647 = vadd.f32 0.0, %v3646
      %v3648 = vpop.f32.mrb[0].mxu0
      %3649 = vmatprep.mubr.bf16.mxu0 0
      %3650 = vmatmul.mubr.bf16.gmra.mrb[0].mxu0 %v3568
      %v3651 = vpop.f32.mrb[0].mxu0
      %v3652 = vadd.f32 0.0, %v3651
      %v3653 = vpop.f32.mrb[0].mxu0
      %v3654 = vpop.f32.mrb[0].mxu0
      %v3655 = vadd.f32 0.0, %v3654
      %v3656 = vpop.f32.mrb[0].mxu0
      %3657 = vmatprep.mubr.bf16.mxu0 0
      %3658 = vmatmul.mubr.bf16.gmra.mrb[0].mxu0 %v3571
      %v3659 = vpop.f32.mrb[0].mxu0
      %v3660 = vadd.f32 0.0, %v3659
      %v3661 = vpop.f32.mrb[0].mxu0
      %v3662 = vpop.f32.mrb[0].mxu0
      %v3663 = vadd.f32 0.0, %v3662
      %v3664 = vpop.f32.mrb[0].mxu0
      %3665 = vmatprep.mubr.bf16.mxu0 0
      %3666 = vmatmul.mubr.bf16.gmra.mrb[0].mxu0 %v3574
      %v3667 = vpop.f32.mrb[0].mxu0
      %v3668 = vadd.f32 0.0, %v3667
      %v3669 = vpop.f32.mrb[0].mxu0
      %v3670 = vpop.f32.mrb[0].mxu0
      %v3671 = vadd.f32 0.0, %v3670
      %v3672 = vpop.f32.mrb[0].mxu0
      %3673 = vmatprep.mubr.bf16.mxu0 0
      %3674 = vmatmul.mubr.bf16.gmra.mrb[0].mxu0 %v3577
      %v3675 = vpop.f32.mrb[0].mxu0
      %v3676 = vadd.f32 0.0, %v3675
      %v3677 = vpop.f32.mrb[0].mxu0
      %v3678 = vpop.f32.mrb[0].mxu0
      %v3679 = vadd.f32 0.0, %v3678
      %v3680 = vpop.f32.mrb[0].mxu0
      %3681 = vmatprep.mubr.bf16.mxu0 0
      %3682 = vmatmul.mubr.bf16.gmra.mrb[0].mxu0 %v3580
      %v3683 = vpop.f32.mrb[0].mxu0
      %v3684 = vadd.f32 0.0, %v3683
      %v3685 = vpop.f32.mrb[0].mxu0
      %v3686 = vpop.f32.mrb[0].mxu0
      %v3687 = vpop.f32.mrb[0].mxu0
      %3688 = vdwg.mxu0
      %v3689 = vadd.f32 %v3495, %v3620
      %v3690 = vadd.f32 %v3496, %v3623
      %v3691 = vadd.f32 %v3497, %v3628
      %v3692 = vadd.f32 %v3498, %v3631
      %v3693 = vadd.f32 %v3499, %v3636
      %v3694 = vadd.f32 %v3500, %v3639
      %v3695 = vadd.f32 %v3501, %v3644
      %v3696 = vadd.f32 %v3502, %v3647
      %v3697 = vadd.f32 %v3503, %v3652
      %v3698 = vadd.f32 %v3504, %v3655
      %v3699 = vadd.f32 %v3505, %v3660
      %v3700 = vadd.f32 %v3506, %v3663
      %v3701 = vadd.f32 %v3507, %v3668
      %v3702 = vadd.f32 %v3508, %v3671
      %v3703 = vadd.f32 %v3509, %v3676
      %v3704 = vadd.f32 %v3510, %v3679
      %v3705 = vadd.f32 %v3511, %v3684
      %3706 = vst [vmem:[#allocation5] sm:$0xff] %v3689
      %3707 = vst [vmem:[#allocation5 + $0x8] sm:$0xff] %v3690
      %3708 = vst [vmem:[#allocation5 + $0x10] sm:$0xff] %v3691
      %3709 = vst [vmem:[#allocation5 + $0x18] sm:$0xff] %v3692
      %3710 = vst [vmem:[#allocation5 + $0x20] sm:$0xff] %v3693
      %3711 = vst [vmem:[#allocation5 + $0x28] sm:$0xff] %v3694
      %3712 = vst [vmem:[#allocation5 + $0x30] sm:$0xff] %v3695
      %3713 = vst [vmem:[#allocation5 + $0x38] sm:$0xff] %v3696
      %3714 = vst [vmem:[#allocation5 + $0x40] sm:$0xff] %v3697
      %3715 = vst [vmem:[#allocation5 + $0x48] sm:$0xff] %v3698
      %3716 = vst [vmem:[#allocation5 + $0x50] sm:$0xff] %v3699
      %3717 = vst [vmem:[#allocation5 + $0x58] sm:$0xff] %v3700
      %3718 = vst [vmem:[#allocation5 + $0x60] sm:$0xff] %v3701
      %3719 = vst [vmem:[#allocation5 + $0x68] sm:$0xff] %v3702
      %3720 = vst [vmem:[#allocation5 + $0x70] sm:$0xff] %v3703
      %3721 = vst [vmem:[#allocation5 + $0x78] sm:$0xff] %v3704
      %3722 = vst [vmem:[#allocation5 + $0x80] sm:$0xff] %v3705
      %v3723 = vld [vmem:[#allocation5] sm:$0x1]
      %v3724 = vld [vmem:[#allocation5 + $0x1] sm:$0x1]
      %v3725 = vmax.f32 %v3723, %v3724
      %v3726 = vld [vmem:[#allocation5 + $0xe] sm:$0x1]
      %v3727 = vld [vmem:[#allocation5 + $0xf] sm:$0x1]
      %v3728 = vmax.f32 %v3726, %v3727
      %v3729 = vmax.f32 %v3725, %v3728
      %v3730 = vld [vmem:[%s4] sm:$0x1]
      %v3731 = vadd.f32 %v3729, %v3730
      %v3732 = vmax.f32 %v3731, 0.0
      %v3733 = vpack.c.bf16 %v3732, %v3732
      %vm3734 = vcmask 122880
      %vm3735 = vsmask.f32 256
      %vm3736 = vmand %vm3734, %vm3735
      %v3737 = vld [vmem:[#allocation6] sm:$0x1]
      %v3738 = vsel %vm3736, %v3733, %v3737
      %3739 = vst [vmem:[#allocation6] sm:$0x1] %v3738
      %v3740 = vld [vmem:[#allocation5 + $0x2] sm:$0x1]
      %v3741 = vld [vmem:[#allocation5 + $0x3] sm:$0x1]
      %v3742 = vmax.f32 %v3740, %v3741
      %v3743 = vld [vmem:[#allocation5 + $0x10] sm:$0x1]
      %v3744 = vld [vmem:[#allocation5 + $0x11] sm:$0x1]
      %v3745 = vmax.f32 %v3743, %v3744
      %v3746 = vmax.f32 %v3742, %v3745
      %v3747 = vld [vmem:[%s4] sm:$0x1]
      %v3748 = vadd.f32 %v3746, %v3747
      %v3749 = vmax.f32 %v3748, 0.0
      %v3750 = vpack.c.bf16 %v3749, %v3749
      %v3752 = vunpack.c.l.b16 %v3750
      %v3753 = vpack.c.b16 %v3752, %v3752
      %3754 = vrot.lane.b32.xlu0 %v3753, 16
      %v3755 = vpop.permute.xlu0 %3754
      %vm3757 = vcmask 254080
      %vm3758 = vmand %vm3757, %vm3735
      %v3759 = vld [vmem:[#allocation6] sm:$0x1]
      %v3760 = vsel %vm3758, %v3755, %v3759
      %3761 = vst [vmem:[#allocation6] sm:$0x1] %v3760
      %v3762 = vld [vmem:[#allocation5 + $0x4] sm:$0x1]
      %v3763 = vld [vmem:[#allocation5 + $0x5] sm:$0x1]
      %v3764 = vmax.f32 %v3762, %v3763
      %v3765 = vld [vmem:[#allocation5 + $0x12] sm:$0x1]
      %v3766 = vld [vmem:[#allocation5 + $0x13] sm:$0x1]
      %v3767 = vmax.f32 %v3765, %v3766
      %v3768 = vmax.f32 %v3764, %v3767
      %v3769 = vld [vmem:[%s4] sm:$0x1]
      %v3770 = vadd.f32 %v3768, %v3769
      %v3771 = vmax.f32 %v3770, 0.0
      %v3772 = vpack.c.bf16 %v3771, %v3771
      %v3774 = vunpack.c.l.b16 %v3772
      %v3775 = vpack.c.b16 %v3774, %v3774
      %3776 = vrot.lane.b32.xlu0 %v3775, 32
      %v3777 = vpop.permute.xlu0 %3776
      %vm3779 = vcmask 385280
      %vm3780 = vmand %vm3779, %vm3735
      %v3781 = vld [vmem:[#allocation6] sm:$0x1]
      %v3782 = vsel %vm3780, %v3777, %v3781
      %3783 = vst [vmem:[#allocation6] sm:$0x1] %v3782
      %v3784 = vld [vmem:[#allocation5 + $0x6] sm:$0x1]
      %v3785 = vld [vmem:[#allocation5 + $0x7] sm:$0x1]
      %v3786 = vmax.f32 %v3784, %v3785
      %v3787 = vld [vmem:[#allocation5 + $0x14] sm:$0x1]
      %v3788 = vld [vmem:[#allocation5 + $0x15] sm:$0x1]
      %v3789 = vmax.f32 %v3787, %v3788
      %v3790 = vmax.f32 %v3786, %v3789
      %v3791 = vld [vmem:[%s4] sm:$0x1]
      %v3792 = vadd.f32 %v3790, %v3791
      %v3793 = vmax.f32 %v3792, 0.0
      %v3794 = vpack.c.bf16 %v3793, %v3793
      %v3796 = vunpack.c.l.b16 %v3794
      %v3797 = vpack.c.b16 %v3796, %v3796
      %3798 = vrot.lane.b32.xlu0 %v3797, 48
      %v3799 = vpop.permute.xlu0 %3798
      %vm3801 = vcmask 516480
      %vm3802 = vmand %vm3801, %vm3735
      %v3803 = vld [vmem:[#allocation6] sm:$0x1]
      %v3804 = vsel %vm3802, %v3799, %v3803
      %3805 = vst [vmem:[#allocation6] sm:$0x1] %v3804
      %v3806 = vld [vmem:[#allocation5 + $0x8] sm:$0x1]
      %v3807 = vld [vmem:[#allocation5 + $0x9] sm:$0x1]
      %v3808 = vmax.f32 %v3806, %v3807
      %v3809 = vld [vmem:[#allocation5 + $0x16] sm:$0x1]
      %v3810 = vld [vmem:[#allocation5 + $0x17] sm:$0x1]
      %v3811 = vmax.f32 %v3809, %v3810
      %v3812 = vmax.f32 %v3808, %v3811
      %v3813 = vld [vmem:[%s4] sm:$0x1]
      %v3814 = vadd.f32 %v3812, %v3813
      %v3815 = vmax.f32 %v3814, 0.0
      %v3816 = vpack.c.bf16 %v3815, %v3815
      %v3818 = vunpack.c.l.b16 %v3816
      %v3819 = vpack.c.b16 %v3818, %v3818
      %3820 = vrot.lane.b32.xlu0 %v3819, 64
      %v3821 = vpop.permute.xlu0 %3820
      %vm3823 = vcmask 647680
      %vm3824 = vmand %vm3823, %vm3735
      %v3825 = vld [vmem:[#allocation6] sm:$0x1]
      %v3826 = vsel %vm3824, %v3821, %v3825
      %3827 = vst [vmem:[#allocation6] sm:$0x1] %v3826
      %v3828 = vld [vmem:[#allocation5 + $0x1c] sm:$0x1]
      %v3829 = vld [vmem:[#allocation5 + $0x1d] sm:$0x1]
      %v3830 = vmax.f32 %v3828, %v3829
      %v3831 = vld [vmem:[#allocation5 + $0x2a] sm:$0x1]
      %v3832 = vld [vmem:[#allocation5 + $0x2b] sm:$0x1]
      %v3833 = vmax.f32 %v3831, %v3832
      %v3834 = vmax.f32 %v3830, %v3833
      %v3835 = vld [vmem:[%s4] sm:$0x1]
      %v3836 = vadd.f32 %v3834, %v3835
      %v3837 = vmax.f32 %v3836, 0.0
      %v3838 = vpack.c.bf16 %v3837, %v3837
      %v3840 = vunpack.c.l.b16 %v3838
      %v3841 = vpack.c.b16 %v3840, %v3840
      %3842 = vrot.lane.b32.xlu0 %v3841, 80
      %v3843 = vpop.permute.xlu0 %3842
      %vm3845 = vcmask 778880
      %vm3846 = vmand %vm3845, %vm3735
      %v3847 = vld [vmem:[#allocation6] sm:$0x1]
      %v3848 = vsel %vm3846, %v3843, %v3847
      %3849 = vst [vmem:[#allocation6] sm:$0x1] %v3848
      %v3850 = vld [vmem:[#allocation5 + $0x1e] sm:$0x1]
      %v3851 = vld [vmem:[#allocation5 + $0x1f] sm:$0x1]
      %v3852 = vmax.f32 %v3850, %v3851
      %v3853 = vld [vmem:[#allocation5 + $0x2c] sm:$0x1]
      %v3854 = vld [vmem:[#allocation5 + $0x2d] sm:$0x1]
      %v3855 = vmax.f32 %v3853, %v3854
      %v3856 = vmax.f32 %v3852, %v3855
      %v3857 = vld [vmem:[%s4] sm:$0x1]
      %v3858 = vadd.f32 %v3856, %v3857
      %v3859 = vmax.f32 %v3858, 0.0
      %v3860 = vpack.c.bf16 %v3859, %v3859
      %v3862 = vunpack.c.l.b16 %v3860
      %v3863 = vpack.c.b16 %v3862, %v3862
      %3864 = vrot.lane.b32.xlu0 %v3863, 96
      %v3865 = vpop.permute.xlu0 %3864
      %vm3867 = vcmask 910080
      %vm3868 = vmand %vm3867, %vm3735
      %v3869 = vld [vmem:[#allocation6] sm:$0x1]
      %v3870 = vsel %vm3868, %v3865, %v3869
      %3871 = vst [vmem:[#allocation6] sm:$0x1] %v3870
      %v3872 = vld [vmem:[#allocation5 + $0x20] sm:$0x1]
      %v3873 = vld [vmem:[#allocation5 + $0x21] sm:$0x1]
      %v3874 = vmax.f32 %v3872, %v3873
      %v3875 = vld [vmem:[#allocation5 + $0x2e] sm:$0x1]
      %v3876 = vld [vmem:[#allocation5 + $0x2f] sm:$0x1]
      %v3877 = vmax.f32 %v3875, %v3876
      %v3878 = vmax.f32 %v3874, %v3877
      %v3879 = vld [vmem:[%s4] sm:$0x1]
      %v3880 = vadd.f32 %v3878, %v3879
      %v3881 = vmax.f32 %v3880, 0.0
      %v3882 = vpack.c.bf16 %v3881, %v3881
      %v3884 = vunpack.c.l.b16 %v3882
      %v3885 = vpack.c.b16 %v3884, %v3884
      %3886 = vrot.lane.b32.xlu0 %v3885, 112
      %v3887 = vpop.permute.xlu0 %3886
      %vm3889 = vcmask 1041280
      %vm3890 = vmand %vm3889, %vm3735
      %v3891 = vld [vmem:[#allocation6] sm:$0x1]
      %v3892 = vsel %vm3890, %v3887, %v3891
      %3893 = vst [vmem:[#allocation6] sm:$0x1] %v3892
      %v3894 = vld [vmem:[#allocation5 + $0x22] sm:$0x1]
      %v3895 = vld [vmem:[#allocation5 + $0x23] sm:$0x1]
      %v3896 = vmax.f32 %v3894, %v3895
      %v3897 = vld [vmem:[#allocation5 + $0x30] sm:$0x1]
      %v3898 = vld [vmem:[#allocation5 + $0x31] sm:$0x1]
      %v3899 = vmax.f32 %v3897, %v3898
      %v3900 = vmax.f32 %v3896, %v3899
      %v3901 = vld [vmem:[%s4] sm:$0x1]
      %v3902 = vadd.f32 %v3900, %v3901
      %v3903 = vmax.f32 %v3902, 0.0
      %v3904 = vpack.c.bf16 %v3903, %v3903
      %v3905 = vld [vmem:[#allocation6 + $0x4] sm:$0x1]
      %v3906 = vsel %vm3736, %v3904, %v3905
      %3907 = vst [vmem:[#allocation6 + $0x4] sm:$0x1] %v3906
      %v3908 = vld [vmem:[#allocation5 + $0x24] sm:$0x1]
      %v3909 = vld [vmem:[#allocation5 + $0x25] sm:$0x1]
      %v3910 = vmax.f32 %v3908, %v3909
      %v3911 = vld [vmem:[#allocation5 + $0x32] sm:$0x1]
      %v3912 = vld [vmem:[#allocation5 + $0x33] sm:$0x1]
      %v3913 = vmax.f32 %v3911, %v3912
      %v3914 = vmax.f32 %v3910, %v3913
      %v3915 = vld [vmem:[%s4] sm:$0x1]
      %v3916 = vadd.f32 %v3914, %v3915
      %v3917 = vmax.f32 %v3916, 0.0
      %v3918 = vpack.c.bf16 %v3917, %v3917
      %v3920 = vunpack.c.l.b16 %v3918
      %v3921 = vpack.c.b16 %v3920, %v3920
      %3922 = vrot.lane.b32.xlu0 %v3921, 16
      %v3923 = vpop.permute.xlu0 %3922
      %v3925 = vld [vmem:[#allocation6 + $0x4] sm:$0x1]
      %v3926 = vsel %vm3758, %v3923, %v3925
      %3927 = vst [vmem:[#allocation6 + $0x4] sm:$0x1] %v3926
      %v3928 = vld [vmem:[#allocation5 + $0x38] sm:$0x1]
      %v3929 = vld [vmem:[#allocation5 + $0x39] sm:$0x1]
      %v3930 = vmax.f32 %v3928, %v3929
      %v3931 = vld [vmem:[#allocation5 + $0x46] sm:$0x1]
      %v3932 = vld [vmem:[#allocation5 + $0x47] sm:$0x1]
      %v3933 = vmax.f32 %v3931, %v3932
      %v3934 = vmax.f32 %v3930, %v3933
      %v3935 = vld [vmem:[%s4] sm:$0x1]
      %v3936 = vadd.f32 %v3934, %v3935
      %v3937 = vmax.f32 %v3936, 0.0
      %v3938 = vpack.c.bf16 %v3937, %v3937
      %v3940 = vunpack.c.l.b16 %v3938
      %v3941 = vpack.c.b16 %v3940, %v3940
      %3942 = vrot.lane.b32.xlu0 %v3941, 32
      %v3943 = vpop.permute.xlu0 %3942
      %v3945 = vld [vmem:[#allocation6 + $0x4] sm:$0x1]
      %v3946 = vsel %vm3780, %v3943, %v3945
      %3947 = vst [vmem:[#allocation6 + $0x4] sm:$0x1] %v3946
      %v3948 = vld [vmem:[#allocation5 + $0x3a] sm:$0x1]
      %v3949 = vld [vmem:[#allocation5 + $0x3b] sm:$0x1]
      %v3950 = vmax.f32 %v3948, %v3949
      %v3951 = vld [vmem:[#allocation5 + $0x48] sm:$0x1]
      %v3952 = vld [vmem:[#allocation5 + $0x49] sm:$0x1]
      %v3953 = vmax.f32 %v3951, %v3952
      %v3954 = vmax.f32 %v3950, %v3953
      %v3955 = vld [vmem:[%s4] sm:$0x1]
      %v3956 = vadd.f32 %v3954, %v3955
      %v3957 = vmax.f32 %v3956, 0.0
      %v3958 = vpack.c.bf16 %v3957, %v3957
      %v3960 = vunpack.c.l.b16 %v3958
      %v3961 = vpack.c.b16 %v3960, %v3960
      %3962 = vrot.lane.b32.xlu0 %v3961, 48
      %v3963 = vpop.permute.xlu0 %3962
      %v3965 = vld [vmem:[#allocation6 + $0x4] sm:$0x1]
      %v3966 = vsel %vm3802, %v3963, %v3965
      %3967 = vst [vmem:[#allocation6 + $0x4] sm:$0x1] %v3966
      %v3968 = vld [vmem:[#allocation5 + $0x3c] sm:$0x1]
      %v3969 = vld [vmem:[#allocation5 + $0x3d] sm:$0x1]
      %v3970 = vmax.f32 %v3968, %v3969
      %v3971 = vld [vmem:[#allocation5 + $0x4a] sm:$0x1]
      %v3972 = vld [vmem:[#allocation5 + $0x4b] sm:$0x1]
      %v3973 = vmax.f32 %v3971, %v3972
      %v3974 = vmax.f32 %v3970, %v3973
      %v3975 = vld [vmem:[%s4] sm:$0x1]
      %v3976 = vadd.f32 %v3974, %v3975
      %v3977 = vmax.f32 %v3976, 0.0
      %v3978 = vpack.c.bf16 %v3977, %v3977
      %v3980 = vunpack.c.l.b16 %v3978
      %v3981 = vpack.c.b16 %v3980, %v3980
      %3982 = vrot.lane.b32.xlu0 %v3981, 64
      %v3983 = vpop.permute.xlu0 %3982
      %v3985 = vld [vmem:[#allocation6 + $0x4] sm:$0x1]
      %v3986 = vsel %vm3824, %v3983, %v3985
      %3987 = vst [vmem:[#allocation6 + $0x4] sm:$0x1] %v3986
      %v3988 = vld [vmem:[#allocation5 + $0x3e] sm:$0x1]
      %v3989 = vld [vmem:[#allocation5 + $0x3f] sm:$0x1]
      %v3990 = vmax.f32 %v3988, %v3989
      %v3991 = vld [vmem:[#allocation5 + $0x4c] sm:$0x1]
      %v3992 = vld [vmem:[#allocation5 + $0x4d] sm:$0x1]
      %v3993 = vmax.f32 %v3991, %v3992
      %v3994 = vmax.f32 %v3990, %v3993
      %v3995 = vld [vmem:[%s4] sm:$0x1]
      %v3996 = vadd.f32 %v3994, %v3995
      %v3997 = vmax.f32 %v3996, 0.0
      %v3998 = vpack.c.bf16 %v3997, %v3997
      %v4000 = vunpack.c.l.b16 %v3998
      %v4001 = vpack.c.b16 %v4000, %v4000
      %4002 = vrot.lane.b32.xlu0 %v4001, 80
      %v4003 = vpop.permute.xlu0 %4002
      %v4005 = vld [vmem:[#allocation6 + $0x4] sm:$0x1]
      %v4006 = vsel %vm3846, %v4003, %v4005
      %4007 = vst [vmem:[#allocation6 + $0x4] sm:$0x1] %v4006
      %v4008 = vld [vmem:[#allocation5 + $0x40] sm:$0x1]
      %v4009 = vld [vmem:[#allocation5 + $0x41] sm:$0x1]
      %v4010 = vmax.f32 %v4008, %v4009
      %v4011 = vld [vmem:[#allocation5 + $0x4e] sm:$0x1]
      %v4012 = vld [vmem:[#allocation5 + $0x4f] sm:$0x1]
      %v4013 = vmax.f32 %v4011, %v4012
      %v4014 = vmax.f32 %v4010, %v4013
      %v4015 = vld [vmem:[%s4] sm:$0x1]
      %v4016 = vadd.f32 %v4014, %v4015
      %v4017 = vmax.f32 %v4016, 0.0
      %v4018 = vpack.c.bf16 %v4017, %v4017
      %v4020 = vunpack.c.l.b16 %v4018
      %v4021 = vpack.c.b16 %v4020, %v4020
      %4022 = vrot.lane.b32.xlu0 %v4021, 96
      %v4023 = vpop.permute.xlu0 %4022
      %v4025 = vld [vmem:[#allocation6 + $0x4] sm:$0x1]
      %v4026 = vsel %vm3868, %v4023, %v4025
      %4027 = vst [vmem:[#allocation6 + $0x4] sm:$0x1] %v4026
      %v4028 = vld [vmem:[#allocation5 + $0x54] sm:$0x1]
      %v4029 = vld [vmem:[#allocation5 + $0x55] sm:$0x1]
      %v4030 = vmax.f32 %v4028, %v4029
      %v4031 = vld [vmem:[#allocation5 + $0x62] sm:$0x1]
      %v4032 = vld [vmem:[#allocation5 + $0x63] sm:$0x1]
      %v4033 = vmax.f32 %v4031, %v4032
      %v4034 = vmax.f32 %v4030, %v4033
      %v4035 = vld [vmem:[%s4] sm:$0x1]
      %v4036 = vadd.f32 %v4034, %v4035
      %v4037 = vmax.f32 %v4036, 0.0
      %v4038 = vpack.c.bf16 %v4037, %v4037
      %v4040 = vunpack.c.l.b16 %v4038
      %v4041 = vpack.c.b16 %v4040, %v4040
      %4042 = vrot.lane.b32.xlu0 %v4041, 112
      %v4043 = vpop.permute.xlu0 %4042
      %v4045 = vld [vmem:[#allocation6 + $0x4] sm:$0x1]
      %v4046 = vsel %vm3890, %v4043, %v4045
      %4047 = vst [vmem:[#allocation6 + $0x4] sm:$0x1] %v4046
      %v4048 = vld [vmem:[#allocation5 + $0x56] sm:$0x1]
      %v4049 = vld [vmem:[#allocation5 + $0x57] sm:$0x1]
      %v4050 = vmax.f32 %v4048, %v4049
      %v4051 = vld [vmem:[#allocation5 + $0x64] sm:$0x1]
      %v4052 = vld [vmem:[#allocation5 + $0x65] sm:$0x1]
      %v4053 = vmax.f32 %v4051, %v4052
      %v4054 = vmax.f32 %v4050, %v4053
      %v4055 = vld [vmem:[%s4] sm:$0x1]
      %v4056 = vadd.f32 %v4054, %v4055
      %v4057 = vmax.f32 %v4056, 0.0
      %v4058 = vpack.c.bf16 %v4057, %v4057
      %v4059 = vld [vmem:[#allocation6 + $0x8] sm:$0x1]
      %v4060 = vsel %vm3736, %v4058, %v4059
      %4061 = vst [vmem:[#allocation6 + $0x8] sm:$0x1] %v4060
      %v4062 = vld [vmem:[#allocation5 + $0x58] sm:$0x1]
      %v4063 = vld [vmem:[#allocation5 + $0x59] sm:$0x1]
      %v4064 = vmax.f32 %v4062, %v4063
      %v4065 = vld [vmem:[#allocation5 + $0x66] sm:$0x1]
      %v4066 = vld [vmem:[#allocation5 + $0x67] sm:$0x1]
      %v4067 = vmax.f32 %v4065, %v4066
      %v4068 = vmax.f32 %v4064, %v4067
      %v4069 = vld [vmem:[%s4] sm:$0x1]
      %v4070 = vadd.f32 %v4068, %v4069
      %v4071 = vmax.f32 %v4070, 0.0
      %v4072 = vpack.c.bf16 %v4071, %v4071
      %v4074 = vunpack.c.l.b16 %v4072
      %v4075 = vpack.c.b16 %v4074, %v4074
      %4076 = vrot.lane.b32.xlu0 %v4075, 16
      %v4077 = vpop.permute.xlu0 %4076
      %v4079 = vld [vmem:[#allocation6 + $0x8] sm:$0x1]
      %v4080 = vsel %vm3758, %v4077, %v4079
      %4081 = vst [vmem:[#allocation6 + $0x8] sm:$0x1] %v4080
      %v4082 = vld [vmem:[#allocation5 + $0x5a] sm:$0x1]
      %v4083 = vld [vmem:[#allocation5 + $0x5b] sm:$0x1]
      %v4084 = vmax.f32 %v4082, %v4083
      %v4085 = vld [vmem:[#allocation5 + $0x68] sm:$0x1]
      %v4086 = vld [vmem:[#allocation5 + $0x69] sm:$0x1]
      %v4087 = vmax.f32 %v4085, %v4086
      %v4088 = vmax.f32 %v4084, %v4087
      %v4089 = vld [vmem:[%s4] sm:$0x1]
      %v4090 = vadd.f32 %v4088, %v4089
      %v4091 = vmax.f32 %v4090, 0.0
      %v4092 = vpack.c.bf16 %v4091, %v4091
      %v4094 = vunpack.c.l.b16 %v4092
      %v4095 = vpack.c.b16 %v4094, %v4094
      %4096 = vrot.lane.b32.xlu0 %v4095, 32
      %v4097 = vpop.permute.xlu0 %4096
      %v4099 = vld [vmem:[#allocation6 + $0x8] sm:$0x1]
      %v4100 = vsel %vm3780, %v4097, %v4099
      %4101 = vst [vmem:[#allocation6 + $0x8] sm:$0x1] %v4100
      %v4102 = vld [vmem:[#allocation5 + $0x5c] sm:$0x1]
      %v4103 = vld [vmem:[#allocation5 + $0x5d] sm:$0x1]
      %v4104 = vmax.f32 %v4102, %v4103
      %v4105 = vld [vmem:[#allocation5 + $0x6a] sm:$0x1]
      %v4106 = vld [vmem:[#allocation5 + $0x6b] sm:$0x1]
      %v4107 = vmax.f32 %v4105, %v4106
      %v4108 = vmax.f32 %v4104, %v4107
      %v4109 = vld [vmem:[%s4] sm:$0x1]
      %v4110 = vadd.f32 %v4108, %v4109
      %v4111 = vmax.f32 %v4110, 0.0
      %v4112 = vpack.c.bf16 %v4111, %v4111
      %v4114 = vunpack.c.l.b16 %v4112
      %v4115 = vpack.c.b16 %v4114, %v4114
      %4116 = vrot.lane.b32.xlu0 %v4115, 48
      %v4117 = vpop.permute.xlu0 %4116
      %v4119 = vld [vmem:[#allocation6 + $0x8] sm:$0x1]
      %v4120 = vsel %vm3802, %v4117, %v4119
      %4121 = vst [vmem:[#allocation6 + $0x8] sm:$0x1] %v4120
      %v4122 = vld [vmem:[#allocation5 + $0x70] sm:$0x1]
      %v4123 = vld [vmem:[#allocation5 + $0x71] sm:$0x1]
      %v4124 = vmax.f32 %v4122, %v4123
      %v4125 = vld [vmem:[#allocation5 + $0x7e] sm:$0x1]
      %v4126 = vld [vmem:[#allocation5 + $0x7f] sm:$0x1]
      %v4127 = vmax.f32 %v4125, %v4126
      %v4128 = vmax.f32 %v4124, %v4127
      %v4129 = vld [vmem:[%s4] sm:$0x1]
      %v4130 = vadd.f32 %v4128, %v4129
      %v4131 = vmax.f32 %v4130, 0.0
      %v4132 = vpack.c.bf16 %v4131, %v4131
      %v4134 = vunpack.c.l.b16 %v4132
      %v4135 = vpack.c.b16 %v4134, %v4134
      %4136 = vrot.lane.b32.xlu0 %v4135, 64
      %v4137 = vpop.permute.xlu0 %4136
      %v4139 = vld [vmem:[#allocation6 + $0x8] sm:$0x1]
      %v4140 = vsel %vm3824, %v4137, %v4139
      %4141 = vst [vmem:[#allocation6 + $0x8] sm:$0x1] %v4140
      %v4142 = vld [vmem:[#allocation5 + $0x72] sm:$0x1]
      %v4143 = vld [vmem:[#allocation5 + $0x73] sm:$0x1]
      %v4144 = vmax.f32 %v4142, %v4143
      %v4145 = vld [vmem:[#allocation5 + $0x80] sm:$0x1]
      %v4146 = vld [vmem:[#allocation5 + $0x81] sm:$0x1]
      %v4147 = vmax.f32 %v4145, %v4146
      %v4148 = vmax.f32 %v4144, %v4147
      %v4149 = vld [vmem:[%s4] sm:$0x1]
      %v4150 = vadd.f32 %v4148, %v4149
      %v4151 = vmax.f32 %v4150, 0.0
      %v4152 = vpack.c.bf16 %v4151, %v4151
      %v4154 = vunpack.c.l.b16 %v4152
      %v4155 = vpack.c.b16 %v4154, %v4154
      %4156 = vrot.lane.b32.xlu0 %v4155, 80
      %v4157 = vpop.permute.xlu0 %4156
      %v4159 = vld [vmem:[#allocation6 + $0x8] sm:$0x1]
      %v4160 = vsel %vm3846, %v4157, %v4159
      %4161 = vst [vmem:[#allocation6 + $0x8] sm:$0x1] %v4160
      %v4162 = vld [vmem:[#allocation5 + $0x74] sm:$0x1]
      %v4163 = vld [vmem:[#allocation5 + $0x75] sm:$0x1]
      %v4164 = vmax.f32 %v4162, %v4163
      %v4165 = vld [vmem:[#allocation5 + $0x82] sm:$0x1]
      %v4166 = vld [vmem:[#allocation5 + $0x83] sm:$0x1]
      %v4167 = vmax.f32 %v4165, %v4166
      %v4168 = vmax.f32 %v4164, %v4167
      %v4169 = vld [vmem:[%s4] sm:$0x1]
      %v4170 = vadd.f32 %v4168, %v4169
      %v4171 = vmax.f32 %v4170, 0.0
      %v4172 = vpack.c.bf16 %v4171, %v4171
      %v4174 = vunpack.c.l.b16 %v4172
      %v4175 = vpack.c.b16 %v4174, %v4174
      %4176 = vrot.lane.b32.xlu0 %v4175, 96
      %v4177 = vpop.permute.xlu0 %4176
      %v4179 = vld [vmem:[#allocation6 + $0x8] sm:$0x1]
      %v4180 = vsel %vm3868, %v4177, %v4179
      %4181 = vst [vmem:[#allocation6 + $0x8] sm:$0x1] %v4180
      %v4182 = vld [vmem:[#allocation5 + $0x76] sm:$0x1]
      %v4183 = vld [vmem:[#allocation5 + $0x77] sm:$0x1]
      %v4184 = vmax.f32 %v4182, %v4183
      %v4185 = vld [vmem:[#allocation5 + $0x84] sm:$0x1]
      %v4186 = vld [vmem:[#allocation5 + $0x85] sm:$0x1]
      %v4187 = vmax.f32 %v4185, %v4186
      %v4188 = vmax.f32 %v4184, %v4187
      %v4189 = vld [vmem:[%s4] sm:$0x1]
      %v4190 = vadd.f32 %v4188, %v4189
      %v4191 = vmax.f32 %v4190, 0.0
      %v4192 = vpack.c.bf16 %v4191, %v4191
      %v4194 = vunpack.c.l.b16 %v4192
      %v4195 = vpack.c.b16 %v4194, %v4194
      %4196 = vrot.lane.b32.xlu0 %v4195, 112
      %v4197 = vpop.permute.xlu0 %4196
      %v4199 = vld [vmem:[#allocation6 + $0x8] sm:$0x1]
      %v4200 = vsel %vm3890, %v4197, %v4199
      %4201 = vst [vmem:[#allocation6 + $0x8] sm:$0x1] %v4200
      %v4202 = vld [vmem:[#allocation5 + $0x78] sm:$0x1]
      %v4203 = vld [vmem:[#allocation5 + $0x79] sm:$0x1]
      %v4204 = vmax.f32 %v4202, %v4203
      %v4205 = vld [vmem:[#allocation5 + $0x86] sm:$0x1]
      %v4206 = vld [vmem:[#allocation5 + $0x87] sm:$0x1]
      %v4207 = vmax.f32 %v4205, %v4206
      %v4208 = vmax.f32 %v4204, %v4207
      %v4209 = vld [vmem:[%s4] sm:$0x1]
      %v4210 = vadd.f32 %v4208, %v4209
      %v4211 = vmax.f32 %v4210, 0.0
      %v4212 = vpack.c.bf16 %v4211, %v4211
      %v4213 = vld [vmem:[#allocation6 + $0xc] sm:$0x1]
      %v4214 = vsel %vm3736, %v4212, %v4213
      %4215 = vst [vmem:[#allocation6 + $0xc] sm:$0x1] %v4214
      %v4216 = vld [vmem:[#allocation6] sm:$0xff]
      %v4217 = vld [vmem:[#allocation6 + $0x8] sm:$0xff]
      %v4218 = vld [vmem:[%s5] sm:$0xf]
      %v4219 = vld [vmem:[%s5 + $0x4] sm:$0xf]
      %v4220 = vld [vmem:[%s5 + $0x8] sm:$0xf]
      %v4221 = vld [vmem:[%s5 + $0xc] sm:$0xf]
      %v4222 = vld [vmem:[%s5 + $0x10] sm:$0xf]
      %v4223 = vld [vmem:[%s5 + $0x14] sm:$0xf]
      %v4224 = vld [vmem:[%s5 + $0x18] sm:$0xf]
      %v4225 = vld [vmem:[%s5 + $0x1c] sm:$0xf]
      %v4226 = vld [vmem:[%s5 + $0x20] sm:$0xf]
      %v4227 = vld [vmem:[%s5 + $0x24] sm:$0xf]
      %v4228 = vld [vmem:[%s5 + $0x28] sm:$0xf]
      %v4229 = vld [vmem:[%s5 + $0x2c] sm:$0xf]
      %v4230 = vld [vmem:[%s5 + $0x30] sm:$0xf]
      %v4231 = vld [vmem:[%s5 + $0x34] sm:$0xf]
      %v4232 = vld [vmem:[%s5 + $0x38] sm:$0xf]
      %v4233 = vld [vmem:[%s5 + $0x3c] sm:$0xf]
      %v4234 = vld [vmem:[%s5 + $0x40] sm:$0xf]
      %v4235 = vld [vmem:[%s5 + $0x44] sm:$0xf]
      %v4236 = vld [vmem:[%s5 + $0x48] sm:$0xf]
      %v4237 = vld [vmem:[%s5 + $0x4c] sm:$0xf]
      %v4238 = vld [vmem:[%s5 + $0x50] sm:$0xf]
      %v4239 = vld [vmem:[%s5 + $0x54] sm:$0xf]
      %v4240 = vld [vmem:[%s5 + $0x58] sm:$0xf]
      %v4241 = vld [vmem:[%s5 + $0x5c] sm:$0xf]
      %v4242 = vld [vmem:[%s5 + $0x60] sm:$0xf]
      %v4243 = vld [vmem:[%s5 + $0x64] sm:$0xf]
      %v4244 = vld [vmem:[%s5 + $0x68] sm:$0xf]
      %v4245 = vld [vmem:[%s5 + $0x6c] sm:$0xf]
      %v4246 = vld [vmem:[%s5 + $0x70] sm:$0xf]
      %v4247 = vld [vmem:[%s5 + $0x74] sm:$0xf]
      %v4248 = vld [vmem:[%s5 + $0x78] sm:$0xf]
      %v4249 = vld [vmem:[%s5 + $0x7c] sm:$0xf]
      %v4250 = vld [vmem:[%s5 + $0x80] sm:$0xf]
      %v4251 = vld [vmem:[%s5 + $0x84] sm:$0xf]
      %v4252 = vld [vmem:[%s5 + $0x88] sm:$0xf]
      %v4253 = vld [vmem:[%s5 + $0x8c] sm:$0xf]
      %v4254 = vld [vmem:[%s5 + $0x90] sm:$0xf]
      %v4255 = vld [vmem:[%s5 + $0x94] sm:$0xf]
      %v4256 = vld [vmem:[%s5 + $0x98] sm:$0xf]
      %v4257 = vld [vmem:[%s5 + $0x9c] sm:$0xf]
      %v4258 = vld [vmem:[%s5 + $0xa0] sm:$0xf]
      %v4259 = vld [vmem:[%s5 + $0xa4] sm:$0xf]
      %v4260 = vld [vmem:[%s5 + $0xa8] sm:$0xf]
      %v4261 = vld [vmem:[%s5 + $0xac] sm:$0xf]
      %v4262 = vld [vmem:[%s5 + $0xb0] sm:$0xf]
      %v4263 = vld [vmem:[%s5 + $0xb4] sm:$0xf]
      %v4264 = vld [vmem:[%s5 + $0xb8] sm:$0xf]
      %v4265 = vld [vmem:[%s5 + $0xbc] sm:$0xf]
      %v4266 = vld [vmem:[%s5 + $0xc0] sm:$0xf]
      %v4267 = vld [vmem:[%s5 + $0xc4] sm:$0xf]
      %v4268 = vld [vmem:[%s5 + $0xc8] sm:$0xf]
      %v4269 = vld [vmem:[%s5 + $0xcc] sm:$0xf]
      %v4270 = vld [vmem:[%s5 + $0xd0] sm:$0xf]
      %v4271 = vld [vmem:[%s5 + $0xd4] sm:$0xf]
      %v4272 = vld [vmem:[%s5 + $0xd8] sm:$0xf]
      %v4273 = vld [vmem:[%s5 + $0xdc] sm:$0xf]
      %v4274 = vld [vmem:[%s5 + $0xe0] sm:$0xf]
      %v4275 = vld [vmem:[%s5 + $0xe4] sm:$0xf]
      %v4276 = vld [vmem:[%s5 + $0xe8] sm:$0xf]
      %v4277 = vld [vmem:[%s5 + $0xec] sm:$0xf]
      %v4278 = vld [vmem:[%s5 + $0xf0] sm:$0xf]
      %v4279 = vld [vmem:[%s5 + $0xf4] sm:$0xf]
      %v4280 = vld [vmem:[%s5 + $0xf8] sm:$0xf]
      %v4281 = vld [vmem:[%s5 + $0xfc] sm:$0xf]
      %v4282 = vld [vmem:[%s6] sm:$0x1]
      %v4284 = vlaneseq
      %v4285 = vshrl.u32 %v4284, 7
      %v4286 = vsub.s32 0, %v4285
      %v4287 = vrot.slane %v4282, %v4286
      %v4291 = vunpack.c.l.b16 %v4216
      %v4292 = vunpack.c.h.b16 %v4216
      %v4293 = vunpack.c.l.b16 %v4217
      %v4294 = vunpack.c.h.b16 %v4217
      %v4295 = vpack.c.b16 %v4291, %v4291
      %v4296 = vpack.c.b16 %v4292, %v4292
      %v4297 = vpack.c.b16 %v4293, %v4293
      %v4298 = vpack.c.b16 %v4294, %v4294
      %v4367 = vunpack.c.l.b16 %v4218
      %v4368 = vunpack.c.l.b16 %v4219
      %v4369 = vunpack.c.l.b16 %v4220
      %v4370 = vunpack.c.l.b16 %v4221
      %v4371 = vunpack.c.l.b16 %v4222
      %v4372 = vunpack.c.l.b16 %v4223
      %v4373 = vunpack.c.l.b16 %v4224
      %v4374 = vunpack.c.l.b16 %v4225
      %v4375 = vunpack.c.l.b16 %v4226
      %v4376 = vunpack.c.l.b16 %v4227
      %v4377 = vunpack.c.l.b16 %v4228
      %v4378 = vunpack.c.l.b16 %v4229
      %v4379 = vunpack.c.l.b16 %v4230
      %v4380 = vunpack.c.l.b16 %v4231
      %v4381 = vunpack.c.l.b16 %v4232
      %v4382 = vunpack.c.l.b16 %v4233
      %v4383 = vunpack.c.l.b16 %v4234
      %v4384 = vunpack.c.l.b16 %v4235
      %v4385 = vunpack.c.l.b16 %v4236
      %v4386 = vunpack.c.l.b16 %v4237
      %v4387 = vunpack.c.l.b16 %v4238
      %v4388 = vunpack.c.l.b16 %v4239
      %v4389 = vunpack.c.l.b16 %v4240
      %v4390 = vunpack.c.l.b16 %v4241
      %v4391 = vunpack.c.l.b16 %v4242
      %v4392 = vunpack.c.l.b16 %v4243
      %v4393 = vunpack.c.l.b16 %v4244
      %v4394 = vunpack.c.l.b16 %v4245
      %v4395 = vunpack.c.l.b16 %v4246
      %v4396 = vunpack.c.l.b16 %v4247
      %v4397 = vunpack.c.l.b16 %v4248
      %v4398 = vunpack.c.l.b16 %v4249
      %v4399 = vunpack.c.l.b16 %v4250
      %v4400 = vunpack.c.l.b16 %v4251
      %v4401 = vunpack.c.l.b16 %v4252
      %v4402 = vunpack.c.l.b16 %v4253
      %v4403 = vunpack.c.l.b16 %v4254
      %v4404 = vunpack.c.l.b16 %v4255
      %v4405 = vunpack.c.l.b16 %v4256
      %v4406 = vunpack.c.l.b16 %v4257
      %v4407 = vunpack.c.l.b16 %v4258
      %v4408 = vunpack.c.l.b16 %v4259
      %v4409 = vunpack.c.l.b16 %v4260
      %v4410 = vunpack.c.l.b16 %v4261
      %v4411 = vunpack.c.l.b16 %v4262
      %v4412 = vunpack.c.l.b16 %v4263
      %v4413 = vunpack.c.l.b16 %v4264
      %v4414 = vunpack.c.l.b16 %v4265
      %v4415 = vunpack.c.l.b16 %v4266
      %v4416 = vunpack.c.l.b16 %v4267
      %v4417 = vunpack.c.l.b16 %v4268
      %v4418 = vunpack.c.l.b16 %v4269
      %v4419 = vunpack.c.l.b16 %v4270
      %v4420 = vunpack.c.l.b16 %v4271
      %v4421 = vunpack.c.l.b16 %v4272
      %v4422 = vunpack.c.l.b16 %v4273
      %v4423 = vunpack.c.l.b16 %v4274
      %v4424 = vunpack.c.l.b16 %v4275
      %v4425 = vunpack.c.l.b16 %v4276
      %v4426 = vunpack.c.l.b16 %v4277
      %v4427 = vunpack.c.l.b16 %v4278
      %v4428 = vunpack.c.l.b16 %v4279
      %v4429 = vunpack.c.l.b16 %v4280
      %v4430 = vunpack.c.l.b16 %v4281
      %v4431 = vpack.c.b16 %v4368, %v4367
      %v4432 = vpack.c.b16 %v4370, %v4369
      %v4433 = vpack.c.b16 %v4372, %v4371
      %v4434 = vpack.c.b16 %v4374, %v4373
      %v4435 = vpack.c.b16 %v4376, %v4375
      %v4436 = vpack.c.b16 %v4378, %v4377
      %v4437 = vpack.c.b16 %v4380, %v4379
      %v4438 = vpack.c.b16 %v4382, %v4381
      %v4439 = vpack.c.b16 %v4384, %v4383
      %v4440 = vpack.c.b16 %v4386, %v4385
      %v4441 = vpack.c.b16 %v4388, %v4387
      %v4442 = vpack.c.b16 %v4390, %v4389
      %v4443 = vpack.c.b16 %v4392, %v4391
      %v4444 = vpack.c.b16 %v4394, %v4393
      %v4445 = vpack.c.b16 %v4396, %v4395
      %v4446 = vpack.c.b16 %v4398, %v4397
      %v4447 = vpack.c.b16 %v4400, %v4399
      %v4448 = vpack.c.b16 %v4402, %v4401
      %v4449 = vpack.c.b16 %v4404, %v4403
      %v4450 = vpack.c.b16 %v4406, %v4405
      %v4451 = vpack.c.b16 %v4408, %v4407
      %v4452 = vpack.c.b16 %v4410, %v4409
      %v4453 = vpack.c.b16 %v4412, %v4411
      %v4454 = vpack.c.b16 %v4414, %v4413
      %v4455 = vpack.c.b16 %v4416, %v4415
      %v4456 = vpack.c.b16 %v4418, %v4417
      %v4457 = vpack.c.b16 %v4420, %v4419
      %v4458 = vpack.c.b16 %v4422, %v4421
      %v4459 = vpack.c.b16 %v4424, %v4423
      %v4460 = vpack.c.b16 %v4426, %v4425
      %v4461 = vpack.c.b16 %v4428, %v4427
      %v4462 = vpack.c.b16 %v4430, %v4429
      %4495 = vmatprep.subr.bf16.mxu0 0
      %4496 = vmatpush1.bf16.msra.mxu0 %v4431
      %4497 = vmatprep.subr.bf16.mxu0 0
      %4498 = vmatpush1.bf16.msra.mxu0 %v4432
      %4499 = vmatprep.subr.bf16.mxu0 0
      %4500 = vmatpush1.bf16.msra.mxu0 %v4433
      %4501 = vmatprep.subr.bf16.mxu0 0
      %4502 = vmatpush1.bf16.msra.mxu0 %v4434
      %4503 = vmatprep.subr.bf16.mxu0 0
      %4504 = vmatpush1.bf16.msra.mxu0 %v4435
      %4505 = vmatprep.subr.bf16.mxu0 0
      %4506 = vmatpush1.bf16.msra.mxu0 %v4436
      %4507 = vmatprep.subr.bf16.mxu0 0
      %4508 = vmatpush1.bf16.msra.mxu0 %v4437
      %4509 = vmatprep.subr.bf16.mxu0 0
      %4510 = vmatpush1.bf16.msra.mxu0 %v4438
      %4511 = vmatprep.subr.bf16.mxu0 0
      %4512 = vmatpush1.bf16.msra.mxu0 %v4439
      %4513 = vmatprep.subr.bf16.mxu0 0
      %4514 = vmatpush1.bf16.msra.mxu0 %v4440
      %4515 = vmatprep.subr.bf16.mxu0 0
      %4516 = vmatpush1.bf16.msra.mxu0 %v4441
      %4517 = vmatprep.subr.bf16.mxu0 0
      %4518 = vmatpush1.bf16.msra.mxu0 %v4442
      %4519 = vmatprep.subr.bf16.mxu0 0
      %4520 = vmatpush1.bf16.msra.mxu0 %v4443
      %4521 = vmatprep.subr.bf16.mxu0 0
      %4522 = vmatpush1.bf16.msra.mxu0 %v4444
      %4523 = vmatprep.subr.bf16.mxu0 0
      %4524 = vmatpush1.bf16.msra.mxu0 %v4445
      %4525 = vmatprep.subr.bf16.mxu0 0
      %4526 = vmatpush1.bf16.msra.mxu0 %v4446
      %4527 = vmatprep.mubr.bf16.mxu0 %v4296
      %4528 = vmatmul.mubr.bf16.gmra.mrb[0].mxu0 %v4295
      %v4529 = vpop.f32.mrb[0].mxu0
      %v4530 = vadd.f32 %v4287, %v4529
      %v4531 = vpop.f32.mrb[0].mxu0
      %v4532 = vpop.f32.mrb[0].mxu0
      %v4533 = vpop.f32.mrb[0].mxu0
      %4534 = vdwg.mxu0
      %4535 = vmatprep.subr.bf16.mxu0 0
      %4536 = vmatpush1.bf16.msra.mxu0 %v4447
      %4537 = vmatprep.subr.bf16.mxu0 0
      %4538 = vmatpush1.bf16.msra.mxu0 %v4448
      %4539 = vmatprep.subr.bf16.mxu0 0
      %4540 = vmatpush1.bf16.msra.mxu0 %v4449
      %4541 = vmatprep.subr.bf16.mxu0 0
      %4542 = vmatpush1.bf16.msra.mxu0 %v4450
      %4543 = vmatprep.subr.bf16.mxu0 0
      %4544 = vmatpush1.bf16.msra.mxu0 %v4451
      %4545 = vmatprep.subr.bf16.mxu0 0
      %4546 = vmatpush1.bf16.msra.mxu0 %v4452
      %4547 = vmatprep.subr.bf16.mxu0 0
      %4548 = vmatpush1.bf16.msra.mxu0 %v4453
      %4549 = vmatprep.subr.bf16.mxu0 0
      %4550 = vmatpush1.bf16.msra.mxu0 %v4454
      %4551 = vmatprep.subr.bf16.mxu0 0
      %4552 = vmatpush1.bf16.msra.mxu0 %v4455
      %4553 = vmatprep.subr.bf16.mxu0 0
      %4554 = vmatpush1.bf16.msra.mxu0 %v4456
      %4555 = vmatprep.subr.bf16.mxu0 0
      %4556 = vmatpush1.bf16.msra.mxu0 %v4457
      %4557 = vmatprep.subr.bf16.mxu0 0
      %4558 = vmatpush1.bf16.msra.mxu0 %v4458
      %4559 = vmatprep.subr.bf16.mxu0 0
      %4560 = vmatpush1.bf16.msra.mxu0 %v4459
      %4561 = vmatprep.subr.bf16.mxu0 0
      %4562 = vmatpush1.bf16.msra.mxu0 %v4460
      %4563 = vmatprep.subr.bf16.mxu0 0
      %4564 = vmatpush1.bf16.msra.mxu0 %v4461
      %4565 = vmatprep.subr.bf16.mxu0 0
      %4566 = vmatpush1.bf16.msra.mxu0 %v4462
      %4567 = vmatprep.mubr.bf16.mxu0 %v4298
      %4568 = vmatmul.mubr.bf16.gmra.mrb[0].mxu0 %v4297
      %v4569 = vpop.f32.mrb[0].mxu0
      %v4570 = vadd.f32 %v4530, %v4569
      %v4571 = vpop.f32.mrb[0].mxu0
      %v4572 = vpop.f32.mrb[0].mxu0
      %v4573 = vpop.f32.mrb[0].mxu0
      %4574 = vdwg.mxu0
      %v4575 = vmax.f32 %v4570, 0.0
      %v4576 = vpack.c.bf16 %v4575, %v4575
      %v4577 = vld [vmem:[%s7] sm:$0xf]
      %v4578 = vld [vmem:[%s7 + $0x4] sm:$0xf]
      %v4579 = vld [vmem:[%s7 + $0x8] sm:$0xf]
      %v4580 = vld [vmem:[%s7 + $0xc] sm:$0xf]
      %v4581 = vld [vmem:[%s7 + $0x10] sm:$0xf]
      %v4582 = vld [vmem:[%s7 + $0x14] sm:$0xf]
      %v4583 = vld [vmem:[%s7 + $0x18] sm:$0xf]
      %v4584 = vld [vmem:[%s7 + $0x1c] sm:$0xf]
      %v4585 = vld [vmem:[%s7 + $0x20] sm:$0xf]
      %v4586 = vld [vmem:[%s7 + $0x24] sm:$0xf]
      %v4587 = vld [vmem:[%s7 + $0x28] sm:$0xf]
      %v4588 = vld [vmem:[%s7 + $0x2c] sm:$0xf]
      %v4589 = vld [vmem:[%s7 + $0x30] sm:$0xf]
      %v4590 = vld [vmem:[%s7 + $0x34] sm:$0xf]
      %v4591 = vld [vmem:[%s7 + $0x38] sm:$0xf]
      %v4592 = vld [vmem:[%s7 + $0x3c] sm:$0xf]
      %v4593 = vld [vmem:[%s8] sm:$0x1]
      %v4595 = vlaneseq
      %v4596 = vshrl.u32 %v4595, 7
      %v4597 = vsub.s32 0, %v4596
      %v4598 = vrot.slane %v4593, %v4597
      %v4616 = vunpack.c.l.b16 %v4577
      %v4617 = vunpack.c.l.b16 %v4578
      %v4618 = vunpack.c.l.b16 %v4579
      %v4619 = vunpack.c.l.b16 %v4580
      %v4620 = vunpack.c.l.b16 %v4581
      %v4621 = vunpack.c.l.b16 %v4582
      %v4622 = vunpack.c.l.b16 %v4583
      %v4623 = vunpack.c.l.b16 %v4584
      %v4624 = vunpack.c.l.b16 %v4585
      %v4625 = vunpack.c.l.b16 %v4586
      %v4626 = vunpack.c.l.b16 %v4587
      %v4627 = vunpack.c.l.b16 %v4588
      %v4628 = vunpack.c.l.b16 %v4589
      %v4629 = vunpack.c.l.b16 %v4590
      %v4630 = vunpack.c.l.b16 %v4591
      %v4631 = vunpack.c.l.b16 %v4592
      %v4632 = vpack.c.b16 %v4617, %v4616
      %v4633 = vpack.c.b16 %v4619, %v4618
      %v4634 = vpack.c.b16 %v4621, %v4620
      %v4635 = vpack.c.b16 %v4623, %v4622
      %v4636 = vpack.c.b16 %v4625, %v4624
      %v4637 = vpack.c.b16 %v4627, %v4626
      %v4638 = vpack.c.b16 %v4629, %v4628
      %v4639 = vpack.c.b16 %v4631, %v4630
      %4648 = vmatprep.subr.bf16.mxu0 0
      %4649 = vmatpush1.bf16.msra.mxu0 %v4632
      %4650 = vmatprep.subr.bf16.mxu0 0
      %4651 = vmatpush1.bf16.msra.mxu0 %v4633
      %4652 = vmatprep.subr.bf16.mxu0 0
      %4653 = vmatpush1.bf16.msra.mxu0 %v4634
      %4654 = vmatprep.subr.bf16.mxu0 0
      %4655 = vmatpush1.bf16.msra.mxu0 %v4635
      %4656 = vmatprep.subr.bf16.mxu0 0
      %4657 = vmatpush1.bf16.msra.mxu0 %v4636
      %4658 = vmatprep.subr.bf16.mxu0 0
      %4659 = vmatpush1.bf16.msra.mxu0 %v4637
      %4660 = vmatprep.subr.bf16.mxu0 0
      %4661 = vmatpush1.bf16.msra.mxu0 %v4638
      %4662 = vmatprep.subr.bf16.mxu0 0
      %4663 = vmatpush1.bf16.msra.mxu0 %v4639
      %4664 = vmatprep.subr.bf16.mxu0 0
      %4665 = vmatpush1.bf16.msra.mxu0 0
      %4666 = vmatprep.subr.bf16.mxu0 0
      %4667 = vmatpush1.bf16.msra.mxu0 0
      %4668 = vmatprep.subr.bf16.mxu0 0
      %4669 = vmatpush1.bf16.msra.mxu0 0
      %4670 = vmatprep.subr.bf16.mxu0 0
      %4671 = vmatpush1.bf16.msra.mxu0 0
      %4672 = vmatprep.subr.bf16.mxu0 0
      %4673 = vmatpush1.bf16.msra.mxu0 0
      %4674 = vmatprep.subr.bf16.mxu0 0
      %4675 = vmatpush1.bf16.msra.mxu0 0
      %4676 = vmatprep.subr.bf16.mxu0 0
      %4677 = vmatpush1.bf16.msra.mxu0 0
      %4678 = vmatprep.subr.bf16.mxu0 0
      %4679 = vmatpush1.bf16.msra.mxu0 0
      %4680 = vmatprep.mubr.bf16.mxu0 0
      %4681 = vmatmul.mubr.bf16.gmra.mrb[0].mxu0 %v4576
      %v4682 = vpop.f32.mrb[0].mxu0
      %v4683 = vadd.f32 %v4598, %v4682
      %v4684 = vpop.f32.mrb[0].mxu0
      %v4685 = vpop.f32.mrb[0].mxu0
      %v4686 = vpop.f32.mrb[0].mxu0
      %4687 = vdwg.mxu0
      %v4688 = vmax.f32 %v4683, 0.0
      %v4689 = vpack.c.bf16 %v4688, %v4688
      %v4690 = vld [vmem:[%s9] sm:$0xf]
      %v4691 = vld [vmem:[%s9 + $0x4] sm:$0xf]
      %v4692 = vld [vmem:[%s9 + $0x8] sm:$0xf]
      %v4693 = vld [vmem:[%s9 + $0xc] sm:$0xf]
      %v4694 = vld [vmem:[%s9 + $0x10] sm:$0xf]
      %v4695 = vld [vmem:[%s9 + $0x14] sm:$0xf]
      %v4696 = vld [vmem:[%s9 + $0x18] sm:$0xf]
      %v4697 = vld [vmem:[%s9 + $0x1c] sm:$0xf]
      %v4698 = vld [vmem:[%s9 + $0x20] sm:$0xf]
      %v4699 = vld [vmem:[%s9 + $0x24] sm:$0xf]
      %v4700 = vld [vmem:[%s9 + $0x28] sm:$0xf]
      %v4701 = vld [vmem:[%s9 + $0x2c] sm:$0xf]
      %v4702 = vld [vmem:[%s9 + $0x30] sm:$0xf]
      %v4703 = vld [vmem:[%s9 + $0x34] sm:$0xf]
      %v4704 = vld [vmem:[%s9 + $0x38] sm:$0xf]
      %v4705 = vld [vmem:[%s9 + $0x3c] sm:$0xf]
      %v4706 = vld [vmem:[%s10] sm:$0x1]
      %v4708 = vlaneseq
      %v4709 = vshrl.u32 %v4708, 7
      %v4710 = vsub.s32 0, %v4709
      %v4711 = vrot.slane %v4706, %v4710
      %v4729 = vunpack.c.l.b16 %v4690
      %v4730 = vunpack.c.l.b16 %v4691
      %v4731 = vunpack.c.l.b16 %v4692
      %v4732 = vunpack.c.l.b16 %v4693
      %v4733 = vunpack.c.l.b16 %v4694
      %v4734 = vunpack.c.l.b16 %v4695
      %v4735 = vunpack.c.l.b16 %v4696
      %v4736 = vunpack.c.l.b16 %v4697
      %v4737 = vunpack.c.l.b16 %v4698
      %v4738 = vunpack.c.l.b16 %v4699
      %v4739 = vunpack.c.l.b16 %v4700
      %v4740 = vunpack.c.l.b16 %v4701
      %v4741 = vunpack.c.l.b16 %v4702
      %v4742 = vunpack.c.l.b16 %v4703
      %v4743 = vunpack.c.l.b16 %v4704
      %v4744 = vunpack.c.l.b16 %v4705
      %v4745 = vpack.c.b16 %v4730, %v4729
      %v4746 = vpack.c.b16 %v4732, %v4731
      %v4747 = vpack.c.b16 %v4734, %v4733
      %v4748 = vpack.c.b16 %v4736, %v4735
      %v4749 = vpack.c.b16 %v4738, %v4737
      %v4750 = vpack.c.b16 %v4740, %v4739
      %v4751 = vpack.c.b16 %v4742, %v4741
      %v4752 = vpack.c.b16 %v4744, %v4743
      %4761 = vmatprep.subr.bf16.mxu0 0
      %4762 = vmatpush1.bf16.msra.mxu0 %v4745
      %4763 = vmatprep.subr.bf16.mxu0 0
      %4764 = vmatpush1.bf16.msra.mxu0 %v4746
      %4765 = vmatprep.subr.bf16.mxu0 0
      %4766 = vmatpush1.bf16.msra.mxu0 %v4747
      %4767 = vmatprep.subr.bf16.mxu0 0
      %4768 = vmatpush1.bf16.msra.mxu0 %v4748
      %4769 = vmatprep.subr.bf16.mxu0 0
      %4770 = vmatpush1.bf16.msra.mxu0 %v4749
      %4771 = vmatprep.subr.bf16.mxu0 0
      %4772 = vmatpush1.bf16.msra.mxu0 %v4750
      %4773 = vmatprep.subr.bf16.mxu0 0
      %4774 = vmatpush1.bf16.msra.mxu0 %v4751
      %4775 = vmatprep.subr.bf16.mxu0 0
      %4776 = vmatpush1.bf16.msra.mxu0 %v4752
      %4777 = vmatprep.subr.bf16.mxu0 0
      %4778 = vmatpush1.bf16.msra.mxu0 0
      %4779 = vmatprep.subr.bf16.mxu0 0
      %4780 = vmatpush1.bf16.msra.mxu0 0
      %4781 = vmatprep.subr.bf16.mxu0 0
      %4782 = vmatpush1.bf16.msra.mxu0 0
      %4783 = vmatprep.subr.bf16.mxu0 0
      %4784 = vmatpush1.bf16.msra.mxu0 0
      %4785 = vmatprep.subr.bf16.mxu0 0
      %4786 = vmatpush1.bf16.msra.mxu0 0
      %4787 = vmatprep.subr.bf16.mxu0 0
      %4788 = vmatpush1.bf16.msra.mxu0 0
      %4789 = vmatprep.subr.bf16.mxu0 0
      %4790 = vmatpush1.bf16.msra.mxu0 0
      %4791 = vmatprep.subr.bf16.mxu0 0
      %4792 = vmatpush1.bf16.msra.mxu0 0
      %4793 = vmatprep.mubr.bf16.mxu0 0
      %4794 = vmatmul.mubr.bf16.gmra.mrb[0].mxu0 %v4689
      %v4795 = vpop.f32.mrb[0].mxu0
      %v4796 = vadd.f32 %v4711, %v4795
      %v4797 = vpop.f32.mrb[0].mxu0
      %v4798 = vpop.f32.mrb[0].mxu0
      %v4799 = vpop.f32.mrb[0].mxu0
      %4800 = vdwg.mxu0
      %4801 = vst [vmem:[%s386] sm:$0xff] %v4796
      %p4802 = scmp.lt.s32.totalorder %s22, 1
      %s4803 = scalar_select %p4802, %s22, 1
      %s4804 = smul.addr %s4803, 8
      %s4805 = scalar_lea.vmem %s11, %s4804
      // Predicated region
      $region65: #{convnet_forward.1} parent=63 // pred_check
        %p4806 = pneg %p276
      $region66: #{convnet_forward.1} parent=63 // pred_check_branch
        %4808 = sbr.rel (%p4806) target = $region68
      $region67: #{convnet_forward.1} parent=63 // pred_region
        _
      $region68: #{convnet_forward.1} parent=63 // pred_fallthru
        _
    $region64: #{convnet_forward.1} parent=5 // pred_fallthru
      _
    %p4809 = scmp.le.s32.totalorder 2, %s17
    // Predicated region
    $region69: #{convnet_forward.1} parent=5 // pred_check
      %p4810 = pneg %p4809
    $region70: #{convnet_forward.1} parent=5 // pred_check_branch
      %4812 = sbr.rel (%p4810) target = $region72
    $region71: #{convnet_forward.1} parent=5 // pred_region
      %s4813 = ssub.s32 %s17, 2
      // Predicated region
      $region73: #{convnet_forward.1} parent=71 // pred_check
        %p4814 = pneg %p282
      $region74: #{convnet_forward.1} parent=71 // pred_check_branch
        %4816 = sbr.rel (%p4814) target = $region76
      $region75: #{convnet_forward.1} parent=71 // pred_region
        %p4817 = scmp.lt.s32.totalorder %s23, 1
        %s4818 = scalar_select %p4817, %s23, 1
        %s4819 = smul.addr %s4818, 8
        %s4820 = scalar_lea.vmem %s11, %s4819
      $region76: #{convnet_forward.1} parent=71 // pred_fallthru
        _
    $region72: #{convnet_forward.1} parent=5 // pred_fallthru
      _
  $region6: #{convnet_forward.1} parent=0 // loop_footer
    %s21 = sadd.s32 1, %s17
  $region7: #{convnet_forward.1} parent=0 // loop_footer_branch
    %16 = sbr.rel target = $region3
  $region8: #{convnet_forward.1} parent=0 // loop_exit
    _

</llo_original>
